<compile_context>
chip_gen: v5e
topology: v5e:2x2
jax: 0.10.0
libtpu: 0.0.40
codegen_flags: <defaults>
</compile_context>

<pallas_src>
import functools

import numpy as np
import jax
import jax.numpy as jnp
from jax import lax
from jax.experimental import pallas as pl
from jax.experimental.pallas import tpu as pltpu

_SQRT2 = 1.4142135623730951
_GN_EPS = 1e-5      # nn.GroupNorm default eps used inside ResConvBlock
_ATTN_EPS = 1e-6    # resnet_eps forwarded to the Attention group_norm


def _gelu(x):
    # exact GELU (nn.GELU default, erf-based)
    return 0.5 * x * (1.0 + lax.erf(x / _SQRT2))


# ------------------------- fused mid-block kernel -------------------------
def _midblock_kernel(x_ref, rw_ref, rv_ref, proj_ref, wqkv_ref, wo_ref,
                     avec_ref, bqkv_ref, bm_ref, o_ref, *, B, C, L, heads, scale):
    hd = C // heads
    bm_res = bm_ref[0]          # (B*L, B*L) per-sample averaging matrix, scaled 1/(C*L)
    bm_attn = bm_ref[1]         # (B*L, B*L) per-L-group averaging matrix, scaled 1/(C*gs)
    rvec = rv_ref[...]          # (C, 12)  packed per-channel resnet vectors (columns)
    avec = avec_ref[...]        # (3, B*L) [gn_g, gn_b, bo] tiled per batch (rows)

    def gn_cols(h, bmat, eps):
        # column-group normalization; the group structure + 1/count scaling live in `bmat`.
        s = jnp.concatenate([jnp.sum(h, axis=0, keepdims=True),
                             jnp.sum(h * h, axis=0, keepdims=True)], axis=0)   # (2, B*L)
        g = jnp.dot(s, bmat, preferred_element_type=jnp.float32)               # (2, B*L)
        mu = g[0:1, :]
        var = g[1:2, :] - mu * mu
        return (h - mu) * lax.rsqrt(var + eps)

    def resconv(h_in, w1, w2, vcol, proj):
        # vcol columns: [b1, g1, be1, b2, g2, be2] (per-channel -> per-row in this layout)
        h = jnp.dot(w1, h_in, preferred_element_type=jnp.float32) + vcol[:, 0:1] + proj
        h = gn_cols(h, bm_res, _GN_EPS) * vcol[:, 1:2] + vcol[:, 2:3]
        h = _gelu(h)
        # dropout(p=0.0) == identity
        h = jnp.dot(w2, h, preferred_element_type=jnp.float32) + vcol[:, 3:4]
        h = gn_cols(h, bm_res, _GN_EPS) * vcol[:, 4:5] + vcol[:, 5:6]
        h = _gelu(h)
        return h + h_in                                             # residual (C_in == C_out)

    x = x_ref[...]                                                  # (C, B*L)

    # ---- resnets[0] ----
    h = resconv(x, rw_ref[0], rw_ref[1], rvec[:, 0:6], proj_ref[0])

    # ---- attentions[0] (deprecated attn block, residual_connection=True) ----
    y = gn_cols(h, bm_attn, _ATTN_EPS)
    y = y * avec[0:1, :] + avec[1:2, :]                             # affine per L index (tiled per batch)
    # fused q/k/v projection; batch handled by the block-diagonal weight -> (C, B*3L)
    qkv = jnp.dot(y, wqkv_ref[...], preferred_element_type=jnp.float32) + bqkv_ref[...]
    q_parts, k_parts, v_parts = [], [], []
    for b in range(B):                                              # static slices only
        base = b * 3 * L
        for hh in range(heads):
            q_parts.append(qkv[:, base + hh * hd: base + (hh + 1) * hd])
            k_parts.append(qkv[:, base + L + hh * hd: base + L + (hh + 1) * hd])
            v_parts.append(qkv[:, base + 2 * L + hh * hd: base + 2 * L + (hh + 1) * hd])
    q = jnp.stack(q_parts, axis=0)                                  # (B*heads, C, hd)
    k = jnp.stack(k_parts, axis=0)
    v = jnp.stack(v_parts, axis=0)
    s = lax.dot_general(q, k, (((2,), (2,)), ((0,), (0,))),
                        preferred_element_type=jnp.float32) * scale            # (G, C, C)
    s = s - jnp.max(s, axis=-1, keepdims=True)                      # upcast_softmax (f32 throughout)
    e = jnp.exp(s)
    p = e * pl.reciprocal(jnp.sum(e, axis=-1, keepdims=True), approx=False)
    o = lax.dot_general(p, v, (((2,), (1,)), ((0,), (0,))),
                        preferred_element_type=jnp.float32)                    # (G, C, hd)
    a = jnp.concatenate([o[g] for g in range(B * heads)], axis=-1)              # (C, B*L)
    h = jnp.dot(a, wo_ref[...], preferred_element_type=jnp.float32) + avec[2:3, :] + h

    # ---- resnets[1] ----
    h = resconv(h, rw_ref[2], rw_ref[3], rvec[:, 6:12], proj_ref[1])
    o_ref[...] = h


def unet_mid_block_1d(x, temb, params):
    B, C, L = x.shape
    heads, groups = params['heads'], params['groups']
    assert L == C, "deprecated-attn-block layout requires length == channels"
    hd = C // heads
    gs = L // groups
    p0, pa, p1 = params['res0'], params['attn'], params['res1']
    f32 = jnp.float32

    # hidden state: channel-major with batch folded into the lane dim -> (C, B*L)
    x_cn = jnp.transpose(x, (1, 0, 2)).reshape(C, B * L)

    # hoisted time-embedding projections, pre-broadcast over L -> (C, B*L)
    def tproj(p):
        t = _gelu(temb) @ p['wt'].T + p['bt']          # (B, M)
        return jnp.repeat(t.T, L, axis=1)              # (M, B*L)
    proj = jnp.stack([tproj(p0), tproj(p1)], axis=0)   # (2, C, B*L)

    # packed resnet weights / per-channel vectors
    rw = jnp.stack([p0['w1'], p0['w2'], p1['w1'], p1['w2']], axis=0)              # (4, C, C)
    rv = jnp.stack([p0['b1'], p0['g1'], p0['be1'], p0['b2'], p0['g2'], p0['be2'],
                    p1['b1'], p1['g1'], p1['be1'], p1['b2'], p1['g2'], p1['be2']],
                   axis=1)                                                        # (C, 12)

    # attention weights: block-diagonal (kron) so batch folds into the lane dim of one matmul.
    eye_b = jnp.eye(B, dtype=f32)
    wqkv_t = jnp.concatenate([pa['wq'].T, pa['wk'].T, pa['wv'].T], axis=1)        # (L, 3L)
    wqkv_bd = jnp.kron(eye_b, wqkv_t)                                             # (B*L, 3*B*L)
    wo_bd = jnp.kron(eye_b, pa['wo'].T)                                           # (B*L, B*L)
    bqkv = jnp.tile(jnp.concatenate([pa['bq'], pa['bk'], pa['bv']]), B)[None, :]  # (1, 3*B*L)
    avec = jnp.stack([jnp.tile(pa['gn_g'], B), jnp.tile(pa['gn_b'], B),
                      jnp.tile(pa['bo'], B)], axis=0)                             # (3, B*L)

    # column-group averaging matrices (group structure + 1/count baked in)
    col = jnp.arange(B * L)
    same_batch = (col[:, None] // L) == (col[None, :] // L)
    bm_res = same_batch.astype(f32) / float(C * L)                  # GroupNorm(1, C) per sample
    same_grp = (col[:, None] // gs) == (col[None, :] // gs)         # gs | L -> never crosses batch
    bm_attn = same_grp.astype(f32) / float(C * gs)
    bm = jnp.stack([bm_res, bm_attn], axis=0)                       # (2, B*L, B*L)

    kern = functools.partial(_midblock_kernel, B=B, C=C, L=L, heads=heads,
                             scale=float(hd) ** -0.5)
    vmem = pl.BlockSpec(memory_space=pltpu.MemorySpace.VMEM)
    out_cn = pl.pallas_call(
        kern,
        out_shape=jax.ShapeDtypeStruct((C, B * L), x.dtype),
        in_specs=[vmem] * 9,
        out_specs=vmem,
    )(x_cn, rw, rv, proj, wqkv_bd, wo_bd, avec, bqkv, bm)
    return jnp.transpose(out_cn.reshape(C, B, L), (1, 0, 2))


# ------------------------- parameter init (deterministic) -------------------------
def _xavier_uniform(key, shape):
    fan_out, fan_in = shape
    bound = np.sqrt(6.0 / (fan_in + fan_out))
    return jax.random.uniform(key, shape, jnp.float32, -bound, bound)


def init_resconv_params(key, C, M, T):
    ks = jax.random.split(key, 4)
    return dict(
        w1=_xavier_uniform(ks[0], (M, C)), b1=jnp.zeros((M,), jnp.float32),
        wt=_xavier_uniform(ks[1], (M, T)),
        bt=0.02 * jax.random.normal(ks[2], (M,), jnp.float32),
        g1=jnp.ones((M,), jnp.float32), be1=jnp.zeros((M,), jnp.float32),
        w2=_xavier_uniform(ks[3], (C, M)), b2=jnp.zeros((C,), jnp.float32),
        g2=jnp.ones((C,), jnp.float32), be2=jnp.zeros((C,), jnp.float32))


def init_attn_params(key, C):
    ks = jax.random.split(key, 8)
    return dict(
        gn_g=jnp.ones((C,), jnp.float32), gn_b=jnp.zeros((C,), jnp.float32),
        wq=_xavier_uniform(ks[0], (C, C)), bq=0.02 * jax.random.normal(ks[1], (C,), jnp.float32),
        wk=_xavier_uniform(ks[2], (C, C)), bk=0.02 * jax.random.normal(ks[3], (C,), jnp.float32),
        wv=_xavier_uniform(ks[4], (C, C)), bv=0.02 * jax.random.normal(ks[5], (C,), jnp.float32),
        wo=_xavier_uniform(ks[6], (C, C)), bo=0.02 * jax.random.normal(ks[7], (C,), jnp.float32))


# ------------------------- pure-JAX reference (for verification) -------------------------
def _ref_resconv(x, temb, p):
    h = jnp.einsum('mc,bcl->bml', p['w1'], x) + p['b1'][None, :, None]
    proj = _gelu(temb) @ p['wt'].T + p['bt']
    h = h + proj[:, :, None]
    mu = h.mean(axis=(1, 2), keepdims=True)
    var = ((h - mu) ** 2).mean(axis=(1, 2), keepdims=True)
    h = (h - mu) / jnp.sqrt(var + _GN_EPS) * p['g1'][None, :, None] + p['be1'][None, :, None]
    h = _gelu(h)
    h = jnp.einsum('cm,bml->bcl', p['w2'], h) + p['b2'][None, :, None]
    mu = h.mean(axis=(1, 2), keepdims=True)
    var = ((h - mu) ** 2).mean(axis=(1, 2), keepdims=True)
    h = (h - mu) / jnp.sqrt(var + _GN_EPS) * p['g2'][None, :, None] + p['be2'][None, :, None]
    h = _gelu(h)
    return h + x


def _ref_attn(x, p, groups, heads):
    B, C, L = x.shape
    gs = L // groups
    xt = jnp.transpose(x, (0, 2, 1))                     # (B, L, C)
    xg = xt.reshape(B, groups, gs, C)
    mu = xg.mean(axis=(2, 3), keepdims=True)
    var = ((xg - mu) ** 2).mean(axis=(2, 3), keepdims=True)
    yt = ((xg - mu) / jnp.sqrt(var + _ATTN_EPS)).reshape(B, L, C)
    yt = yt * p['gn_g'][None, :, None] + p['gn_b'][None, :, None]
    y = jnp.transpose(yt, (0, 2, 1))                     # (B, C, L)
    q = y @ p['wq'].T + p['bq']
    k = y @ p['wk'].T + p['bk']
    v = y @ p['wv'].T + p['bv']
    hd = q.shape[-1] // heads
    split = lambda t: t.reshape(B, C, heads, hd).transpose(0, 2, 1, 3)
    qh, kh, vh = split(q), split(k), split(v)
    s = jnp.einsum('bhqd,bhkd->bhqk', qh, kh) * (hd ** -0.5)
    pr = jax.nn.softmax(s, axis=-1)
    o = jnp.einsum('bhqk,bhkd->bhqd', pr, vh)
    o = o.transpose(0, 2, 1, 3).reshape(B, C, heads * hd)
    o = o @ p['wo'].T + p['bo']
    return o + x


if __name__ == "__main__":
    # UNetMidBlock1D(in_channels=32, temb_channels=32, attention_head_dim=8,
    #                resnet_groups=8, num_layers=1); L == C is required by the module.
    B, C, L, T = 2, 32, 32, 32
    head_dim, groups = 8, 8
    heads = C // head_dim

    key = jax.random.PRNGKey(0)
    k_r0, k_at, k_r1, k_x, k_t = jax.random.split(key, 5)
    params = dict(
        heads=heads, groups=groups,
        res0=init_resconv_params(k_r0, C, C, T),
        attn=init_attn_params(k_at, C),
        res1=init_resconv_params(k_r1, C, C, T))

    x = jax.random.normal(k_x, (B, C, L), jnp.float32)
    temb = jax.random.normal(k_t, (B, T), jnp.float32)

    forward = jax.jit(functools.partial(unet_mid_block_1d, params=params))
    out = jax.block_until_ready(forward(x, temb))

    ref = _ref_resconv(x, temb, params['res0'])
    ref = _ref_attn(ref, params['attn'], groups, heads)
    ref = _ref_resconv(ref, temb, params['res1'])
    np.testing.assert_allclose(np.asarray(out), np.asarray(ref), rtol=2e-3, atol=2e-3)

    print("KERNEL_OK")
</pallas_src>

<mosaic_0001>
module attributes {stable_mosaic.version = 11 : i64} {
  func.func @_midblock_kernel(%arg0: memref<32x64xf32, #tpu.memory_space<vmem>>, %arg1: memref<4x32x32xf32, #tpu.memory_space<vmem>>, %arg2: memref<32x12xf32, #tpu.memory_space<vmem>>, %arg3: memref<2x32x64xf32, #tpu.memory_space<vmem>>, %arg4: memref<64x192xf32, #tpu.memory_space<vmem>>, %arg5: memref<64x64xf32, #tpu.memory_space<vmem>>, %arg6: memref<3x64xf32, #tpu.memory_space<vmem>>, %arg7: memref<1x192xf32, #tpu.memory_space<vmem>>, %arg8: memref<2x64x64xf32, #tpu.memory_space<vmem>>, %arg9: memref<32x64xf32, #tpu.memory_space<vmem>>) attributes {dimension_semantics = [], scalar_prefetch = 0 : i64, scratch_operands = 0 : i64, tpu.core_type = #tpu.core_type<tc>} {
    %c0 = arith.constant 0 : index
    %c0_0 = arith.constant 0 : index
    %c0_1 = arith.constant 0 : index
    %0 = vector.load %arg8[%c0, %c0_0, %c0_1] : memref<2x64x64xf32, #tpu.memory_space<vmem>>, vector<1x64x64xf32>
    %1 = vector.shape_cast %0 : vector<1x64x64xf32> to vector<64x64xf32>
    %c1 = arith.constant 1 : index
    %c0_2 = arith.constant 0 : index
    %c0_3 = arith.constant 0 : index
    %2 = vector.load %arg8[%c1, %c0_2, %c0_3] : memref<2x64x64xf32, #tpu.memory_space<vmem>>, vector<1x64x64xf32>
    %3 = vector.shape_cast %2 : vector<1x64x64xf32> to vector<64x64xf32>
    %c0_4 = arith.constant 0 : index
    %c0_5 = arith.constant 0 : index
    %4 = vector.load %arg2[%c0_4, %c0_5] : memref<32x12xf32, #tpu.memory_space<vmem>>, vector<32x12xf32>
    %c0_6 = arith.constant 0 : index
    %c0_7 = arith.constant 0 : index
    %5 = vector.load %arg6[%c0_6, %c0_7] : memref<3x64xf32, #tpu.memory_space<vmem>>, vector<3x64xf32>
    %c0_8 = arith.constant 0 : index
    %c0_9 = arith.constant 0 : index
    %6 = vector.load %arg0[%c0_8, %c0_9] : memref<32x64xf32, #tpu.memory_space<vmem>>, vector<32x64xf32>
    %c0_10 = arith.constant 0 : index
    %c0_11 = arith.constant 0 : index
    %c0_12 = arith.constant 0 : index
    %7 = vector.load %arg1[%c0_10, %c0_11, %c0_12] : memref<4x32x32xf32, #tpu.memory_space<vmem>>, vector<1x32x32xf32>
    %8 = vector.shape_cast %7 : vector<1x32x32xf32> to vector<32x32xf32>
    %c1_13 = arith.constant 1 : index
    %c0_14 = arith.constant 0 : index
    %c0_15 = arith.constant 0 : index
    %9 = vector.load %arg1[%c1_13, %c0_14, %c0_15] : memref<4x32x32xf32, #tpu.memory_space<vmem>>, vector<1x32x32xf32>
    %10 = vector.shape_cast %9 : vector<1x32x32xf32> to vector<32x32xf32>
    %11 = vector.extract_strided_slice %4 {offsets = [0, 0], sizes = [32, 6], strides = [1, 1]} : vector<32x12xf32> to vector<32x6xf32>
    %c0_16 = arith.constant 0 : index
    %c0_17 = arith.constant 0 : index
    %c0_18 = arith.constant 0 : index
    %12 = vector.load %arg3[%c0_16, %c0_17, %c0_18] : memref<2x32x64xf32, #tpu.memory_space<vmem>>, vector<1x32x64xf32>
    %13 = vector.shape_cast %12 : vector<1x32x64xf32> to vector<32x64xf32>
    %cst = arith.constant dense<0.000000e+00> : vector<32x64xf32>
    %14 = tpu.matmul %8, %6, %cst {dimension_numbers = #tpu.dot_dimension_numbers<[1], [0], [0], [1], [0, 0, 1, 1], [], []>} : vector<32x32xf32>, vector<32x64xf32>, vector<32x64xf32> -> vector<32x64xf32>
    %15 = vector.extract_strided_slice %11 {offsets = [0, 0], sizes = [32, 1], strides = [1, 1]} : vector<32x6xf32> to vector<32x1xf32>
    %16 = vector.broadcast %15 : vector<32x1xf32> to vector<32x64xf32>
    %17 = arith.addf %14, %16 : vector<32x64xf32>
    %18 = arith.addf %17, %13 : vector<32x64xf32>
    %cst_19 = arith.constant dense<0.000000e+00> : vector<64xf32>
    %19 = vector.multi_reduction <add>, %18, %cst_19 [0] : vector<32x64xf32> to vector<64xf32>
    %20 = vector.shape_cast %19 : vector<64xf32> to vector<1x64xf32>
    %21 = arith.mulf %18, %18 : vector<32x64xf32>
    %cst_20 = arith.constant dense<0.000000e+00> : vector<64xf32>
    %22 = vector.multi_reduction <add>, %21, %cst_20 [0] : vector<32x64xf32> to vector<64xf32>
    %23 = vector.shape_cast %22 : vector<64xf32> to vector<1x64xf32>
    %24 = tpu.concatenate %20, %23 in 0 : vector<1x64xf32>, vector<1x64xf32> -> vector<2x64xf32>
    %cst_21 = arith.constant dense<0.000000e+00> : vector<2x64xf32>
    %25 = tpu.matmul %24, %1, %cst_21 {dimension_numbers = #tpu.dot_dimension_numbers<[1], [0], [0], [1], [0, 0, 1, 1], [], []>} : vector<2x64xf32>, vector<64x64xf32>, vector<2x64xf32> -> vector<2x64xf32>
    %26 = vector.extract_strided_slice %25 {offsets = [0, 0], sizes = [1, 64], strides = [1, 1]} : vector<2x64xf32> to vector<1x64xf32>
    %27 = vector.extract_strided_slice %25 {offsets = [1, 0], sizes = [1, 64], strides = [1, 1]} : vector<2x64xf32> to vector<1x64xf32>
    %28 = arith.mulf %26, %26 : vector<1x64xf32>
    %29 = arith.subf %27, %28 : vector<1x64xf32>
    %30 = vector.broadcast %26 : vector<1x64xf32> to vector<32x64xf32>
    %31 = arith.subf %18, %30 : vector<32x64xf32>
    %cst_22 = arith.constant 9.99999974E-6 : f32
    %32 = vector.broadcast %cst_22 : f32 to vector<1x64xf32>
    %33 = arith.addf %29, %32 : vector<1x64xf32>
    %34 = math.rsqrt %33 : vector<1x64xf32>
    %35 = vector.broadcast %34 : vector<1x64xf32> to vector<32x64xf32>
    %36 = arith.mulf %31, %35 : vector<32x64xf32>
    %37 = vector.extract_strided_slice %11 {offsets = [0, 1], sizes = [32, 1], strides = [1, 1]} : vector<32x6xf32> to vector<32x1xf32>
    %38 = vector.broadcast %37 : vector<32x1xf32> to vector<32x64xf32>
    %39 = arith.mulf %36, %38 : vector<32x64xf32>
    %40 = vector.extract_strided_slice %11 {offsets = [0, 2], sizes = [32, 1], strides = [1, 1]} : vector<32x6xf32> to vector<32x1xf32>
    %41 = vector.broadcast %40 : vector<32x1xf32> to vector<32x64xf32>
    %42 = arith.addf %39, %41 : vector<32x64xf32>
    %cst_23 = arith.constant 5.000000e-01 : f32
    %43 = vector.broadcast %cst_23 : f32 to vector<32x64xf32>
    %44 = arith.mulf %43, %42 : vector<32x64xf32>
    %cst_24 = arith.constant 1.41421354 : f32
    %45 = vector.broadcast %cst_24 : f32 to vector<32x64xf32>
    %46 = arith.divf %42, %45 : vector<32x64xf32>
    %47 = math.erf %46 : vector<32x64xf32>
    %cst_25 = arith.constant 1.000000e+00 : f32
    %48 = vector.broadcast %cst_25 : f32 to vector<32x64xf32>
    %49 = arith.addf %48, %47 : vector<32x64xf32>
    %50 = arith.mulf %44, %49 : vector<32x64xf32>
    %cst_26 = arith.constant dense<0.000000e+00> : vector<32x64xf32>
    %51 = tpu.matmul %10, %50, %cst_26 {dimension_numbers = #tpu.dot_dimension_numbers<[1], [0], [0], [1], [0, 0, 1, 1], [], []>} : vector<32x32xf32>, vector<32x64xf32>, vector<32x64xf32> -> vector<32x64xf32>
    %52 = vector.extract_strided_slice %11 {offsets = [0, 3], sizes = [32, 1], strides = [1, 1]} : vector<32x6xf32> to vector<32x1xf32>
    %53 = vector.broadcast %52 : vector<32x1xf32> to vector<32x64xf32>
    %54 = arith.addf %51, %53 : vector<32x64xf32>
    %cst_27 = arith.constant dense<0.000000e+00> : vector<64xf32>
    %55 = vector.multi_reduction <add>, %54, %cst_27 [0] : vector<32x64xf32> to vector<64xf32>
    %56 = vector.shape_cast %55 : vector<64xf32> to vector<1x64xf32>
    %57 = arith.mulf %54, %54 : vector<32x64xf32>
    %cst_28 = arith.constant dense<0.000000e+00> : vector<64xf32>
    %58 = vector.multi_reduction <add>, %57, %cst_28 [0] : vector<32x64xf32> to vector<64xf32>
    %59 = vector.shape_cast %58 : vector<64xf32> to vector<1x64xf32>
    %60 = tpu.concatenate %56, %59 in 0 : vector<1x64xf32>, vector<1x64xf32> -> vector<2x64xf32>
    %cst_29 = arith.constant dense<0.000000e+00> : vector<2x64xf32>
    %61 = tpu.matmul %60, %1, %cst_29 {dimension_numbers = #tpu.dot_dimension_numbers<[1], [0], [0], [1], [0, 0, 1, 1], [], []>} : vector<2x64xf32>, vector<64x64xf32>, vector<2x64xf32> -> vector<2x64xf32>
    %62 = vector.extract_strided_slice %61 {offsets = [0, 0], sizes = [1, 64], strides = [1, 1]} : vector<2x64xf32> to vector<1x64xf32>
    %63 = vector.extract_strided_slice %61 {offsets = [1, 0], sizes = [1, 64], strides = [1, 1]} : vector<2x64xf32> to vector<1x64xf32>
    %64 = arith.mulf %62, %62 : vector<1x64xf32>
    %65 = arith.subf %63, %64 : vector<1x64xf32>
    %66 = vector.broadcast %62 : vector<1x64xf32> to vector<32x64xf32>
    %67 = arith.subf %54, %66 : vector<32x64xf32>
    %cst_30 = arith.constant 9.99999974E-6 : f32
    %68 = vector.broadcast %cst_30 : f32 to vector<1x64xf32>
    %69 = arith.addf %65, %68 : vector<1x64xf32>
    %70 = math.rsqrt %69 : vector<1x64xf32>
    %71 = vector.broadcast %70 : vector<1x64xf32> to vector<32x64xf32>
    %72 = arith.mulf %67, %71 : vector<32x64xf32>
    %73 = vector.extract_strided_slice %11 {offsets = [0, 4], sizes = [32, 1], strides = [1, 1]} : vector<32x6xf32> to vector<32x1xf32>
    %74 = vector.broadcast %73 : vector<32x1xf32> to vector<32x64xf32>
    %75 = arith.mulf %72, %74 : vector<32x64xf32>
    %76 = vector.extract_strided_slice %11 {offsets = [0, 5], sizes = [32, 1], strides = [1, 1]} : vector<32x6xf32> to vector<32x1xf32>
    %77 = vector.broadcast %76 : vector<32x1xf32> to vector<32x64xf32>
    %78 = arith.addf %75, %77 : vector<32x64xf32>
    %cst_31 = arith.constant 5.000000e-01 : f32
    %79 = vector.broadcast %cst_31 : f32 to vector<32x64xf32>
    %80 = arith.mulf %79, %78 : vector<32x64xf32>
    %cst_32 = arith.constant 1.41421354 : f32
    %81 = vector.broadcast %cst_32 : f32 to vector<32x64xf32>
    %82 = arith.divf %78, %81 : vector<32x64xf32>
    %83 = math.erf %82 : vector<32x64xf32>
    %cst_33 = arith.constant 1.000000e+00 : f32
    %84 = vector.broadcast %cst_33 : f32 to vector<32x64xf32>
    %85 = arith.addf %84, %83 : vector<32x64xf32>
    %86 = arith.mulf %80, %85 : vector<32x64xf32>
    %87 = arith.addf %86, %6 : vector<32x64xf32>
    %cst_34 = arith.constant dense<0.000000e+00> : vector<64xf32>
    %88 = vector.multi_reduction <add>, %87, %cst_34 [0] : vector<32x64xf32> to vector<64xf32>
    %89 = vector.shape_cast %88 : vector<64xf32> to vector<1x64xf32>
    %90 = arith.mulf %87, %87 : vector<32x64xf32>
    %cst_35 = arith.constant dense<0.000000e+00> : vector<64xf32>
    %91 = vector.multi_reduction <add>, %90, %cst_35 [0] : vector<32x64xf32> to vector<64xf32>
    %92 = vector.shape_cast %91 : vector<64xf32> to vector<1x64xf32>
    %93 = tpu.concatenate %89, %92 in 0 : vector<1x64xf32>, vector<1x64xf32> -> vector<2x64xf32>
    %cst_36 = arith.constant dense<0.000000e+00> : vector<2x64xf32>
    %94 = tpu.matmul %93, %3, %cst_36 {dimension_numbers = #tpu.dot_dimension_numbers<[1], [0], [0], [1], [0, 0, 1, 1], [], []>} : vector<2x64xf32>, vector<64x64xf32>, vector<2x64xf32> -> vector<2x64xf32>
    %95 = vector.extract_strided_slice %94 {offsets = [0, 0], sizes = [1, 64], strides = [1, 1]} : vector<2x64xf32> to vector<1x64xf32>
    %96 = vector.extract_strided_slice %94 {offsets = [1, 0], sizes = [1, 64], strides = [1, 1]} : vector<2x64xf32> to vector<1x64xf32>
    %97 = arith.mulf %95, %95 : vector<1x64xf32>
    %98 = arith.subf %96, %97 : vector<1x64xf32>
    %99 = vector.broadcast %95 : vector<1x64xf32> to vector<32x64xf32>
    %100 = arith.subf %87, %99 : vector<32x64xf32>
    %cst_37 = arith.constant 9.99999997E-7 : f32
    %101 = vector.broadcast %cst_37 : f32 to vector<1x64xf32>
    %102 = arith.addf %98, %101 : vector<1x64xf32>
    %103 = math.rsqrt %102 : vector<1x64xf32>
    %104 = vector.broadcast %103 : vector<1x64xf32> to vector<32x64xf32>
    %105 = arith.mulf %100, %104 : vector<32x64xf32>
    %106 = vector.extract_strided_slice %5 {offsets = [0, 0], sizes = [1, 64], strides = [1, 1]} : vector<3x64xf32> to vector<1x64xf32>
    %107 = vector.broadcast %106 : vector<1x64xf32> to vector<32x64xf32>
    %108 = arith.mulf %105, %107 : vector<32x64xf32>
    %109 = vector.extract_strided_slice %5 {offsets = [1, 0], sizes = [1, 64], strides = [1, 1]} : vector<3x64xf32> to vector<1x64xf32>
    %110 = vector.broadcast %109 : vector<1x64xf32> to vector<32x64xf32>
    %111 = arith.addf %108, %110 : vector<32x64xf32>
    %c0_38 = arith.constant 0 : index
    %c0_39 = arith.constant 0 : index
    %112 = vector.load %arg4[%c0_38, %c0_39] : memref<64x192xf32, #tpu.memory_space<vmem>>, vector<64x192xf32>
    %cst_40 = arith.constant dense<0.000000e+00> : vector<32x192xf32>
    %113 = tpu.matmul %111, %112, %cst_40 {dimension_numbers = #tpu.dot_dimension_numbers<[1], [0], [0], [1], [0, 0, 1, 1], [], []>} : vector<32x64xf32>, vector<64x192xf32>, vector<32x192xf32> -> vector<32x192xf32>
    %c0_41 = arith.constant 0 : index
    %c0_42 = arith.constant 0 : index
    %114 = vector.load %arg7[%c0_41, %c0_42] : memref<1x192xf32, #tpu.memory_space<vmem>>, vector<1x192xf32>
    %115 = vector.broadcast %114 : vector<1x192xf32> to vector<32x192xf32>
    %116 = arith.addf %113, %115 : vector<32x192xf32>
    %117 = vector.extract_strided_slice %116 {offsets = [0, 0], sizes = [32, 8], strides = [1, 1]} : vector<32x192xf32> to vector<32x8xf32>
    %118 = vector.extract_strided_slice %116 {offsets = [0, 32], sizes = [32, 8], strides = [1, 1]} : vector<32x192xf32> to vector<32x8xf32>
    %119 = vector.extract_strided_slice %116 {offsets = [0, 64], sizes = [32, 8], strides = [1, 1]} : vector<32x192xf32> to vector<32x8xf32>
    %120 = vector.extract_strided_slice %116 {offsets = [0, 8], sizes = [32, 8], strides = [1, 1]} : vector<32x192xf32> to vector<32x8xf32>
    %121 = vector.extract_strided_slice %116 {offsets = [0, 40], sizes = [32, 8], strides = [1, 1]} : vector<32x192xf32> to vector<32x8xf32>
    %122 = vector.extract_strided_slice %116 {offsets = [0, 72], sizes = [32, 8], strides = [1, 1]} : vector<32x192xf32> to vector<32x8xf32>
    %123 = vector.extract_strided_slice %116 {offsets = [0, 16], sizes = [32, 8], strides = [1, 1]} : vector<32x192xf32> to vector<32x8xf32>
    %124 = vector.extract_strided_slice %116 {offsets = [0, 48], sizes = [32, 8], strides = [1, 1]} : vector<32x192xf32> to vector<32x8xf32>
    %125 = vector.extract_strided_slice %116 {offsets = [0, 80], sizes = [32, 8], strides = [1, 1]} : vector<32x192xf32> to vector<32x8xf32>
    %126 = vector.extract_strided_slice %116 {offsets = [0, 24], sizes = [32, 8], strides = [1, 1]} : vector<32x192xf32> to vector<32x8xf32>
    %127 = vector.extract_strided_slice %116 {offsets = [0, 56], sizes = [32, 8], strides = [1, 1]} : vector<32x192xf32> to vector<32x8xf32>
    %128 = vector.extract_strided_slice %116 {offsets = [0, 88], sizes = [32, 8], strides = [1, 1]} : vector<32x192xf32> to vector<32x8xf32>
    %129 = vector.extract_strided_slice %116 {offsets = [0, 96], sizes = [32, 8], strides = [1, 1]} : vector<32x192xf32> to vector<32x8xf32>
    %130 = vector.extract_strided_slice %116 {offsets = [0, 128], sizes = [32, 8], strides = [1, 1]} : vector<32x192xf32> to vector<32x8xf32>
    %131 = vector.extract_strided_slice %116 {offsets = [0, 160], sizes = [32, 8], strides = [1, 1]} : vector<32x192xf32> to vector<32x8xf32>
    %132 = vector.extract_strided_slice %116 {offsets = [0, 104], sizes = [32, 8], strides = [1, 1]} : vector<32x192xf32> to vector<32x8xf32>
    %133 = vector.extract_strided_slice %116 {offsets = [0, 136], sizes = [32, 8], strides = [1, 1]} : vector<32x192xf32> to vector<32x8xf32>
    %134 = vector.extract_strided_slice %116 {offsets = [0, 168], sizes = [32, 8], strides = [1, 1]} : vector<32x192xf32> to vector<32x8xf32>
    %135 = vector.extract_strided_slice %116 {offsets = [0, 112], sizes = [32, 8], strides = [1, 1]} : vector<32x192xf32> to vector<32x8xf32>
    %136 = vector.extract_strided_slice %116 {offsets = [0, 144], sizes = [32, 8], strides = [1, 1]} : vector<32x192xf32> to vector<32x8xf32>
    %137 = vector.extract_strided_slice %116 {offsets = [0, 176], sizes = [32, 8], strides = [1, 1]} : vector<32x192xf32> to vector<32x8xf32>
    %138 = vector.extract_strided_slice %116 {offsets = [0, 120], sizes = [32, 8], strides = [1, 1]} : vector<32x192xf32> to vector<32x8xf32>
    %139 = vector.extract_strided_slice %116 {offsets = [0, 152], sizes = [32, 8], strides = [1, 1]} : vector<32x192xf32> to vector<32x8xf32>
    %140 = vector.extract_strided_slice %116 {offsets = [0, 184], sizes = [32, 8], strides = [1, 1]} : vector<32x192xf32> to vector<32x8xf32>
    %141 = vector.shape_cast %117 : vector<32x8xf32> to vector<1x32x8xf32>
    %142 = vector.shape_cast %120 : vector<32x8xf32> to vector<1x32x8xf32>
    %143 = vector.shape_cast %123 : vector<32x8xf32> to vector<1x32x8xf32>
    %144 = vector.shape_cast %126 : vector<32x8xf32> to vector<1x32x8xf32>
    %145 = vector.shape_cast %129 : vector<32x8xf32> to vector<1x32x8xf32>
    %146 = vector.shape_cast %132 : vector<32x8xf32> to vector<1x32x8xf32>
    %147 = vector.shape_cast %135 : vector<32x8xf32> to vector<1x32x8xf32>
    %148 = vector.shape_cast %138 : vector<32x8xf32> to vector<1x32x8xf32>
    %149 = tpu.concatenate %141, %142, %143, %144, %145, %146, %147, %148 in 0 : vector<1x32x8xf32>, vector<1x32x8xf32>, vector<1x32x8xf32>, vector<1x32x8xf32>, vector<1x32x8xf32>, vector<1x32x8xf32>, vector<1x32x8xf32>, vector<1x32x8xf32> -> vector<8x32x8xf32>
    %150 = vector.shape_cast %118 : vector<32x8xf32> to vector<1x32x8xf32>
    %151 = vector.shape_cast %121 : vector<32x8xf32> to vector<1x32x8xf32>
    %152 = vector.shape_cast %124 : vector<32x8xf32> to vector<1x32x8xf32>
    %153 = vector.shape_cast %127 : vector<32x8xf32> to vector<1x32x8xf32>
    %154 = vector.shape_cast %130 : vector<32x8xf32> to vector<1x32x8xf32>
    %155 = vector.shape_cast %133 : vector<32x8xf32> to vector<1x32x8xf32>
    %156 = vector.shape_cast %136 : vector<32x8xf32> to vector<1x32x8xf32>
    %157 = vector.shape_cast %139 : vector<32x8xf32> to vector<1x32x8xf32>
    %158 = tpu.concatenate %150, %151, %152, %153, %154, %155, %156, %157 in 0 : vector<1x32x8xf32>, vector<1x32x8xf32>, vector<1x32x8xf32>, vector<1x32x8xf32>, vector<1x32x8xf32>, vector<1x32x8xf32>, vector<1x32x8xf32>, vector<1x32x8xf32> -> vector<8x32x8xf32>
    %159 = vector.shape_cast %119 : vector<32x8xf32> to vector<1x32x8xf32>
    %160 = vector.shape_cast %122 : vector<32x8xf32> to vector<1x32x8xf32>
    %161 = vector.shape_cast %125 : vector<32x8xf32> to vector<1x32x8xf32>
    %162 = vector.shape_cast %128 : vector<32x8xf32> to vector<1x32x8xf32>
    %163 = vector.shape_cast %131 : vector<32x8xf32> to vector<1x32x8xf32>
    %164 = vector.shape_cast %134 : vector<32x8xf32> to vector<1x32x8xf32>
    %165 = vector.shape_cast %137 : vector<32x8xf32> to vector<1x32x8xf32>
    %166 = vector.shape_cast %140 : vector<32x8xf32> to vector<1x32x8xf32>
    %167 = tpu.concatenate %159, %160, %161, %162, %163, %164, %165, %166 in 0 : vector<1x32x8xf32>, vector<1x32x8xf32>, vector<1x32x8xf32>, vector<1x32x8xf32>, vector<1x32x8xf32>, vector<1x32x8xf32>, vector<1x32x8xf32>, vector<1x32x8xf32> -> vector<8x32x8xf32>
    %cst_43 = arith.constant dense<0.000000e+00> : vector<8x32x32xf32>
    %168 = tpu.matmul %149, %158, %cst_43 {dimension_numbers = #tpu.dot_dimension_numbers<[2], [2], [1], [1], [0, 0, 0, 1, 1, 1], [0], [0]>} : vector<8x32x8xf32>, vector<8x32x8xf32>, vector<8x32x32xf32> -> vector<8x32x32xf32>
    %cst_44 = arith.constant 0.353553385 : f32
    %169 = vector.broadcast %cst_44 : f32 to vector<8x32x32xf32>
    %170 = arith.mulf %168, %169 : vector<8x32x32xf32>
    %cst_45 = arith.constant dense<0xFF800000> : vector<8x32xf32>
    %171 = vector.multi_reduction <maximumf>, %170, %cst_45 [2] : vector<8x32x32xf32> to vector<8x32xf32>
    %172 = vector.shape_cast %171 : vector<8x32xf32> to vector<8x32x1xf32>
    %173 = vector.broadcast %172 : vector<8x32x1xf32> to vector<8x32x32xf32>
    %174 = arith.subf %170, %173 : vector<8x32x32xf32>
    %175 = math.exp %174 : vector<8x32x32xf32>
    %cst_46 = arith.constant dense<0.000000e+00> : vector<8x32xf32>
    %176 = vector.multi_reduction <add>, %175, %cst_46 [2] : vector<8x32x32xf32> to vector<8x32xf32>
    %177 = vector.shape_cast %176 : vector<8x32xf32> to vector<8x32x1xf32>
    %178 = tpu.reciprocal %177 : vector<8x32x1xf32> -> vector<8x32x1xf32>
    %179 = vector.broadcast %178 : vector<8x32x1xf32> to vector<8x32x32xf32>
    %180 = arith.mulf %175, %179 : vector<8x32x32xf32>
    %cst_47 = arith.constant dense<0.000000e+00> : vector<8x32x8xf32>
    %181 = tpu.matmul %180, %167, %cst_47 {dimension_numbers = #tpu.dot_dimension_numbers<[2], [1], [1], [2], [0, 0, 0, 1, 1, 2], [0], [0]>} : vector<8x32x32xf32>, vector<8x32x8xf32>, vector<8x32x8xf32> -> vector<8x32x8xf32>
    %182 = vector.extract_strided_slice %181 {offsets = [0, 0, 0], sizes = [1, 32, 8], strides = [1, 1, 1]} : vector<8x32x8xf32> to vector<1x32x8xf32>
    %183 = vector.shape_cast %182 : vector<1x32x8xf32> to vector<32x8xf32>
    %184 = vector.extract_strided_slice %181 {offsets = [1, 0, 0], sizes = [1, 32, 8], strides = [1, 1, 1]} : vector<8x32x8xf32> to vector<1x32x8xf32>
    %185 = vector.shape_cast %184 : vector<1x32x8xf32> to vector<32x8xf32>
    %186 = vector.extract_strided_slice %181 {offsets = [2, 0, 0], sizes = [1, 32, 8], strides = [1, 1, 1]} : vector<8x32x8xf32> to vector<1x32x8xf32>
    %187 = vector.shape_cast %186 : vector<1x32x8xf32> to vector<32x8xf32>
    %188 = vector.extract_strided_slice %181 {offsets = [3, 0, 0], sizes = [1, 32, 8], strides = [1, 1, 1]} : vector<8x32x8xf32> to vector<1x32x8xf32>
    %189 = vector.shape_cast %188 : vector<1x32x8xf32> to vector<32x8xf32>
    %190 = vector.extract_strided_slice %181 {offsets = [4, 0, 0], sizes = [1, 32, 8], strides = [1, 1, 1]} : vector<8x32x8xf32> to vector<1x32x8xf32>
    %191 = vector.shape_cast %190 : vector<1x32x8xf32> to vector<32x8xf32>
    %192 = vector.extract_strided_slice %181 {offsets = [5, 0, 0], sizes = [1, 32, 8], strides = [1, 1, 1]} : vector<8x32x8xf32> to vector<1x32x8xf32>
    %193 = vector.shape_cast %192 : vector<1x32x8xf32> to vector<32x8xf32>
    %194 = vector.extract_strided_slice %181 {offsets = [6, 0, 0], sizes = [1, 32, 8], strides = [1, 1, 1]} : vector<8x32x8xf32> to vector<1x32x8xf32>
    %195 = vector.shape_cast %194 : vector<1x32x8xf32> to vector<32x8xf32>
    %196 = vector.extract_strided_slice %181 {offsets = [7, 0, 0], sizes = [1, 32, 8], strides = [1, 1, 1]} : vector<8x32x8xf32> to vector<1x32x8xf32>
    %197 = vector.shape_cast %196 : vector<1x32x8xf32> to vector<32x8xf32>
    %198 = tpu.concatenate %183, %185, %187, %189, %191, %193, %195, %197 in 1 : vector<32x8xf32>, vector<32x8xf32>, vector<32x8xf32>, vector<32x8xf32>, vector<32x8xf32>, vector<32x8xf32>, vector<32x8xf32>, vector<32x8xf32> -> vector<32x64xf32>
    %c0_48 = arith.constant 0 : index
    %c0_49 = arith.constant 0 : index
    %199 = vector.load %arg5[%c0_48, %c0_49] : memref<64x64xf32, #tpu.memory_space<vmem>>, vector<64x64xf32>
    %cst_50 = arith.constant dense<0.000000e+00> : vector<32x64xf32>
    %200 = tpu.matmul %198, %199, %cst_50 {dimension_numbers = #tpu.dot_dimension_numbers<[1], [0], [0], [1], [0, 0, 1, 1], [], []>} : vector<32x64xf32>, vector<64x64xf32>, vector<32x64xf32> -> vector<32x64xf32>
    %201 = vector.extract_strided_slice %5 {offsets = [2, 0], sizes = [1, 64], strides = [1, 1]} : vector<3x64xf32> to vector<1x64xf32>
    %202 = vector.broadcast %201 : vector<1x64xf32> to vector<32x64xf32>
    %203 = arith.addf %200, %202 : vector<32x64xf32>
    %204 = arith.addf %203, %87 : vector<32x64xf32>
    %c2 = arith.constant 2 : index
    %c0_51 = arith.constant 0 : index
    %c0_52 = arith.constant 0 : index
    %205 = vector.load %arg1[%c2, %c0_51, %c0_52] : memref<4x32x32xf32, #tpu.memory_space<vmem>>, vector<1x32x32xf32>
    %206 = vector.shape_cast %205 : vector<1x32x32xf32> to vector<32x32xf32>
    %c3 = arith.constant 3 : index
    %c0_53 = arith.constant 0 : index
    %c0_54 = arith.constant 0 : index
    %207 = vector.load %arg1[%c3, %c0_53, %c0_54] : memref<4x32x32xf32, #tpu.memory_space<vmem>>, vector<1x32x32xf32>
    %208 = vector.shape_cast %207 : vector<1x32x32xf32> to vector<32x32xf32>
    %209 = vector.extract_strided_slice %4 {offsets = [0, 6], sizes = [32, 6], strides = [1, 1]} : vector<32x12xf32> to vector<32x6xf32>
    %c1_55 = arith.constant 1 : index
    %c0_56 = arith.constant 0 : index
    %c0_57 = arith.constant 0 : index
    %210 = vector.load %arg3[%c1_55, %c0_56, %c0_57] : memref<2x32x64xf32, #tpu.memory_space<vmem>>, vector<1x32x64xf32>
    %211 = vector.shape_cast %210 : vector<1x32x64xf32> to vector<32x64xf32>
    %cst_58 = arith.constant dense<0.000000e+00> : vector<32x64xf32>
    %212 = tpu.matmul %206, %204, %cst_58 {dimension_numbers = #tpu.dot_dimension_numbers<[1], [0], [0], [1], [0, 0, 1, 1], [], []>} : vector<32x32xf32>, vector<32x64xf32>, vector<32x64xf32> -> vector<32x64xf32>
    %213 = vector.extract_strided_slice %209 {offsets = [0, 0], sizes = [32, 1], strides = [1, 1]} : vector<32x6xf32> to vector<32x1xf32>
    %214 = vector.broadcast %213 : vector<32x1xf32> to vector<32x64xf32>
    %215 = arith.addf %212, %214 : vector<32x64xf32>
    %216 = arith.addf %215, %211 : vector<32x64xf32>
    %cst_59 = arith.constant dense<0.000000e+00> : vector<64xf32>
    %217 = vector.multi_reduction <add>, %216, %cst_59 [0] : vector<32x64xf32> to vector<64xf32>
    %218 = vector.shape_cast %217 : vector<64xf32> to vector<1x64xf32>
    %219 = arith.mulf %216, %216 : vector<32x64xf32>
    %cst_60 = arith.constant dense<0.000000e+00> : vector<64xf32>
    %220 = vector.multi_reduction <add>, %219, %cst_60 [0] : vector<32x64xf32> to vector<64xf32>
    %221 = vector.shape_cast %220 : vector<64xf32> to vector<1x64xf32>
    %222 = tpu.concatenate %218, %221 in 0 : vector<1x64xf32>, vector<1x64xf32> -> vector<2x64xf32>
    %cst_61 = arith.constant dense<0.000000e+00> : vector<2x64xf32>
    %223 = tpu.matmul %222, %1, %cst_61 {dimension_numbers = #tpu.dot_dimension_numbers<[1], [0], [0], [1], [0, 0, 1, 1], [], []>} : vector<2x64xf32>, vector<64x64xf32>, vector<2x64xf32> -> vector<2x64xf32>
    %224 = vector.extract_strided_slice %223 {offsets = [0, 0], sizes = [1, 64], strides = [1, 1]} : vector<2x64xf32> to vector<1x64xf32>
    %225 = vector.extract_strided_slice %223 {offsets = [1, 0], sizes = [1, 64], strides = [1, 1]} : vector<2x64xf32> to vector<1x64xf32>
    %226 = arith.mulf %224, %224 : vector<1x64xf32>
    %227 = arith.subf %225, %226 : vector<1x64xf32>
    %228 = vector.broadcast %224 : vector<1x64xf32> to vector<32x64xf32>
    %229 = arith.subf %216, %228 : vector<32x64xf32>
    %cst_62 = arith.constant 9.99999974E-6 : f32
    %230 = vector.broadcast %cst_62 : f32 to vector<1x64xf32>
    %231 = arith.addf %227, %230 : vector<1x64xf32>
    %232 = math.rsqrt %231 : vector<1x64xf32>
    %233 = vector.broadcast %232 : vector<1x64xf32> to vector<32x64xf32>
    %234 = arith.mulf %229, %233 : vector<32x64xf32>
    %235 = vector.extract_strided_slice %209 {offsets = [0, 1], sizes = [32, 1], strides = [1, 1]} : vector<32x6xf32> to vector<32x1xf32>
    %236 = vector.broadcast %235 : vector<32x1xf32> to vector<32x64xf32>
    %237 = arith.mulf %234, %236 : vector<32x64xf32>
    %238 = vector.extract_strided_slice %209 {offsets = [0, 2], sizes = [32, 1], strides = [1, 1]} : vector<32x6xf32> to vector<32x1xf32>
    %239 = vector.broadcast %238 : vector<32x1xf32> to vector<32x64xf32>
    %240 = arith.addf %237, %239 : vector<32x64xf32>
    %cst_63 = arith.constant 5.000000e-01 : f32
    %241 = vector.broadcast %cst_63 : f32 to vector<32x64xf32>
    %242 = arith.mulf %241, %240 : vector<32x64xf32>
    %cst_64 = arith.constant 1.41421354 : f32
    %243 = vector.broadcast %cst_64 : f32 to vector<32x64xf32>
    %244 = arith.divf %240, %243 : vector<32x64xf32>
    %245 = math.erf %244 : vector<32x64xf32>
    %cst_65 = arith.constant 1.000000e+00 : f32
    %246 = vector.broadcast %cst_65 : f32 to vector<32x64xf32>
    %247 = arith.addf %246, %245 : vector<32x64xf32>
    %248 = arith.mulf %242, %247 : vector<32x64xf32>
    %cst_66 = arith.constant dense<0.000000e+00> : vector<32x64xf32>
    %249 = tpu.matmul %208, %248, %cst_66 {dimension_numbers = #tpu.dot_dimension_numbers<[1], [0], [0], [1], [0, 0, 1, 1], [], []>} : vector<32x32xf32>, vector<32x64xf32>, vector<32x64xf32> -> vector<32x64xf32>
    %250 = vector.extract_strided_slice %209 {offsets = [0, 3], sizes = [32, 1], strides = [1, 1]} : vector<32x6xf32> to vector<32x1xf32>
    %251 = vector.broadcast %250 : vector<32x1xf32> to vector<32x64xf32>
    %252 = arith.addf %249, %251 : vector<32x64xf32>
    %cst_67 = arith.constant dense<0.000000e+00> : vector<64xf32>
    %253 = vector.multi_reduction <add>, %252, %cst_67 [0] : vector<32x64xf32> to vector<64xf32>
    %254 = vector.shape_cast %253 : vector<64xf32> to vector<1x64xf32>
    %255 = arith.mulf %252, %252 : vector<32x64xf32>
    %cst_68 = arith.constant dense<0.000000e+00> : vector<64xf32>
    %256 = vector.multi_reduction <add>, %255, %cst_68 [0] : vector<32x64xf32> to vector<64xf32>
    %257 = vector.shape_cast %256 : vector<64xf32> to vector<1x64xf32>
    %258 = tpu.concatenate %254, %257 in 0 : vector<1x64xf32>, vector<1x64xf32> -> vector<2x64xf32>
    %cst_69 = arith.constant dense<0.000000e+00> : vector<2x64xf32>
    %259 = tpu.matmul %258, %1, %cst_69 {dimension_numbers = #tpu.dot_dimension_numbers<[1], [0], [0], [1], [0, 0, 1, 1], [], []>} : vector<2x64xf32>, vector<64x64xf32>, vector<2x64xf32> -> vector<2x64xf32>
    %260 = vector.extract_strided_slice %259 {offsets = [0, 0], sizes = [1, 64], strides = [1, 1]} : vector<2x64xf32> to vector<1x64xf32>
    %261 = vector.extract_strided_slice %259 {offsets = [1, 0], sizes = [1, 64], strides = [1, 1]} : vector<2x64xf32> to vector<1x64xf32>
    %262 = arith.mulf %260, %260 : vector<1x64xf32>
    %263 = arith.subf %261, %262 : vector<1x64xf32>
    %264 = vector.broadcast %260 : vector<1x64xf32> to vector<32x64xf32>
    %265 = arith.subf %252, %264 : vector<32x64xf32>
    %cst_70 = arith.constant 9.99999974E-6 : f32
    %266 = vector.broadcast %cst_70 : f32 to vector<1x64xf32>
    %267 = arith.addf %263, %266 : vector<1x64xf32>
    %268 = math.rsqrt %267 : vector<1x64xf32>
    %269 = vector.broadcast %268 : vector<1x64xf32> to vector<32x64xf32>
    %270 = arith.mulf %265, %269 : vector<32x64xf32>
    %271 = vector.extract_strided_slice %209 {offsets = [0, 4], sizes = [32, 1], strides = [1, 1]} : vector<32x6xf32> to vector<32x1xf32>
    %272 = vector.broadcast %271 : vector<32x1xf32> to vector<32x64xf32>
    %273 = arith.mulf %270, %272 : vector<32x64xf32>
    %274 = vector.extract_strided_slice %209 {offsets = [0, 5], sizes = [32, 1], strides = [1, 1]} : vector<32x6xf32> to vector<32x1xf32>
    %275 = vector.broadcast %274 : vector<32x1xf32> to vector<32x64xf32>
    %276 = arith.addf %273, %275 : vector<32x64xf32>
    %cst_71 = arith.constant 5.000000e-01 : f32
    %277 = vector.broadcast %cst_71 : f32 to vector<32x64xf32>
    %278 = arith.mulf %277, %276 : vector<32x64xf32>
    %cst_72 = arith.constant 1.41421354 : f32
    %279 = vector.broadcast %cst_72 : f32 to vector<32x64xf32>
    %280 = arith.divf %276, %279 : vector<32x64xf32>
    %281 = math.erf %280 : vector<32x64xf32>
    %cst_73 = arith.constant 1.000000e+00 : f32
    %282 = vector.broadcast %cst_73 : f32 to vector<32x64xf32>
    %283 = arith.addf %282, %281 : vector<32x64xf32>
    %284 = arith.mulf %278, %283 : vector<32x64xf32>
    %285 = arith.addf %284, %204 : vector<32x64xf32>
    %c0_74 = arith.constant 0 : index
    %c0_75 = arith.constant 0 : index
    %286 = vector.load %arg9[%c0_74, %c0_75] : memref<32x64xf32, #tpu.memory_space<vmem>>, vector<32x64xf32>
    tpu.vector_store %arg9[%c0_74, %c0_75], %285 {strides = array<i32>} : memref<32x64xf32, #tpu.memory_space<vmem>>, vector<32x64xf32>,
    return
  }
}

</mosaic_0001>

<llo_original>
// kernel: tile.18
$region0: #{tile.18}
  #allocation0 [shape = 's32[1]{0}', space=sflag, size = 0x4, scoped, tag = 'scoped memory for tile.18']
  %s0 = inlined_call_operand.vmem [shape: f32[32], index: 0, kind: input, shape index: {}]
  %s1 = inlined_call_operand.vmem [shape: f32[2,32], index: 1, kind: output, shape index: {}]
  // Predicated region
  $region2: #{tile.18} parent=0 // pred_check
    _
  $region3: #{tile.18} parent=0 // pred_check_branch
    %3 = sbr.rel (0) target = $region5
  $region4: #{tile.18} parent=0 // pred_region
    _
  $region5: #{tile.18} parent=0 // pred_fallthru
    _
  %v4 = vld [vmem:[%s0] ss:$0 sm:$0xff]
  %5 = vst [vmem:[%s1] sm:$0x3] %v4

// kernel: tile.19
$region0: #{tile.19}
  %s0 = inlined_call_operand.vmem [shape: f32[2,32], index: 0, kind: input, shape index: {}]
  %s1 = inlined_call_operand.vmem [shape: f32[1,64], index: 1, kind: output, shape index: {}]
  $region1: #{tile.19} parent=0
    #allocation0 [shape = 'u8[4096]{0}', space=vmem, size = 0x1000, scoped, tag = 'scoped mem for output reshape']
    #allocation1 [shape = 'u8[4096]{0}', space=vmem, size = 0x1000, scoped, tag = 'scoped mem for input reshape']
    %s3 = ssub.s32 4, 1
    %v4 = vld [vmem:[%s0] sm:%s3]
    %5 = vst [vmem:[#allocation1] sm:%s3] %v4
    %v6 = vld [vmem:[#allocation1] sm:$0x1]
    %vm7 = vcmask 261120
    %8 = vst.msk [vmem:[#allocation0] sm:$0x1] %vm7, %v6
    %s9 = scalar_lea.vmem [#allocation1], 1
    %v10 = vld [vmem:[%s9] sm:$0x1]
    %11 = vrot.lane.b32.xlu0 %v10, 32
    %v12 = vpop.permute.xlu0 %11
    %vm13 = vcmask 523520
    %14 = vst.msk [vmem:[#allocation0] sm:$0x1] %vm13, %v12
    %s16 = ssub.s32 2, 1
    %v17 = vld [vmem:[#allocation0] sm:%s16]
    %s19 = ssub.s32 2, 1
    %20 = vst [vmem:[%s1] sm:%s19] %v17

// kernel: tile.14
$region0: #{tile.14}
  #allocation0 [shape = 's32[1]{0}', space=sflag, size = 0x4, scoped, tag = 'scoped memory for tile.14']
  %s0 = inlined_call_operand.vmem [shape: f32[96], index: 0, kind: input, shape index: {}]
  %s1 = inlined_call_operand.vmem [shape: f32[2,96], index: 1, kind: output, shape index: {}]
  // Predicated region
  $region2: #{tile.14} parent=0 // pred_check
    _
  $region3: #{tile.14} parent=0 // pred_check_branch
    %3 = sbr.rel (0) target = $region5
  $region4: #{tile.14} parent=0 // pred_region
    _
  $region5: #{tile.14} parent=0 // pred_fallthru
    _
  %v4 = vld [vmem:[%s0] ss:$0 sm:$0xff]
  %5 = vst [vmem:[%s1] sm:$0x3] %v4

// kernel: tile.15
$region0: #{tile.15}
  %s0 = inlined_call_operand.vmem [shape: f32[2,96], index: 0, kind: input, shape index: {}]
  %s1 = inlined_call_operand.vmem [shape: f32[1,192], index: 1, kind: output, shape index: {}]
  $region1: #{tile.15} parent=0
    #allocation0 [shape = 'u8[8192]{0}', space=vmem, size = 0x2000, scoped, tag = 'scoped mem for output reshape']
    #allocation1 [shape = 'u8[4096]{0}', space=vmem, size = 0x1000, scoped, tag = 'scoped mem for input reshape']
    %s3 = ssub.s32 4, 1
    %v4 = vld [vmem:[%s0] sm:%s3]
    %5 = vst [vmem:[#allocation1] sm:%s3] %v4
    %v6 = vld [vmem:[#allocation1] sm:$0x1]
    %vm7 = vcmask 785408
    %8 = vst.msk [vmem:[#allocation0] sm:$0x1] %vm7, %v6
    %s9 = scalar_lea.vmem [#allocation1], 1
    %v10 = vld [vmem:[%s9] sm:$0x1]
    %s11 = scalar_lea.vmem [#allocation1], 1
    %v12 = vld [vmem:[%s11] sm:$0x1]
    %vm13 = vcmask 261120
    %v14 = vsel %vm13, %v12, %v10
    %15 = vrot.lane.b32.xlu0 %v14, 96
    %v16 = vpop.permute.xlu0 %15
    %vm17 = vcmask 523264
    %s18 = scalar_lea.vmem [#allocation0], 8
    %19 = vst.msk [vmem:[%s18] sm:$0x1] %vm17, %v16
    %vm20 = vcmask 1048320
    %21 = vst.msk [vmem:[#allocation0] sm:$0x1] %vm20, %v16
    %s23 = ssub.s32 2, 1
    %v24 = vld [vmem:[#allocation0] sm:%s23]
    %s26 = ssub.s32 2, 1
    %27 = vst [vmem:[%s1] sm:%s26] %v24
    %s28 = scalar_lea.vmem [#allocation0], 8
    %v29 = vld [vmem:[%s28] sm:%s23]
    %s31 = ssub.s32 2, 1
    %s32 = scalar_lea.vmem %s1, 1
    %33 = vst [vmem:[%s32] sm:%s31] %v29

// kernel: unet_mid_block_1d.1
$region0: #{unet_mid_block_1d.1}
  #allocation0 [shape = 'u32[]', space=smem, size = 0x4, offset = 0x4, fixed_abs, tag = 'smem constant byte address 0x4 - core index']
  #allocation1 [shape = 'u32[72,128]{1,0:T(1,128)}', space=vmem, size = 0x9000, scoped, tag = 'internal scratch']
  %s0 = inlined_call_operand.vmem [shape: f32[32,64], index: 0, kind: input, shape index: {}]
  %s1 = inlined_call_operand.vmem [shape: f32[4,32,32], index: 1, kind: input, shape index: {}]
  %s2 = inlined_call_operand.vmem [shape: f32[32,12], index: 2, kind: input, shape index: {}]
  %s3 = inlined_call_operand.vmem [shape: f32[2,32,64], index: 3, kind: input, shape index: {}]
  %s4 = inlined_call_operand.vmem [shape: f32[64,192], index: 4, kind: input, shape index: {}]
  %s5 = inlined_call_operand.vmem [shape: f32[64,64], index: 5, kind: input, shape index: {}]
  %s6 = inlined_call_operand.vmem [shape: f32[3,64], index: 6, kind: input, shape index: {}]
  %s7 = inlined_call_operand.vmem [shape: f32[1,192], index: 7, kind: input, shape index: {}]
  %s8 = inlined_call_operand.vmem [shape: f32[2,64,64], index: 8, kind: input, shape index: {}]
  %s9 = inlined_call_operand.vmem [shape: f32[32,64], index: 9, kind: output, shape index: {}]
  %s10 = sld [smem:[#allocation0]]
  $region46: #{unet_mid_block_1d.1} parent=0
    _
  %s12 = ssub.s32 1, %s10
  %s13 = scalar_select 0, %s12, %s10
  // Predicated region
  $region2: #{unet_mid_block_1d.1} parent=0 // pred_check
    _
  $region3: #{unet_mid_block_1d.1} parent=0 // pred_check_branch
    %15 = sbr.rel (0) target = $region5
  $region4: #{unet_mid_block_1d.1} parent=0 // pred_region
    _
  $region5: #{unet_mid_block_1d.1} parent=0 // pred_fallthru
    _
  // Predicated region
  $region6: #{unet_mid_block_1d.1} parent=0 // pred_check
    _
  $region7: #{unet_mid_block_1d.1} parent=0 // pred_check_branch
    %17 = sbr.rel (0) target = $region9
  $region8: #{unet_mid_block_1d.1} parent=0 // pred_region
    _
  $region9: #{unet_mid_block_1d.1} parent=0 // pred_fallthru
    _
  // Predicated region
  $region10: #{unet_mid_block_1d.1} parent=0 // pred_check
    _
  $region11: #{unet_mid_block_1d.1} parent=0 // pred_check_branch
    %19 = sbr.rel (0) target = $region13
  $region12: #{unet_mid_block_1d.1} parent=0 // pred_region
    _
  $region13: #{unet_mid_block_1d.1} parent=0 // pred_fallthru
    _
  // Predicated region
  $region14: #{unet_mid_block_1d.1} parent=0 // pred_check
    _
  $region15: #{unet_mid_block_1d.1} parent=0 // pred_check_branch
    %21 = sbr.rel (0) target = $region17
  $region16: #{unet_mid_block_1d.1} parent=0 // pred_region
    _
  $region17: #{unet_mid_block_1d.1} parent=0 // pred_fallthru
    _
  // Predicated region
  $region18: #{unet_mid_block_1d.1} parent=0 // pred_check
    _
  $region19: #{unet_mid_block_1d.1} parent=0 // pred_check_branch
    %23 = sbr.rel (0) target = $region21
  $region20: #{unet_mid_block_1d.1} parent=0 // pred_region
    _
  $region21: #{unet_mid_block_1d.1} parent=0 // pred_fallthru
    _
  // Predicated region
  $region22: #{unet_mid_block_1d.1} parent=0 // pred_check
    _
  $region23: #{unet_mid_block_1d.1} parent=0 // pred_check_branch
    %25 = sbr.rel (0) target = $region25
  $region24: #{unet_mid_block_1d.1} parent=0 // pred_region
    _
  $region25: #{unet_mid_block_1d.1} parent=0 // pred_fallthru
    _
  // Predicated region
  $region26: #{unet_mid_block_1d.1} parent=0 // pred_check
    _
  $region27: #{unet_mid_block_1d.1} parent=0 // pred_check_branch
    %27 = sbr.rel (0) target = $region29
  $region28: #{unet_mid_block_1d.1} parent=0 // pred_region
    _
  $region29: #{unet_mid_block_1d.1} parent=0 // pred_fallthru
    _
  // Predicated region
  $region30: #{unet_mid_block_1d.1} parent=0 // pred_check
    _
  $region31: #{unet_mid_block_1d.1} parent=0 // pred_check_branch
    %29 = sbr.rel (0) target = $region33
  $region32: #{unet_mid_block_1d.1} parent=0 // pred_region
    _
  $region33: #{unet_mid_block_1d.1} parent=0 // pred_fallthru
    _
  // Predicated region
  $region34: #{unet_mid_block_1d.1} parent=0 // pred_check
    _
  $region35: #{unet_mid_block_1d.1} parent=0 // pred_check_branch
    %31 = sbr.rel (0) target = $region37
  $region36: #{unet_mid_block_1d.1} parent=0 // pred_region
    _
  $region37: #{unet_mid_block_1d.1} parent=0 // pred_fallthru
    _
  %v32 = vld [vmem:[%s8] sm:$0xff]
  %v33 = vld [vmem:[%s8 + $0x8] sm:$0xff]
  %v34 = vld [vmem:[%s8 + $0x10] sm:$0xff]
  %v35 = vld [vmem:[%s8 + $0x18] sm:$0xff]
  %v36 = vld [vmem:[%s8 + $0x20] sm:$0xff]
  %v37 = vld [vmem:[%s8 + $0x28] sm:$0xff]
  %v38 = vld [vmem:[%s8 + $0x30] sm:$0xff]
  %v39 = vld [vmem:[%s8 + $0x38] sm:$0xff]
  %s40 = scalar_lea.vmem %s8, 64
  %v41 = vld [vmem:[%s40] sm:$0xff]
  %v42 = vld [vmem:[%s40 + $0x8] sm:$0xff]
  %v43 = vld [vmem:[%s40 + $0x10] sm:$0xff]
  %v44 = vld [vmem:[%s40 + $0x18] sm:$0xff]
  %v45 = vld [vmem:[%s40 + $0x20] sm:$0xff]
  %v46 = vld [vmem:[%s40 + $0x28] sm:$0xff]
  %v47 = vld [vmem:[%s40 + $0x30] sm:$0xff]
  %v48 = vld [vmem:[%s40 + $0x38] sm:$0xff]
  %v49 = vld [vmem:[%s2] sm:$0xff]
  %v50 = vld [vmem:[%s2 + $0x8] sm:$0xff]
  %v51 = vld [vmem:[%s2 + $0x10] sm:$0xff]
  %v52 = vld [vmem:[%s2 + $0x18] sm:$0xff]
  %v53 = vld [vmem:[%s6] sm:$0x7]
  %v54 = vld [vmem:[%s0] sm:$0xff]
  %v55 = vld [vmem:[%s0 + $0x8] sm:$0xff]
  %v56 = vld [vmem:[%s0 + $0x10] sm:$0xff]
  %v57 = vld [vmem:[%s0 + $0x18] sm:$0xff]
  %v58 = vld [vmem:[%s1] sm:$0xff]
  %v59 = vld [vmem:[%s1 + $0x8] sm:$0xff]
  %v60 = vld [vmem:[%s1 + $0x10] sm:$0xff]
  %v61 = vld [vmem:[%s1 + $0x18] sm:$0xff]
  %s62 = scalar_lea.vmem %s1, 32
  %v63 = vld [vmem:[%s62] sm:$0xff]
  %v64 = vld [vmem:[%s62 + $0x8] sm:$0xff]
  %v65 = vld [vmem:[%s62 + $0x10] sm:$0xff]
  %v66 = vld [vmem:[%s62 + $0x18] sm:$0xff]
  %v67 = vld [vmem:[%s3] sm:$0xff]
  %v68 = vld [vmem:[%s3 + $0x8] sm:$0xff]
  %v69 = vld [vmem:[%s3 + $0x10] sm:$0xff]
  %v70 = vld [vmem:[%s3 + $0x18] sm:$0xff]
  %72 = vset.pattern.permute.xlu0 0
  %73 = vperm.xlu0 %72, %v49
  %v74 = vpop.permute.xlu0 %73
  %77 = vset.pattern.permute.xlu0 0
  %78 = vperm.xlu0 %77, %v50
  %v79 = vpop.permute.xlu0 %78
  %82 = vset.pattern.permute.xlu0 0
  %83 = vperm.xlu0 %82, %v51
  %v84 = vpop.permute.xlu0 %83
  %87 = vset.pattern.permute.xlu0 0
  %88 = vperm.xlu0 %87, %v52
  %v89 = vpop.permute.xlu0 %88
  %vm91 = vcmask 261120
  %v93 = vsel %vm91, %v58, 0
  %v96 = vsel %vm91, %v59, 0
  %v99 = vsel %vm91, %v60, 0
  %v102 = vsel %vm91, %v61, 0
  %104 = vmatpush.msra.mxu0 0.0
  %105 = vmatpush.msra.mxu0 0.0
  %106 = vmatpush.msra.mxu0 0.0
  %107 = vmatpush.msra.mxu0 0.0
  %108 = vmatpush.msra.mxu0 0.0
  %109 = vmatpush.msra.mxu0 0.0
  %110 = vmatpush.msra.mxu0 0.0
  %111 = vmatpush.msra.mxu0 0.0
  %112 = vmatpush.msra.mxu0 0.0
  %113 = vmatpush.msra.mxu0 0.0
  %114 = vmatpush.msra.mxu0 0.0
  %115 = vmatpush.msra.mxu0 0.0
  %116 = vmatpush.msra.mxu0 %v57
  %117 = vmatpush.msra.mxu0 %v56
  %118 = vmatpush.msra.mxu0 %v55
  %119 = vmatpush.msra.mxu0 %v54
  %120 = vmatmul.f32.gmra.mxu0 %v93
  %v121 = vpop.f32.mrf.mxu0
  %v122 = vadd.f32 %v74, %v121
  %123 = vmatmul.f32.gmra.mxu0 %v96
  %v124 = vpop.f32.mrf.mxu0
  %v125 = vadd.f32 %v79, %v124
  %126 = vmatmul.f32.gmra.mxu0 %v99
  %v127 = vpop.f32.mrf.mxu0
  %v128 = vadd.f32 %v84, %v127
  %129 = vmatmul.f32.gmra.mxu0 %v102
  %v130 = vpop.f32.mrf.mxu0
  %v131 = vadd.f32 %v89, %v130
  %132 = vdwg.mxu0
  %v133 = vadd.f32 %v122, %v67
  %v134 = vadd.f32 %v125, %v68
  %v135 = vadd.f32 %v128, %v69
  %v136 = vadd.f32 %v131, %v70
  %vm137 = vcmask 523264
  %v138 = vsel %vm137, %v133, 0.0
  %v139 = vsel %vm137, %v134, 0.0
  %v140 = vadd.f32 %v138, %v139
  %v141 = vsel %vm137, %v135, 0.0
  %v142 = vadd.f32 %v140, %v141
  %v143 = vsel %vm137, %v136, 0.0
  %v144 = vadd.f32 %v142, %v143
  %v145 = vrot.slane %v144, 4
  %v146 = vadd.f32 %v144, %v145
  %v147 = vrot.slane %v146, 2
  %v148 = vadd.f32 %v146, %v147
  %v149 = vrot.slane %v148, 1
  %v150 = vadd.f32 %v148, %v149
  %v151 = vmul.f32 %v133, %v133
  %v152 = vmul.f32 %v134, %v134
  %v153 = vmul.f32 %v135, %v135
  %v154 = vmul.f32 %v136, %v136
  %v155 = vsel %vm137, %v151, 0.0
  %v156 = vsel %vm137, %v152, 0.0
  %v157 = vadd.f32 %v155, %v156
  %v158 = vsel %vm137, %v153, 0.0
  %v159 = vadd.f32 %v157, %v158
  %v160 = vsel %vm137, %v154, 0.0
  %v161 = vadd.f32 %v159, %v160
  %v162 = vrot.slane %v161, 4
  %v163 = vadd.f32 %v161, %v162
  %v164 = vrot.slane %v163, 2
  %v165 = vadd.f32 %v163, %v164
  %v166 = vrot.slane %v165, 1
  %v167 = vadd.f32 %v165, %v166
  %vm168 = vcmask 1040384
  %v169 = vsel %vm168, %v150, %v167
  %v171 = vsel %vm137, %v169, 0
  %173 = vmatpush.msra.mxu0 0.0
  %174 = vmatpush.msra.mxu0 0.0
  %175 = vmatpush.msra.mxu0 0.0
  %176 = vmatpush.msra.mxu0 0.0
  %177 = vmatpush.msra.mxu0 0.0
  %178 = vmatpush.msra.mxu0 0.0
  %179 = vmatpush.msra.mxu0 0.0
  %180 = vmatpush.msra.mxu0 0.0
  %181 = vmatpush.msra.mxu0 %v39
  %182 = vmatpush.msra.mxu0 %v38
  %183 = vmatpush.msra.mxu0 %v37
  %184 = vmatpush.msra.mxu0 %v36
  %185 = vmatpush.msra.mxu0 %v35
  %186 = vmatpush.msra.mxu0 %v34
  %187 = vmatpush.msra.mxu0 %v33
  %188 = vmatpush.msra.mxu0 %v32
  %189 = vmatmul.f32.gmra.mxu0 %v171
  %v190 = vpop.f32.mrf.mxu0
  %v191 = vadd.f32 0.0, %v190
  %192 = vdwg.mxu0
  %v193 = vmul.f32 %v191, %v191
  %v195 = vrot.slane %v193, 7
  %v197 = vsub.f32 %v191, %v195
  %v198 = vperm.slane %v191, 0
  %v199 = vsub.f32 %v133, %v198
  %v200 = vsub.f32 %v134, %v198
  %v201 = vsub.f32 %v135, %v198
  %v202 = vsub.f32 %v136, %v198
  %v203 = vadd.f32 %v197, 1e-05
  %v204 = vrsqrt.pop %v203
  %v205 = vmul.f32 %v204, %v203
  %v206 = vmul.f32 %v205, %v204
  %v207 = vmul.f32 0.5, %v206
  %v208 = vsub.f32 1.5, %v207
  %v209 = vmul.f32 %v204, %v208
  %vm210 = vweird.f32 %v203
  %vm211 = vweird.f32 %v204
  %vm212 = vmor %vm210, %vm211
  %v213 = vsel %vm212, %v204, %v209
  %v214 = vperm.slane %v213, 1
  %v215 = vmul.f32 %v199, %v214
  %v216 = vmul.f32 %v200, %v214
  %v217 = vmul.f32 %v201, %v214
  %v218 = vmul.f32 %v202, %v214
  %219 = vset.pattern.permute.xlu0 1
  %220 = vperm.xlu0 %219, %v49
  %v221 = vpop.permute.xlu0 %220
  %223 = vset.pattern.permute.xlu0 1
  %224 = vperm.xlu0 %223, %v50
  %v225 = vpop.permute.xlu0 %224
  %227 = vset.pattern.permute.xlu0 1
  %228 = vperm.xlu0 %227, %v51
  %v229 = vpop.permute.xlu0 %228
  %231 = vset.pattern.permute.xlu0 1
  %232 = vperm.xlu0 %231, %v52
  %v233 = vpop.permute.xlu0 %232
  %v235 = vmul.f32 %v215, %v221
  %v236 = vmul.f32 %v216, %v225
  %v237 = vmul.f32 %v217, %v229
  %v238 = vmul.f32 %v218, %v233
  %239 = vset.pattern.permute.xlu0 2
  %240 = vperm.xlu0 %239, %v49
  %v241 = vpop.permute.xlu0 %240
  %243 = vset.pattern.permute.xlu0 2
  %244 = vperm.xlu0 %243, %v50
  %v245 = vpop.permute.xlu0 %244
  %247 = vset.pattern.permute.xlu0 2
  %248 = vperm.xlu0 %247, %v51
  %v249 = vpop.permute.xlu0 %248
  %251 = vset.pattern.permute.xlu0 2
  %252 = vperm.xlu0 %251, %v52
  %v253 = vpop.permute.xlu0 %252
  %v255 = vadd.f32 %v235, %v241
  %v256 = vadd.f32 %v236, %v245
  %v257 = vadd.f32 %v237, %v249
  %v258 = vadd.f32 %v238, %v253
  %v259 = vmul.f32 %v255, 0.5
  %v260 = vmul.f32 %v256, 0.5
  %v261 = vmul.f32 %v257, 0.5
  %v262 = vmul.f32 %v258, 0.5
  %v263 = vrcp.pop 1.4142135
  %v264 = vmul.f32 1.4142135, %v263
  %v265 = vsub.f32 1.0, %v264
  %v266 = vmul.f32 %v263, %v265
  %v267 = vadd.f32 %v263, %v266
  %vm268 = vweird.f32 %v263
  %v269 = vsel %vm268, %v263, %v267
  %v270 = vmul.f32 %v255, %v269
  %v271 = vmul.f32 %v256, %v269
  %v272 = vmul.f32 %v257, %v269
  %v273 = vmul.f32 %v258, %v269
  %v274 = vmul.f32 %v270, %v270
  %v275 = vmin.f32 16.0, %v274
  %v276 = vmul.f32 %v275, 2.1237322e-06
  %v277 = vadd.f32 %v276, 0.00028619796
  %v278 = vmul.f32 %v275, %v277
  %v279 = vadd.f32 %v278, 0.0036580483
  %v280 = vmul.f32 %v275, %v279
  %v281 = vadd.f32 %v280, 0.05243302
  %v282 = vmul.f32 %v275, %v281
  %v283 = vadd.f32 %v282, 0.18741608
  %v284 = vmul.f32 %v275, %v283
  %v285 = vadd.f32 %v284, 1.1283791
  %v286 = vmul.f32 %v270, %v285
  %v287 = vmul.f32 %v275, 3.8918573e-05
  %v288 = vadd.f32 %v287, 0.001143296
  %v289 = vmul.f32 %v275, %v288
  %v290 = vadd.f32 %v289, 0.014752088
  %v291 = vmul.f32 %v275, %v290
  %v292 = vadd.f32 %v291, 0.112945676
  %v293 = vmul.f32 %v275, %v292
  %v294 = vadd.f32 %v293, 0.4994258
  %v295 = vmul.f32 %v275, %v294
  %v296 = vadd.f32 %v295, 1.0
  %v297 = vrcp.pop %v296
  %v298 = vmul.f32 %v296, %v297
  %v299 = vsub.f32 1.0, %v298
  %v300 = vmul.f32 %v297, %v299
  %v301 = vadd.f32 %v297, %v300
  %vm302 = vweird.f32 %v296
  %vm303 = vweird.f32 %v297
  %vm304 = vmor %vm302, %vm303
  %v305 = vsel %vm304, %v297, %v301
  %v306 = vand.u32 2147483647, %v296
  %vm307 = vcmp.eq.f32.partialorder %v306, 8.507059e+37
  %v308 = vand.u32 %v296, 2147483648
  %v309 = vor.u32 1.1754944e-38, %v308
  %v310 = vsel %vm307, %v309, %v305
  %v311 = vmul.f32 %v286, %v310
  %v312 = vmin.f32 %v311, 1.0
  %v313 = vmax.f32 %v312, -1.0
  %v314 = vmul.f32 %v271, %v271
  %v315 = vmin.f32 16.0, %v314
  %v316 = vmul.f32 %v315, 2.1237322e-06
  %v317 = vadd.f32 %v316, 0.00028619796
  %v318 = vmul.f32 %v315, %v317
  %v319 = vadd.f32 %v318, 0.0036580483
  %v320 = vmul.f32 %v315, %v319
  %v321 = vadd.f32 %v320, 0.05243302
  %v322 = vmul.f32 %v315, %v321
  %v323 = vadd.f32 %v322, 0.18741608
  %v324 = vmul.f32 %v315, %v323
  %v325 = vadd.f32 %v324, 1.1283791
  %v326 = vmul.f32 %v271, %v325
  %v327 = vmul.f32 %v315, 3.8918573e-05
  %v328 = vadd.f32 %v327, 0.001143296
  %v329 = vmul.f32 %v315, %v328
  %v330 = vadd.f32 %v329, 0.014752088
  %v331 = vmul.f32 %v315, %v330
  %v332 = vadd.f32 %v331, 0.112945676
  %v333 = vmul.f32 %v315, %v332
  %v334 = vadd.f32 %v333, 0.4994258
  %v335 = vmul.f32 %v315, %v334
  %v336 = vadd.f32 %v335, 1.0
  %v337 = vrcp.pop %v336
  %v338 = vmul.f32 %v336, %v337
  %v339 = vsub.f32 1.0, %v338
  %v340 = vmul.f32 %v337, %v339
  %v341 = vadd.f32 %v337, %v340
  %vm342 = vweird.f32 %v336
  %vm343 = vweird.f32 %v337
  %vm344 = vmor %vm342, %vm343
  %v345 = vsel %vm344, %v337, %v341
  %v346 = vand.u32 2147483647, %v336
  %vm347 = vcmp.eq.f32.partialorder %v346, 8.507059e+37
  %v348 = vand.u32 %v336, 2147483648
  %v349 = vor.u32 1.1754944e-38, %v348
  %v350 = vsel %vm347, %v349, %v345
  %v351 = vmul.f32 %v326, %v350
  %v352 = vmin.f32 %v351, 1.0
  %v353 = vmax.f32 %v352, -1.0
  %v354 = vmul.f32 %v272, %v272
  %v355 = vmin.f32 16.0, %v354
  %v356 = vmul.f32 %v355, 2.1237322e-06
  %v357 = vadd.f32 %v356, 0.00028619796
  %v358 = vmul.f32 %v355, %v357
  %v359 = vadd.f32 %v358, 0.0036580483
  %v360 = vmul.f32 %v355, %v359
  %v361 = vadd.f32 %v360, 0.05243302
  %v362 = vmul.f32 %v355, %v361
  %v363 = vadd.f32 %v362, 0.18741608
  %v364 = vmul.f32 %v355, %v363
  %v365 = vadd.f32 %v364, 1.1283791
  %v366 = vmul.f32 %v272, %v365
  %v367 = vmul.f32 %v355, 3.8918573e-05
  %v368 = vadd.f32 %v367, 0.001143296
  %v369 = vmul.f32 %v355, %v368
  %v370 = vadd.f32 %v369, 0.014752088
  %v371 = vmul.f32 %v355, %v370
  %v372 = vadd.f32 %v371, 0.112945676
  %v373 = vmul.f32 %v355, %v372
  %v374 = vadd.f32 %v373, 0.4994258
  %v375 = vmul.f32 %v355, %v374
  %v376 = vadd.f32 %v375, 1.0
  %v377 = vrcp.pop %v376
  %v378 = vmul.f32 %v376, %v377
  %v379 = vsub.f32 1.0, %v378
  %v380 = vmul.f32 %v377, %v379
  %v381 = vadd.f32 %v377, %v380
  %vm382 = vweird.f32 %v376
  %vm383 = vweird.f32 %v377
  %vm384 = vmor %vm382, %vm383
  %v385 = vsel %vm384, %v377, %v381
  %v386 = vand.u32 2147483647, %v376
  %vm387 = vcmp.eq.f32.partialorder %v386, 8.507059e+37
  %v388 = vand.u32 %v376, 2147483648
  %v389 = vor.u32 1.1754944e-38, %v388
  %v390 = vsel %vm387, %v389, %v385
  %v391 = vmul.f32 %v366, %v390
  %v392 = vmin.f32 %v391, 1.0
  %v393 = vmax.f32 %v392, -1.0
  %v394 = vmul.f32 %v273, %v273
  %v395 = vmin.f32 16.0, %v394
  %v396 = vmul.f32 %v395, 2.1237322e-06
  %v397 = vadd.f32 %v396, 0.00028619796
  %v398 = vmul.f32 %v395, %v397
  %v399 = vadd.f32 %v398, 0.0036580483
  %v400 = vmul.f32 %v395, %v399
  %v401 = vadd.f32 %v400, 0.05243302
  %v402 = vmul.f32 %v395, %v401
  %v403 = vadd.f32 %v402, 0.18741608
  %v404 = vmul.f32 %v395, %v403
  %v405 = vadd.f32 %v404, 1.1283791
  %v406 = vmul.f32 %v273, %v405
  %v407 = vmul.f32 %v395, 3.8918573e-05
  %v408 = vadd.f32 %v407, 0.001143296
  %v409 = vmul.f32 %v395, %v408
  %v410 = vadd.f32 %v409, 0.014752088
  %v411 = vmul.f32 %v395, %v410
  %v412 = vadd.f32 %v411, 0.112945676
  %v413 = vmul.f32 %v395, %v412
  %v414 = vadd.f32 %v413, 0.4994258
  %v415 = vmul.f32 %v395, %v414
  %v416 = vadd.f32 %v415, 1.0
  %v417 = vrcp.pop %v416
  %v418 = vmul.f32 %v416, %v417
  %v419 = vsub.f32 1.0, %v418
  %v420 = vmul.f32 %v417, %v419
  %v421 = vadd.f32 %v417, %v420
  %vm422 = vweird.f32 %v416
  %vm423 = vweird.f32 %v417
  %vm424 = vmor %vm422, %vm423
  %v425 = vsel %vm424, %v417, %v421
  %v426 = vand.u32 2147483647, %v416
  %vm427 = vcmp.eq.f32.partialorder %v426, 8.507059e+37
  %v428 = vand.u32 %v416, 2147483648
  %v429 = vor.u32 1.1754944e-38, %v428
  %v430 = vsel %vm427, %v429, %v425
  %v431 = vmul.f32 %v406, %v430
  %v432 = vmin.f32 %v431, 1.0
  %v433 = vmax.f32 %v432, -1.0
  %v434 = vadd.f32 %v313, 1.0
  %v435 = vadd.f32 %v353, 1.0
  %v436 = vadd.f32 %v393, 1.0
  %v437 = vadd.f32 %v433, 1.0
  %v438 = vmul.f32 %v259, %v434
  %v439 = vmul.f32 %v260, %v435
  %v440 = vmul.f32 %v261, %v436
  %v441 = vmul.f32 %v262, %v437
  %442 = vset.pattern.permute.xlu0 3
  %443 = vperm.xlu0 %442, %v49
  %v444 = vpop.permute.xlu0 %443
  %446 = vset.pattern.permute.xlu0 3
  %447 = vperm.xlu0 %446, %v50
  %v448 = vpop.permute.xlu0 %447
  %450 = vset.pattern.permute.xlu0 3
  %451 = vperm.xlu0 %450, %v51
  %v452 = vpop.permute.xlu0 %451
  %454 = vset.pattern.permute.xlu0 3
  %455 = vperm.xlu0 %454, %v52
  %v456 = vpop.permute.xlu0 %455
  %v459 = vsel %vm91, %v63, 0
  %v462 = vsel %vm91, %v64, 0
  %v465 = vsel %vm91, %v65, 0
  %v468 = vsel %vm91, %v66, 0
  %470 = vmatpush.msra.mxu0 0.0
  %471 = vmatpush.msra.mxu0 0.0
  %472 = vmatpush.msra.mxu0 0.0
  %473 = vmatpush.msra.mxu0 0.0
  %474 = vmatpush.msra.mxu0 0.0
  %475 = vmatpush.msra.mxu0 0.0
  %476 = vmatpush.msra.mxu0 0.0
  %477 = vmatpush.msra.mxu0 0.0
  %478 = vmatpush.msra.mxu0 0.0
  %479 = vmatpush.msra.mxu0 0.0
  %480 = vmatpush.msra.mxu0 0.0
  %481 = vmatpush.msra.mxu0 0.0
  %482 = vmatpush.msra.mxu0 %v441
  %483 = vmatpush.msra.mxu0 %v440
  %484 = vmatpush.msra.mxu0 %v439
  %485 = vmatpush.msra.mxu0 %v438
  %486 = vmatmul.f32.gmra.mxu0 %v459
  %v487 = vpop.f32.mrf.mxu0
  %v488 = vadd.f32 %v444, %v487
  %489 = vmatmul.f32.gmra.mxu0 %v462
  %v490 = vpop.f32.mrf.mxu0
  %v491 = vadd.f32 %v448, %v490
  %492 = vmatmul.f32.gmra.mxu0 %v465
  %v493 = vpop.f32.mrf.mxu0
  %v494 = vadd.f32 %v452, %v493
  %495 = vmatmul.f32.gmra.mxu0 %v468
  %v496 = vpop.f32.mrf.mxu0
  %v497 = vadd.f32 %v456, %v496
  %498 = vdwg.mxu0
  %v499 = vsel %vm137, %v488, 0.0
  %v500 = vsel %vm137, %v491, 0.0
  %v501 = vadd.f32 %v499, %v500
  %v502 = vsel %vm137, %v494, 0.0
  %v503 = vadd.f32 %v501, %v502
  %v504 = vsel %vm137, %v497, 0.0
  %v505 = vadd.f32 %v503, %v504
  %v506 = vrot.slane %v505, 4
  %v507 = vadd.f32 %v505, %v506
  %v508 = vrot.slane %v507, 2
  %v509 = vadd.f32 %v507, %v508
  %v510 = vrot.slane %v509, 1
  %v511 = vadd.f32 %v509, %v510
  %v512 = vmul.f32 %v488, %v488
  %v513 = vmul.f32 %v491, %v491
  %v514 = vmul.f32 %v494, %v494
  %v515 = vmul.f32 %v497, %v497
  %v516 = vsel %vm137, %v512, 0.0
  %v517 = vsel %vm137, %v513, 0.0
  %v518 = vadd.f32 %v516, %v517
  %v519 = vsel %vm137, %v514, 0.0
  %v520 = vadd.f32 %v518, %v519
  %v521 = vsel %vm137, %v515, 0.0
  %v522 = vadd.f32 %v520, %v521
  %v523 = vrot.slane %v522, 4
  %v524 = vadd.f32 %v522, %v523
  %v525 = vrot.slane %v524, 2
  %v526 = vadd.f32 %v524, %v525
  %v527 = vrot.slane %v526, 1
  %v528 = vadd.f32 %v526, %v527
  %v529 = vsel %vm168, %v511, %v528
  %v531 = vsel %vm137, %v529, 0
  %533 = vmatpush.msra.mxu0 0.0
  %534 = vmatpush.msra.mxu0 0.0
  %535 = vmatpush.msra.mxu0 0.0
  %536 = vmatpush.msra.mxu0 0.0
  %537 = vmatpush.msra.mxu0 0.0
  %538 = vmatpush.msra.mxu0 0.0
  %539 = vmatpush.msra.mxu0 0.0
  %540 = vmatpush.msra.mxu0 0.0
  %541 = vmatpush.msra.mxu0 %v39
  %542 = vmatpush.msra.mxu0 %v38
  %543 = vmatpush.msra.mxu0 %v37
  %544 = vmatpush.msra.mxu0 %v36
  %545 = vmatpush.msra.mxu0 %v35
  %546 = vmatpush.msra.mxu0 %v34
  %547 = vmatpush.msra.mxu0 %v33
  %548 = vmatpush.msra.mxu0 %v32
  %549 = vmatmul.f32.gmra.mxu0 %v531
  %v550 = vpop.f32.mrf.mxu0
  %v551 = vadd.f32 0.0, %v550
  %552 = vdwg.mxu0
  %v553 = vmul.f32 %v551, %v551
  %v555 = vrot.slane %v553, 7
  %v557 = vsub.f32 %v551, %v555
  %v558 = vperm.slane %v551, 0
  %v559 = vsub.f32 %v488, %v558
  %v560 = vsub.f32 %v491, %v558
  %v561 = vsub.f32 %v494, %v558
  %v562 = vsub.f32 %v497, %v558
  %v563 = vadd.f32 %v557, 1e-05
  %v564 = vrsqrt.pop %v563
  %v565 = vmul.f32 %v564, %v563
  %v566 = vmul.f32 %v565, %v564
  %v567 = vmul.f32 0.5, %v566
  %v568 = vsub.f32 1.5, %v567
  %v569 = vmul.f32 %v564, %v568
  %vm570 = vweird.f32 %v563
  %vm571 = vweird.f32 %v564
  %vm572 = vmor %vm570, %vm571
  %v573 = vsel %vm572, %v564, %v569
  %v574 = vperm.slane %v573, 1
  %v575 = vmul.f32 %v559, %v574
  %v576 = vmul.f32 %v560, %v574
  %v577 = vmul.f32 %v561, %v574
  %v578 = vmul.f32 %v562, %v574
  %579 = vset.pattern.permute.xlu0 4
  %580 = vperm.xlu0 %579, %v49
  %v581 = vpop.permute.xlu0 %580
  %583 = vset.pattern.permute.xlu0 4
  %584 = vperm.xlu0 %583, %v50
  %v585 = vpop.permute.xlu0 %584
  %587 = vset.pattern.permute.xlu0 4
  %588 = vperm.xlu0 %587, %v51
  %v589 = vpop.permute.xlu0 %588
  %591 = vset.pattern.permute.xlu0 4
  %592 = vperm.xlu0 %591, %v52
  %v593 = vpop.permute.xlu0 %592
  %v595 = vmul.f32 %v575, %v581
  %v596 = vmul.f32 %v576, %v585
  %v597 = vmul.f32 %v577, %v589
  %v598 = vmul.f32 %v578, %v593
  %599 = vset.pattern.permute.xlu0 5
  %600 = vperm.xlu0 %599, %v49
  %v601 = vpop.permute.xlu0 %600
  %603 = vset.pattern.permute.xlu0 5
  %604 = vperm.xlu0 %603, %v50
  %v605 = vpop.permute.xlu0 %604
  %607 = vset.pattern.permute.xlu0 5
  %608 = vperm.xlu0 %607, %v51
  %v609 = vpop.permute.xlu0 %608
  %611 = vset.pattern.permute.xlu0 5
  %612 = vperm.xlu0 %611, %v52
  %v613 = vpop.permute.xlu0 %612
  %v615 = vadd.f32 %v595, %v601
  %v616 = vadd.f32 %v596, %v605
  %v617 = vadd.f32 %v597, %v609
  %v618 = vadd.f32 %v598, %v613
  %v619 = vmul.f32 %v615, 0.5
  %v620 = vmul.f32 %v616, 0.5
  %v621 = vmul.f32 %v617, 0.5
  %v622 = vmul.f32 %v618, 0.5
  %v623 = vmul.f32 %v615, %v269
  %v624 = vmul.f32 %v616, %v269
  %v625 = vmul.f32 %v617, %v269
  %v626 = vmul.f32 %v618, %v269
  %v627 = vmul.f32 %v623, %v623
  %v628 = vmin.f32 16.0, %v627
  %v629 = vmul.f32 %v628, 2.1237322e-06
  %v630 = vadd.f32 %v629, 0.00028619796
  %v631 = vmul.f32 %v628, %v630
  %v632 = vadd.f32 %v631, 0.0036580483
  %v633 = vmul.f32 %v628, %v632
  %v634 = vadd.f32 %v633, 0.05243302
  %v635 = vmul.f32 %v628, %v634
  %v636 = vadd.f32 %v635, 0.18741608
  %v637 = vmul.f32 %v628, %v636
  %v638 = vadd.f32 %v637, 1.1283791
  %v639 = vmul.f32 %v623, %v638
  %v640 = vmul.f32 %v628, 3.8918573e-05
  %v641 = vadd.f32 %v640, 0.001143296
  %v642 = vmul.f32 %v628, %v641
  %v643 = vadd.f32 %v642, 0.014752088
  %v644 = vmul.f32 %v628, %v643
  %v645 = vadd.f32 %v644, 0.112945676
  %v646 = vmul.f32 %v628, %v645
  %v647 = vadd.f32 %v646, 0.4994258
  %v648 = vmul.f32 %v628, %v647
  %v649 = vadd.f32 %v648, 1.0
  %v650 = vrcp.pop %v649
  %v651 = vmul.f32 %v649, %v650
  %v652 = vsub.f32 1.0, %v651
  %v653 = vmul.f32 %v650, %v652
  %v654 = vadd.f32 %v650, %v653
  %vm655 = vweird.f32 %v649
  %vm656 = vweird.f32 %v650
  %vm657 = vmor %vm655, %vm656
  %v658 = vsel %vm657, %v650, %v654
  %v659 = vand.u32 2147483647, %v649
  %vm660 = vcmp.eq.f32.partialorder %v659, 8.507059e+37
  %v661 = vand.u32 %v649, 2147483648
  %v662 = vor.u32 1.1754944e-38, %v661
  %v663 = vsel %vm660, %v662, %v658
  %v664 = vmul.f32 %v639, %v663
  %v665 = vmin.f32 %v664, 1.0
  %v666 = vmax.f32 %v665, -1.0
  %v667 = vmul.f32 %v624, %v624
  %v668 = vmin.f32 16.0, %v667
  %v669 = vmul.f32 %v668, 2.1237322e-06
  %v670 = vadd.f32 %v669, 0.00028619796
  %v671 = vmul.f32 %v668, %v670
  %v672 = vadd.f32 %v671, 0.0036580483
  %v673 = vmul.f32 %v668, %v672
  %v674 = vadd.f32 %v673, 0.05243302
  %v675 = vmul.f32 %v668, %v674
  %v676 = vadd.f32 %v675, 0.18741608
  %v677 = vmul.f32 %v668, %v676
  %v678 = vadd.f32 %v677, 1.1283791
  %v679 = vmul.f32 %v624, %v678
  %v680 = vmul.f32 %v668, 3.8918573e-05
  %v681 = vadd.f32 %v680, 0.001143296
  %v682 = vmul.f32 %v668, %v681
  %v683 = vadd.f32 %v682, 0.014752088
  %v684 = vmul.f32 %v668, %v683
  %v685 = vadd.f32 %v684, 0.112945676
  %v686 = vmul.f32 %v668, %v685
  %v687 = vadd.f32 %v686, 0.4994258
  %v688 = vmul.f32 %v668, %v687
  %v689 = vadd.f32 %v688, 1.0
  %v690 = vrcp.pop %v689
  %v691 = vmul.f32 %v689, %v690
  %v692 = vsub.f32 1.0, %v691
  %v693 = vmul.f32 %v690, %v692
  %v694 = vadd.f32 %v690, %v693
  %vm695 = vweird.f32 %v689
  %vm696 = vweird.f32 %v690
  %vm697 = vmor %vm695, %vm696
  %v698 = vsel %vm697, %v690, %v694
  %v699 = vand.u32 2147483647, %v689
  %vm700 = vcmp.eq.f32.partialorder %v699, 8.507059e+37
  %v701 = vand.u32 %v689, 2147483648
  %v702 = vor.u32 1.1754944e-38, %v701
  %v703 = vsel %vm700, %v702, %v698
  %v704 = vmul.f32 %v679, %v703
  %v705 = vmin.f32 %v704, 1.0
  %v706 = vmax.f32 %v705, -1.0
  %v707 = vmul.f32 %v625, %v625
  %v708 = vmin.f32 16.0, %v707
  %v709 = vmul.f32 %v708, 2.1237322e-06
  %v710 = vadd.f32 %v709, 0.00028619796
  %v711 = vmul.f32 %v708, %v710
  %v712 = vadd.f32 %v711, 0.0036580483
  %v713 = vmul.f32 %v708, %v712
  %v714 = vadd.f32 %v713, 0.05243302
  %v715 = vmul.f32 %v708, %v714
  %v716 = vadd.f32 %v715, 0.18741608
  %v717 = vmul.f32 %v708, %v716
  %v718 = vadd.f32 %v717, 1.1283791
  %v719 = vmul.f32 %v625, %v718
  %v720 = vmul.f32 %v708, 3.8918573e-05
  %v721 = vadd.f32 %v720, 0.001143296
  %v722 = vmul.f32 %v708, %v721
  %v723 = vadd.f32 %v722, 0.014752088
  %v724 = vmul.f32 %v708, %v723
  %v725 = vadd.f32 %v724, 0.112945676
  %v726 = vmul.f32 %v708, %v725
  %v727 = vadd.f32 %v726, 0.4994258
  %v728 = vmul.f32 %v708, %v727
  %v729 = vadd.f32 %v728, 1.0
  %v730 = vrcp.pop %v729
  %v731 = vmul.f32 %v729, %v730
  %v732 = vsub.f32 1.0, %v731
  %v733 = vmul.f32 %v730, %v732
  %v734 = vadd.f32 %v730, %v733
  %vm735 = vweird.f32 %v729
  %vm736 = vweird.f32 %v730
  %vm737 = vmor %vm735, %vm736
  %v738 = vsel %vm737, %v730, %v734
  %v739 = vand.u32 2147483647, %v729
  %vm740 = vcmp.eq.f32.partialorder %v739, 8.507059e+37
  %v741 = vand.u32 %v729, 2147483648
  %v742 = vor.u32 1.1754944e-38, %v741
  %v743 = vsel %vm740, %v742, %v738
  %v744 = vmul.f32 %v719, %v743
  %v745 = vmin.f32 %v744, 1.0
  %v746 = vmax.f32 %v745, -1.0
  %v747 = vmul.f32 %v626, %v626
  %v748 = vmin.f32 16.0, %v747
  %v749 = vmul.f32 %v748, 2.1237322e-06
  %v750 = vadd.f32 %v749, 0.00028619796
  %v751 = vmul.f32 %v748, %v750
  %v752 = vadd.f32 %v751, 0.0036580483
  %v753 = vmul.f32 %v748, %v752
  %v754 = vadd.f32 %v753, 0.05243302
  %v755 = vmul.f32 %v748, %v754
  %v756 = vadd.f32 %v755, 0.18741608
  %v757 = vmul.f32 %v748, %v756
  %v758 = vadd.f32 %v757, 1.1283791
  %v759 = vmul.f32 %v626, %v758
  %v760 = vmul.f32 %v748, 3.8918573e-05
  %v761 = vadd.f32 %v760, 0.001143296
  %v762 = vmul.f32 %v748, %v761
  %v763 = vadd.f32 %v762, 0.014752088
  %v764 = vmul.f32 %v748, %v763
  %v765 = vadd.f32 %v764, 0.112945676
  %v766 = vmul.f32 %v748, %v765
  %v767 = vadd.f32 %v766, 0.4994258
  %v768 = vmul.f32 %v748, %v767
  %v769 = vadd.f32 %v768, 1.0
  %v770 = vrcp.pop %v769
  %v771 = vmul.f32 %v769, %v770
  %v772 = vsub.f32 1.0, %v771
  %v773 = vmul.f32 %v770, %v772
  %v774 = vadd.f32 %v770, %v773
  %vm775 = vweird.f32 %v769
  %vm776 = vweird.f32 %v770
  %vm777 = vmor %vm775, %vm776
  %v778 = vsel %vm777, %v770, %v774
  %v779 = vand.u32 2147483647, %v769
  %vm780 = vcmp.eq.f32.partialorder %v779, 8.507059e+37
  %v781 = vand.u32 %v769, 2147483648
  %v782 = vor.u32 1.1754944e-38, %v781
  %v783 = vsel %vm780, %v782, %v778
  %v784 = vmul.f32 %v759, %v783
  %v785 = vmin.f32 %v784, 1.0
  %v786 = vmax.f32 %v785, -1.0
  %v787 = vadd.f32 %v666, 1.0
  %v788 = vadd.f32 %v706, 1.0
  %v789 = vadd.f32 %v746, 1.0
  %v790 = vadd.f32 %v786, 1.0
  %v791 = vmul.f32 %v619, %v787
  %v792 = vmul.f32 %v620, %v788
  %v793 = vmul.f32 %v621, %v789
  %v794 = vmul.f32 %v622, %v790
  %v795 = vadd.f32 %v791, %v54
  %v796 = vadd.f32 %v792, %v55
  %v797 = vadd.f32 %v793, %v56
  %v798 = vadd.f32 %v794, %v57
  %v799 = vsel %vm137, %v795, 0.0
  %v800 = vsel %vm137, %v796, 0.0
  %v801 = vadd.f32 %v799, %v800
  %v802 = vsel %vm137, %v797, 0.0
  %v803 = vadd.f32 %v801, %v802
  %v804 = vsel %vm137, %v798, 0.0
  %v805 = vadd.f32 %v803, %v804
  %v806 = vrot.slane %v805, 4
  %v807 = vadd.f32 %v805, %v806
  %v808 = vrot.slane %v807, 2
  %v809 = vadd.f32 %v807, %v808
  %v810 = vrot.slane %v809, 1
  %v811 = vadd.f32 %v809, %v810
  %v812 = vmul.f32 %v795, %v795
  %v813 = vmul.f32 %v796, %v796
  %v814 = vmul.f32 %v797, %v797
  %v815 = vmul.f32 %v798, %v798
  %v816 = vsel %vm137, %v812, 0.0
  %v817 = vsel %vm137, %v813, 0.0
  %v818 = vadd.f32 %v816, %v817
  %v819 = vsel %vm137, %v814, 0.0
  %v820 = vadd.f32 %v818, %v819
  %v821 = vsel %vm137, %v815, 0.0
  %v822 = vadd.f32 %v820, %v821
  %v823 = vrot.slane %v822, 4
  %v824 = vadd.f32 %v822, %v823
  %v825 = vrot.slane %v824, 2
  %v826 = vadd.f32 %v824, %v825
  %v827 = vrot.slane %v826, 1
  %v828 = vadd.f32 %v826, %v827
  %v829 = vsel %vm168, %v811, %v828
  %v831 = vsel %vm137, %v829, 0
  %833 = vmatpush.msra.mxu0 0.0
  %834 = vmatpush.msra.mxu0 0.0
  %835 = vmatpush.msra.mxu0 0.0
  %836 = vmatpush.msra.mxu0 0.0
  %837 = vmatpush.msra.mxu0 0.0
  %838 = vmatpush.msra.mxu0 0.0
  %839 = vmatpush.msra.mxu0 0.0
  %840 = vmatpush.msra.mxu0 0.0
  %841 = vmatpush.msra.mxu0 %v48
  %842 = vmatpush.msra.mxu0 %v47
  %843 = vmatpush.msra.mxu0 %v46
  %844 = vmatpush.msra.mxu0 %v45
  %845 = vmatpush.msra.mxu0 %v44
  %846 = vmatpush.msra.mxu0 %v43
  %847 = vmatpush.msra.mxu0 %v42
  %848 = vmatpush.msra.mxu0 %v41
  %849 = vmatmul.f32.gmra.mxu0 %v831
  %v850 = vpop.f32.mrf.mxu0
  %v851 = vadd.f32 0.0, %v850
  %852 = vdwg.mxu0
  %v853 = vmul.f32 %v851, %v851
  %v855 = vrot.slane %v853, 7
  %v857 = vsub.f32 %v851, %v855
  %v858 = vperm.slane %v851, 0
  %v859 = vsub.f32 %v795, %v858
  %v860 = vsub.f32 %v796, %v858
  %v861 = vsub.f32 %v797, %v858
  %v862 = vsub.f32 %v798, %v858
  %v863 = vadd.f32 %v857, 1e-06
  %v864 = vrsqrt.pop %v863
  %v865 = vmul.f32 %v864, %v863
  %v866 = vmul.f32 %v865, %v864
  %v867 = vmul.f32 0.5, %v866
  %v868 = vsub.f32 1.5, %v867
  %v869 = vmul.f32 %v864, %v868
  %vm870 = vweird.f32 %v863
  %vm871 = vweird.f32 %v864
  %vm872 = vmor %vm870, %vm871
  %v873 = vsel %vm872, %v864, %v869
  %v874 = vperm.slane %v873, 1
  %v875 = vmul.f32 %v859, %v874
  %v876 = vmul.f32 %v860, %v874
  %v877 = vmul.f32 %v861, %v874
  %v878 = vmul.f32 %v862, %v874
  %v879 = vperm.slane %v53, 0
  %v880 = vmul.f32 %v875, %v879
  %v881 = vmul.f32 %v876, %v879
  %v882 = vmul.f32 %v877, %v879
  %v883 = vmul.f32 %v878, %v879
  %v884 = vperm.slane %v53, 1
  %v885 = vadd.f32 %v880, %v884
  %v886 = vadd.f32 %v881, %v884
  %v887 = vadd.f32 %v882, %v884
  %v888 = vadd.f32 %v883, %v884
  %v889 = vld [vmem:[%s4] sm:$0xff]
  %v890 = vld [vmem:[%s4 + $0x8] sm:$0xff]
  %v891 = vld [vmem:[%s4 + $0x10] sm:$0xff]
  %v892 = vld [vmem:[%s4 + $0x18] sm:$0xff]
  %v893 = vld [vmem:[%s4 + $0x20] sm:$0xff]
  %v894 = vld [vmem:[%s4 + $0x28] sm:$0xff]
  %v895 = vld [vmem:[%s4 + $0x30] sm:$0xff]
  %v896 = vld [vmem:[%s4 + $0x38] sm:$0xff]
  %v897 = vld [vmem:[%s4 + $0x40] sm:$0xff]
  %v898 = vld [vmem:[%s4 + $0x48] sm:$0xff]
  %v899 = vld [vmem:[%s4 + $0x50] sm:$0xff]
  %v900 = vld [vmem:[%s4 + $0x58] sm:$0xff]
  %v901 = vld [vmem:[%s4 + $0x60] sm:$0xff]
  %v902 = vld [vmem:[%s4 + $0x68] sm:$0xff]
  %v903 = vld [vmem:[%s4 + $0x70] sm:$0xff]
  %v904 = vld [vmem:[%s4 + $0x78] sm:$0xff]
  %v905 = vld [vmem:[%s7] sm:$0x3]
  %v907 = vperm.slane %v905, 0
  %v908 = vperm.slane %v905, 1
  %v912 = vsel %vm137, %v885, 0
  %v915 = vsel %vm137, %v886, 0
  %v918 = vsel %vm137, %v887, 0
  %v921 = vsel %vm137, %v888, 0
  %923 = vmatpush.msra.mxu0 0.0
  %924 = vmatpush.msra.mxu0 0.0
  %925 = vmatpush.msra.mxu0 0.0
  %926 = vmatpush.msra.mxu0 0.0
  %927 = vmatpush.msra.mxu0 0.0
  %928 = vmatpush.msra.mxu0 0.0
  %929 = vmatpush.msra.mxu0 0.0
  %930 = vmatpush.msra.mxu0 0.0
  %931 = vmatpush.msra.mxu0 %v903
  %932 = vmatpush.msra.mxu0 %v901
  %933 = vmatpush.msra.mxu0 %v899
  %934 = vmatpush.msra.mxu0 %v897
  %935 = vmatpush.msra.mxu0 %v895
  %936 = vmatpush.msra.mxu0 %v893
  %937 = vmatpush.msra.mxu0 %v891
  %938 = vmatpush.msra.mxu0 %v889
  %939 = vmatmul.f32.gmra.mxu0 %v912
  %v940 = vpop.f32.mrf.mxu0
  %v941 = vadd.f32 %v907, %v940
  %942 = vmatmul.f32.gmra.mxu0 %v915
  %v943 = vpop.f32.mrf.mxu0
  %v944 = vadd.f32 %v907, %v943
  %945 = vmatmul.f32.gmra.mxu0 %v918
  %v946 = vpop.f32.mrf.mxu0
  %v947 = vadd.f32 %v907, %v946
  %948 = vmatmul.f32.gmra.mxu0 %v921
  %v949 = vpop.f32.mrf.mxu0
  %v950 = vadd.f32 %v907, %v949
  %951 = vdwg.mxu0
  %952 = vmatpush.msra.mxu0 0.0
  %953 = vmatpush.msra.mxu0 0.0
  %954 = vmatpush.msra.mxu0 0.0
  %955 = vmatpush.msra.mxu0 0.0
  %956 = vmatpush.msra.mxu0 0.0
  %957 = vmatpush.msra.mxu0 0.0
  %958 = vmatpush.msra.mxu0 0.0
  %959 = vmatpush.msra.mxu0 0.0
  %960 = vmatpush.msra.mxu0 %v904
  %961 = vmatpush.msra.mxu0 %v902
  %962 = vmatpush.msra.mxu0 %v900
  %963 = vmatpush.msra.mxu0 %v898
  %964 = vmatpush.msra.mxu0 %v896
  %965 = vmatpush.msra.mxu0 %v894
  %966 = vmatpush.msra.mxu0 %v892
  %967 = vmatpush.msra.mxu0 %v890
  %968 = vmatmul.f32.gmra.mxu0 %v912
  %v969 = vpop.f32.mrf.mxu0
  %v970 = vadd.f32 %v908, %v969
  %971 = vmatmul.f32.gmra.mxu0 %v915
  %v972 = vpop.f32.mrf.mxu0
  %v973 = vadd.f32 %v908, %v972
  %974 = vmatmul.f32.gmra.mxu0 %v918
  %v975 = vpop.f32.mrf.mxu0
  %v976 = vadd.f32 %v908, %v975
  %977 = vmatmul.f32.gmra.mxu0 %v921
  %v978 = vpop.f32.mrf.mxu0
  %v979 = vadd.f32 %v908, %v978
  %980 = vdwg.mxu0
  %985 = vrot.lane.b32.xlu0 %v941, 120
  %v986 = vpop.permute.xlu0 %985
  %987 = vrot.lane.b32.xlu0 %v944, 120
  %v988 = vpop.permute.xlu0 %987
  %989 = vrot.lane.b32.xlu0 %v947, 120
  %v990 = vpop.permute.xlu0 %989
  %991 = vrot.lane.b32.xlu0 %v950, 120
  %v992 = vpop.permute.xlu0 %991
  %993 = vrot.lane.b32.xlu0 %v941, 112
  %v994 = vpop.permute.xlu0 %993
  %995 = vrot.lane.b32.xlu0 %v944, 112
  %v996 = vpop.permute.xlu0 %995
  %997 = vrot.lane.b32.xlu0 %v947, 112
  %v998 = vpop.permute.xlu0 %997
  %999 = vrot.lane.b32.xlu0 %v950, 112
  %v1000 = vpop.permute.xlu0 %999
  %1001 = vrot.lane.b32.xlu0 %v941, 104
  %v1002 = vpop.permute.xlu0 %1001
  %1003 = vrot.lane.b32.xlu0 %v944, 104
  %v1004 = vpop.permute.xlu0 %1003
  %1005 = vrot.lane.b32.xlu0 %v947, 104
  %v1006 = vpop.permute.xlu0 %1005
  %1007 = vrot.lane.b32.xlu0 %v950, 104
  %v1008 = vpop.permute.xlu0 %1007
  %1009 = vrot.lane.b32.xlu0 %v941, 32
  %v1010 = vpop.permute.xlu0 %1009
  %1011 = vrot.lane.b32.xlu0 %v944, 32
  %v1012 = vpop.permute.xlu0 %1011
  %1013 = vrot.lane.b32.xlu0 %v947, 32
  %v1014 = vpop.permute.xlu0 %1013
  %1015 = vrot.lane.b32.xlu0 %v950, 32
  %v1016 = vpop.permute.xlu0 %1015
  %1017 = vrot.lane.b32.xlu0 %v941, 24
  %v1018 = vpop.permute.xlu0 %1017
  %1019 = vrot.lane.b32.xlu0 %v944, 24
  %v1020 = vpop.permute.xlu0 %1019
  %1021 = vrot.lane.b32.xlu0 %v947, 24
  %v1022 = vpop.permute.xlu0 %1021
  %1023 = vrot.lane.b32.xlu0 %v950, 24
  %v1024 = vpop.permute.xlu0 %1023
  %1025 = vrot.lane.b32.xlu0 %v941, 16
  %v1026 = vpop.permute.xlu0 %1025
  %1027 = vrot.lane.b32.xlu0 %v944, 16
  %v1028 = vpop.permute.xlu0 %1027
  %1029 = vrot.lane.b32.xlu0 %v947, 16
  %v1030 = vpop.permute.xlu0 %1029
  %1031 = vrot.lane.b32.xlu0 %v950, 16
  %v1032 = vpop.permute.xlu0 %1031
  %1033 = vrot.lane.b32.xlu0 %v941, 8
  %v1034 = vpop.permute.xlu0 %1033
  %1035 = vrot.lane.b32.xlu0 %v944, 8
  %v1036 = vpop.permute.xlu0 %1035
  %1037 = vrot.lane.b32.xlu0 %v947, 8
  %v1038 = vpop.permute.xlu0 %1037
  %1039 = vrot.lane.b32.xlu0 %v950, 8
  %v1040 = vpop.permute.xlu0 %1039
  %1045 = vrot.lane.b32.xlu0 %v970, 32
  %v1046 = vpop.permute.xlu0 %1045
  %1047 = vrot.lane.b32.xlu0 %v973, 32
  %v1048 = vpop.permute.xlu0 %1047
  %1049 = vrot.lane.b32.xlu0 %v976, 32
  %v1050 = vpop.permute.xlu0 %1049
  %1051 = vrot.lane.b32.xlu0 %v979, 32
  %v1052 = vpop.permute.xlu0 %1051
  %1053 = vrot.lane.b32.xlu0 %v970, 24
  %v1054 = vpop.permute.xlu0 %1053
  %1055 = vrot.lane.b32.xlu0 %v973, 24
  %v1056 = vpop.permute.xlu0 %1055
  %1057 = vrot.lane.b32.xlu0 %v976, 24
  %v1058 = vpop.permute.xlu0 %1057
  %1059 = vrot.lane.b32.xlu0 %v979, 24
  %v1060 = vpop.permute.xlu0 %1059
  %1061 = vrot.lane.b32.xlu0 %v970, 16
  %v1062 = vpop.permute.xlu0 %1061
  %1063 = vrot.lane.b32.xlu0 %v973, 16
  %v1064 = vpop.permute.xlu0 %1063
  %1065 = vrot.lane.b32.xlu0 %v976, 16
  %v1066 = vpop.permute.xlu0 %1065
  %1067 = vrot.lane.b32.xlu0 %v979, 16
  %v1068 = vpop.permute.xlu0 %1067
  %1069 = vrot.lane.b32.xlu0 %v970, 8
  %v1070 = vpop.permute.xlu0 %1069
  %1071 = vrot.lane.b32.xlu0 %v973, 8
  %v1072 = vpop.permute.xlu0 %1071
  %1073 = vrot.lane.b32.xlu0 %v976, 8
  %v1074 = vpop.permute.xlu0 %1073
  %1075 = vrot.lane.b32.xlu0 %v979, 8
  %v1076 = vpop.permute.xlu0 %1075
  %1077 = vrot.lane.b32.xlu0 %v941, 96
  %v1078 = vpop.permute.xlu0 %1077
  %1079 = vrot.lane.b32.xlu0 %v944, 96
  %v1080 = vpop.permute.xlu0 %1079
  %1081 = vrot.lane.b32.xlu0 %v947, 96
  %v1082 = vpop.permute.xlu0 %1081
  %1083 = vrot.lane.b32.xlu0 %v950, 96
  %v1084 = vpop.permute.xlu0 %1083
  %vm1085 = vcmask 64512
  %v1086 = vsel %vm1085, %v941, 0
  %v1088 = vsel %vm1085, %v944, 0
  %v1090 = vsel %vm1085, %v947, 0
  %v1092 = vsel %vm1085, %v950, 0
  %v1094 = vsel %vm1085, %v1078, 0
  %v1096 = vsel %vm1085, %v1080, 0
  %v1098 = vsel %vm1085, %v1082, 0
  %v1100 = vsel %vm1085, %v1084, 0
  %1102 = vmatpush.xpose.msra.mxu0 0.0
  %1103 = vmatpush.xpose.msra.mxu0 0.0
  %1104 = vmatpush.xpose.msra.mxu0 0.0
  %1105 = vmatpush.xpose.msra.mxu0 0.0
  %1106 = vmatpush.xpose.msra.mxu0 0.0
  %1107 = vmatpush.xpose.msra.mxu0 0.0
  %1108 = vmatpush.xpose.msra.mxu0 0.0
  %1109 = vmatpush.xpose.msra.mxu0 0.0
  %1110 = vmatpush.xpose.msra.mxu0 0.0
  %1111 = vmatpush.xpose.msra.mxu0 0.0
  %1112 = vmatpush.xpose.msra.mxu0 0.0
  %1113 = vmatpush.xpose.msra.mxu0 0.0
  %1114 = vmatpush.xpose.msra.mxu0 %v1100
  %1115 = vmatpush.xpose.msra.mxu0 %v1098
  %1116 = vmatpush.xpose.msra.mxu0 %v1096
  %1117 = vmatpush.xpose.msra.mxu0 %v1094
  %1118 = vmatmul.f32.gmra.mxu0 %v1086
  %v1119 = vpop.f32.mrf.mxu0
  %v1120 = vadd.f32 0.0, %v1119
  %1121 = vmatmul.f32.gmra.mxu0 %v1088
  %v1122 = vpop.f32.mrf.mxu0
  %v1123 = vadd.f32 0.0, %v1122
  %1124 = vmatmul.f32.gmra.mxu0 %v1090
  %v1125 = vpop.f32.mrf.mxu0
  %v1126 = vadd.f32 0.0, %v1125
  %1127 = vmatmul.f32.gmra.mxu0 %v1092
  %v1128 = vpop.f32.mrf.mxu0
  %v1129 = vadd.f32 0.0, %v1128
  %1130 = vdwg.mxu0
  %1131 = vrot.lane.b32.xlu0 %v986, 96
  %v1132 = vpop.permute.xlu0 %1131
  %1133 = vrot.lane.b32.xlu0 %v988, 96
  %v1134 = vpop.permute.xlu0 %1133
  %1135 = vrot.lane.b32.xlu0 %v990, 96
  %v1136 = vpop.permute.xlu0 %1135
  %1137 = vrot.lane.b32.xlu0 %v992, 96
  %v1138 = vpop.permute.xlu0 %1137
  %v1139 = vsel %vm1085, %v986, 0
  %v1141 = vsel %vm1085, %v988, 0
  %v1143 = vsel %vm1085, %v990, 0
  %v1145 = vsel %vm1085, %v992, 0
  %v1147 = vsel %vm1085, %v1132, 0
  %v1149 = vsel %vm1085, %v1134, 0
  %v1151 = vsel %vm1085, %v1136, 0
  %v1153 = vsel %vm1085, %v1138, 0
  %1155 = vmatpush.xpose.msra.mxu0 0.0
  %1156 = vmatpush.xpose.msra.mxu0 0.0
  %1157 = vmatpush.xpose.msra.mxu0 0.0
  %1158 = vmatpush.xpose.msra.mxu0 0.0
  %1159 = vmatpush.xpose.msra.mxu0 0.0
  %1160 = vmatpush.xpose.msra.mxu0 0.0
  %1161 = vmatpush.xpose.msra.mxu0 0.0
  %1162 = vmatpush.xpose.msra.mxu0 0.0
  %1163 = vmatpush.xpose.msra.mxu0 0.0
  %1164 = vmatpush.xpose.msra.mxu0 0.0
  %1165 = vmatpush.xpose.msra.mxu0 0.0
  %1166 = vmatpush.xpose.msra.mxu0 0.0
  %1167 = vmatpush.xpose.msra.mxu0 %v1153
  %1168 = vmatpush.xpose.msra.mxu0 %v1151
  %1169 = vmatpush.xpose.msra.mxu0 %v1149
  %1170 = vmatpush.xpose.msra.mxu0 %v1147
  %1171 = vmatmul.f32.gmra.mxu0 %v1139
  %v1172 = vpop.f32.mrf.mxu0
  %v1173 = vadd.f32 0.0, %v1172
  %1174 = vmatmul.f32.gmra.mxu0 %v1141
  %v1175 = vpop.f32.mrf.mxu0
  %v1176 = vadd.f32 0.0, %v1175
  %1177 = vmatmul.f32.gmra.mxu0 %v1143
  %v1178 = vpop.f32.mrf.mxu0
  %v1179 = vadd.f32 0.0, %v1178
  %1180 = vmatmul.f32.gmra.mxu0 %v1145
  %v1181 = vpop.f32.mrf.mxu0
  %v1182 = vadd.f32 0.0, %v1181
  %1183 = vdwg.mxu0
  %1184 = vrot.lane.b32.xlu0 %v994, 96
  %v1185 = vpop.permute.xlu0 %1184
  %1186 = vrot.lane.b32.xlu0 %v996, 96
  %v1187 = vpop.permute.xlu0 %1186
  %1188 = vrot.lane.b32.xlu0 %v998, 96
  %v1189 = vpop.permute.xlu0 %1188
  %1190 = vrot.lane.b32.xlu0 %v1000, 96
  %v1191 = vpop.permute.xlu0 %1190
  %v1192 = vsel %vm1085, %v994, 0
  %v1194 = vsel %vm1085, %v996, 0
  %v1196 = vsel %vm1085, %v998, 0
  %v1198 = vsel %vm1085, %v1000, 0
  %v1200 = vsel %vm1085, %v1185, 0
  %v1202 = vsel %vm1085, %v1187, 0
  %v1204 = vsel %vm1085, %v1189, 0
  %v1206 = vsel %vm1085, %v1191, 0
  %1208 = vmatpush.xpose.msra.mxu0 0.0
  %1209 = vmatpush.xpose.msra.mxu0 0.0
  %1210 = vmatpush.xpose.msra.mxu0 0.0
  %1211 = vmatpush.xpose.msra.mxu0 0.0
  %1212 = vmatpush.xpose.msra.mxu0 0.0
  %1213 = vmatpush.xpose.msra.mxu0 0.0
  %1214 = vmatpush.xpose.msra.mxu0 0.0
  %1215 = vmatpush.xpose.msra.mxu0 0.0
  %1216 = vmatpush.xpose.msra.mxu0 0.0
  %1217 = vmatpush.xpose.msra.mxu0 0.0
  %1218 = vmatpush.xpose.msra.mxu0 0.0
  %1219 = vmatpush.xpose.msra.mxu0 0.0
  %1220 = vmatpush.xpose.msra.mxu0 %v1206
  %1221 = vmatpush.xpose.msra.mxu0 %v1204
  %1222 = vmatpush.xpose.msra.mxu0 %v1202
  %1223 = vmatpush.xpose.msra.mxu0 %v1200
  %1224 = vmatmul.f32.gmra.mxu0 %v1192
  %v1225 = vpop.f32.mrf.mxu0
  %v1226 = vadd.f32 0.0, %v1225
  %1227 = vmatmul.f32.gmra.mxu0 %v1194
  %v1228 = vpop.f32.mrf.mxu0
  %v1229 = vadd.f32 0.0, %v1228
  %1230 = vmatmul.f32.gmra.mxu0 %v1196
  %v1231 = vpop.f32.mrf.mxu0
  %v1232 = vadd.f32 0.0, %v1231
  %1233 = vmatmul.f32.gmra.mxu0 %v1198
  %v1234 = vpop.f32.mrf.mxu0
  %v1235 = vadd.f32 0.0, %v1234
  %1236 = vdwg.mxu0
  %1237 = vrot.lane.b32.xlu0 %v1002, 96
  %v1238 = vpop.permute.xlu0 %1237
  %1239 = vrot.lane.b32.xlu0 %v1004, 96
  %v1240 = vpop.permute.xlu0 %1239
  %1241 = vrot.lane.b32.xlu0 %v1006, 96
  %v1242 = vpop.permute.xlu0 %1241
  %1243 = vrot.lane.b32.xlu0 %v1008, 96
  %v1244 = vpop.permute.xlu0 %1243
  %v1245 = vsel %vm1085, %v1002, 0
  %v1247 = vsel %vm1085, %v1004, 0
  %v1249 = vsel %vm1085, %v1006, 0
  %v1251 = vsel %vm1085, %v1008, 0
  %v1253 = vsel %vm1085, %v1238, 0
  %v1255 = vsel %vm1085, %v1240, 0
  %v1257 = vsel %vm1085, %v1242, 0
  %v1259 = vsel %vm1085, %v1244, 0
  %1261 = vmatpush.xpose.msra.mxu0 0.0
  %1262 = vmatpush.xpose.msra.mxu0 0.0
  %1263 = vmatpush.xpose.msra.mxu0 0.0
  %1264 = vmatpush.xpose.msra.mxu0 0.0
  %1265 = vmatpush.xpose.msra.mxu0 0.0
  %1266 = vmatpush.xpose.msra.mxu0 0.0
  %1267 = vmatpush.xpose.msra.mxu0 0.0
  %1268 = vmatpush.xpose.msra.mxu0 0.0
  %1269 = vmatpush.xpose.msra.mxu0 0.0
  %1270 = vmatpush.xpose.msra.mxu0 0.0
  %1271 = vmatpush.xpose.msra.mxu0 0.0
  %1272 = vmatpush.xpose.msra.mxu0 0.0
  %1273 = vmatpush.xpose.msra.mxu0 %v1259
  %1274 = vmatpush.xpose.msra.mxu0 %v1257
  %1275 = vmatpush.xpose.msra.mxu0 %v1255
  %1276 = vmatpush.xpose.msra.mxu0 %v1253
  %1277 = vmatmul.f32.gmra.mxu0 %v1245
  %v1278 = vpop.f32.mrf.mxu0
  %v1279 = vadd.f32 0.0, %v1278
  %1280 = vmatmul.f32.gmra.mxu0 %v1247
  %v1281 = vpop.f32.mrf.mxu0
  %v1282 = vadd.f32 0.0, %v1281
  %1283 = vmatmul.f32.gmra.mxu0 %v1249
  %v1284 = vpop.f32.mrf.mxu0
  %v1285 = vadd.f32 0.0, %v1284
  %1286 = vmatmul.f32.gmra.mxu0 %v1251
  %v1287 = vpop.f32.mrf.mxu0
  %v1288 = vadd.f32 0.0, %v1287
  %1289 = vdwg.mxu0
  %1290 = vrot.lane.b32.xlu0 %v1046, 96
  %v1291 = vpop.permute.xlu0 %1290
  %1292 = vrot.lane.b32.xlu0 %v1048, 96
  %v1293 = vpop.permute.xlu0 %1292
  %1294 = vrot.lane.b32.xlu0 %v1050, 96
  %v1295 = vpop.permute.xlu0 %1294
  %1296 = vrot.lane.b32.xlu0 %v1052, 96
  %v1297 = vpop.permute.xlu0 %1296
  %v1298 = vsel %vm1085, %v1010, 0
  %v1300 = vsel %vm1085, %v1012, 0
  %v1302 = vsel %vm1085, %v1014, 0
  %v1304 = vsel %vm1085, %v1016, 0
  %v1306 = vsel %vm1085, %v1291, 0
  %v1308 = vsel %vm1085, %v1293, 0
  %v1310 = vsel %vm1085, %v1295, 0
  %v1312 = vsel %vm1085, %v1297, 0
  %1314 = vmatpush.xpose.msra.mxu0 0.0
  %1315 = vmatpush.xpose.msra.mxu0 0.0
  %1316 = vmatpush.xpose.msra.mxu0 0.0
  %1317 = vmatpush.xpose.msra.mxu0 0.0
  %1318 = vmatpush.xpose.msra.mxu0 0.0
  %1319 = vmatpush.xpose.msra.mxu0 0.0
  %1320 = vmatpush.xpose.msra.mxu0 0.0
  %1321 = vmatpush.xpose.msra.mxu0 0.0
  %1322 = vmatpush.xpose.msra.mxu0 0.0
  %1323 = vmatpush.xpose.msra.mxu0 0.0
  %1324 = vmatpush.xpose.msra.mxu0 0.0
  %1325 = vmatpush.xpose.msra.mxu0 0.0
  %1326 = vmatpush.xpose.msra.mxu0 %v1312
  %1327 = vmatpush.xpose.msra.mxu0 %v1310
  %1328 = vmatpush.xpose.msra.mxu0 %v1308
  %1329 = vmatpush.xpose.msra.mxu0 %v1306
  %1330 = vmatmul.f32.gmra.mxu0 %v1298
  %v1331 = vpop.f32.mrf.mxu0
  %v1332 = vadd.f32 0.0, %v1331
  %1333 = vmatmul.f32.gmra.mxu0 %v1300
  %v1334 = vpop.f32.mrf.mxu0
  %v1335 = vadd.f32 0.0, %v1334
  %1336 = vmatmul.f32.gmra.mxu0 %v1302
  %v1337 = vpop.f32.mrf.mxu0
  %v1338 = vadd.f32 0.0, %v1337
  %1339 = vmatmul.f32.gmra.mxu0 %v1304
  %v1340 = vpop.f32.mrf.mxu0
  %v1341 = vadd.f32 0.0, %v1340
  %1342 = vdwg.mxu0
  %1343 = vrot.lane.b32.xlu0 %v1054, 96
  %v1344 = vpop.permute.xlu0 %1343
  %1345 = vrot.lane.b32.xlu0 %v1056, 96
  %v1346 = vpop.permute.xlu0 %1345
  %1347 = vrot.lane.b32.xlu0 %v1058, 96
  %v1348 = vpop.permute.xlu0 %1347
  %1349 = vrot.lane.b32.xlu0 %v1060, 96
  %v1350 = vpop.permute.xlu0 %1349
  %v1351 = vsel %vm1085, %v1018, 0
  %v1353 = vsel %vm1085, %v1020, 0
  %v1355 = vsel %vm1085, %v1022, 0
  %v1357 = vsel %vm1085, %v1024, 0
  %v1359 = vsel %vm1085, %v1344, 0
  %v1361 = vsel %vm1085, %v1346, 0
  %v1363 = vsel %vm1085, %v1348, 0
  %v1365 = vsel %vm1085, %v1350, 0
  %1367 = vmatpush.xpose.msra.mxu0 0.0
  %1368 = vmatpush.xpose.msra.mxu0 0.0
  %1369 = vmatpush.xpose.msra.mxu0 0.0
  %1370 = vmatpush.xpose.msra.mxu0 0.0
  %1371 = vmatpush.xpose.msra.mxu0 0.0
  %1372 = vmatpush.xpose.msra.mxu0 0.0
  %1373 = vmatpush.xpose.msra.mxu0 0.0
  %1374 = vmatpush.xpose.msra.mxu0 0.0
  %1375 = vmatpush.xpose.msra.mxu0 0.0
  %1376 = vmatpush.xpose.msra.mxu0 0.0
  %1377 = vmatpush.xpose.msra.mxu0 0.0
  %1378 = vmatpush.xpose.msra.mxu0 0.0
  %1379 = vmatpush.xpose.msra.mxu0 %v1365
  %1380 = vmatpush.xpose.msra.mxu0 %v1363
  %1381 = vmatpush.xpose.msra.mxu0 %v1361
  %1382 = vmatpush.xpose.msra.mxu0 %v1359
  %1383 = vmatmul.f32.gmra.mxu0 %v1351
  %v1384 = vpop.f32.mrf.mxu0
  %v1385 = vadd.f32 0.0, %v1384
  %1386 = vmatmul.f32.gmra.mxu0 %v1353
  %v1387 = vpop.f32.mrf.mxu0
  %v1388 = vadd.f32 0.0, %v1387
  %1389 = vmatmul.f32.gmra.mxu0 %v1355
  %v1390 = vpop.f32.mrf.mxu0
  %v1391 = vadd.f32 0.0, %v1390
  %1392 = vmatmul.f32.gmra.mxu0 %v1357
  %v1393 = vpop.f32.mrf.mxu0
  %v1394 = vadd.f32 0.0, %v1393
  %1395 = vdwg.mxu0
  %1396 = vrot.lane.b32.xlu0 %v1062, 96
  %v1397 = vpop.permute.xlu0 %1396
  %1398 = vrot.lane.b32.xlu0 %v1064, 96
  %v1399 = vpop.permute.xlu0 %1398
  %1400 = vrot.lane.b32.xlu0 %v1066, 96
  %v1401 = vpop.permute.xlu0 %1400
  %1402 = vrot.lane.b32.xlu0 %v1068, 96
  %v1403 = vpop.permute.xlu0 %1402
  %v1404 = vsel %vm1085, %v1026, 0
  %v1406 = vsel %vm1085, %v1028, 0
  %v1408 = vsel %vm1085, %v1030, 0
  %v1410 = vsel %vm1085, %v1032, 0
  %v1412 = vsel %vm1085, %v1397, 0
  %v1414 = vsel %vm1085, %v1399, 0
  %v1416 = vsel %vm1085, %v1401, 0
  %v1418 = vsel %vm1085, %v1403, 0
  %1420 = vmatpush.xpose.msra.mxu0 0.0
  %1421 = vmatpush.xpose.msra.mxu0 0.0
  %1422 = vmatpush.xpose.msra.mxu0 0.0
  %1423 = vmatpush.xpose.msra.mxu0 0.0
  %1424 = vmatpush.xpose.msra.mxu0 0.0
  %1425 = vmatpush.xpose.msra.mxu0 0.0
  %1426 = vmatpush.xpose.msra.mxu0 0.0
  %1427 = vmatpush.xpose.msra.mxu0 0.0
  %1428 = vmatpush.xpose.msra.mxu0 0.0
  %1429 = vmatpush.xpose.msra.mxu0 0.0
  %1430 = vmatpush.xpose.msra.mxu0 0.0
  %1431 = vmatpush.xpose.msra.mxu0 0.0
  %1432 = vmatpush.xpose.msra.mxu0 %v1418
  %1433 = vmatpush.xpose.msra.mxu0 %v1416
  %1434 = vmatpush.xpose.msra.mxu0 %v1414
  %1435 = vmatpush.xpose.msra.mxu0 %v1412
  %1436 = vmatmul.f32.gmra.mxu0 %v1404
  %v1437 = vpop.f32.mrf.mxu0
  %v1438 = vadd.f32 0.0, %v1437
  %1439 = vmatmul.f32.gmra.mxu0 %v1406
  %v1440 = vpop.f32.mrf.mxu0
  %v1441 = vadd.f32 0.0, %v1440
  %1442 = vmatmul.f32.gmra.mxu0 %v1408
  %v1443 = vpop.f32.mrf.mxu0
  %v1444 = vadd.f32 0.0, %v1443
  %1445 = vmatmul.f32.gmra.mxu0 %v1410
  %v1446 = vpop.f32.mrf.mxu0
  %v1447 = vadd.f32 0.0, %v1446
  %1448 = vdwg.mxu0
  %1449 = vrot.lane.b32.xlu0 %v1070, 96
  %v1450 = vpop.permute.xlu0 %1449
  %1451 = vrot.lane.b32.xlu0 %v1072, 96
  %v1452 = vpop.permute.xlu0 %1451
  %1453 = vrot.lane.b32.xlu0 %v1074, 96
  %v1454 = vpop.permute.xlu0 %1453
  %1455 = vrot.lane.b32.xlu0 %v1076, 96
  %v1456 = vpop.permute.xlu0 %1455
  %v1457 = vsel %vm1085, %v1034, 0
  %v1459 = vsel %vm1085, %v1036, 0
  %v1461 = vsel %vm1085, %v1038, 0
  %v1463 = vsel %vm1085, %v1040, 0
  %v1465 = vsel %vm1085, %v1450, 0
  %v1467 = vsel %vm1085, %v1452, 0
  %v1469 = vsel %vm1085, %v1454, 0
  %v1471 = vsel %vm1085, %v1456, 0
  %1473 = vmatpush.xpose.msra.mxu0 0.0
  %1474 = vmatpush.xpose.msra.mxu0 0.0
  %1475 = vmatpush.xpose.msra.mxu0 0.0
  %1476 = vmatpush.xpose.msra.mxu0 0.0
  %1477 = vmatpush.xpose.msra.mxu0 0.0
  %1478 = vmatpush.xpose.msra.mxu0 0.0
  %1479 = vmatpush.xpose.msra.mxu0 0.0
  %1480 = vmatpush.xpose.msra.mxu0 0.0
  %1481 = vmatpush.xpose.msra.mxu0 0.0
  %1482 = vmatpush.xpose.msra.mxu0 0.0
  %1483 = vmatpush.xpose.msra.mxu0 0.0
  %1484 = vmatpush.xpose.msra.mxu0 0.0
  %1485 = vmatpush.xpose.msra.mxu0 %v1471
  %1486 = vmatpush.xpose.msra.mxu0 %v1469
  %1487 = vmatpush.xpose.msra.mxu0 %v1467
  %1488 = vmatpush.xpose.msra.mxu0 %v1465
  %1489 = vmatmul.f32.gmra.mxu0 %v1457
  %v1490 = vpop.f32.mrf.mxu0
  %v1491 = vadd.f32 0.0, %v1490
  %1492 = vmatmul.f32.gmra.mxu0 %v1459
  %v1493 = vpop.f32.mrf.mxu0
  %v1494 = vadd.f32 0.0, %v1493
  %1495 = vmatmul.f32.gmra.mxu0 %v1461
  %v1496 = vpop.f32.mrf.mxu0
  %v1497 = vadd.f32 0.0, %v1496
  %1498 = vmatmul.f32.gmra.mxu0 %v1463
  %v1499 = vpop.f32.mrf.mxu0
  %v1500 = vadd.f32 0.0, %v1499
  %1501 = vdwg.mxu0
  %v1502 = vmul.f32 %v1120, 0.35355338
  %v1503 = vmul.f32 %v1123, 0.35355338
  %v1504 = vmul.f32 %v1126, 0.35355338
  %v1505 = vmul.f32 %v1129, 0.35355338
  %v1506 = vmul.f32 %v1173, 0.35355338
  %v1507 = vmul.f32 %v1176, 0.35355338
  %v1508 = vmul.f32 %v1179, 0.35355338
  %v1509 = vmul.f32 %v1182, 0.35355338
  %v1510 = vmul.f32 %v1226, 0.35355338
  %v1511 = vmul.f32 %v1229, 0.35355338
  %v1512 = vmul.f32 %v1232, 0.35355338
  %v1513 = vmul.f32 %v1235, 0.35355338
  %v1514 = vmul.f32 %v1279, 0.35355338
  %v1515 = vmul.f32 %v1282, 0.35355338
  %v1516 = vmul.f32 %v1285, 0.35355338
  %v1517 = vmul.f32 %v1288, 0.35355338
  %v1518 = vmul.f32 %v1332, 0.35355338
  %v1519 = vmul.f32 %v1335, 0.35355338
  %v1520 = vmul.f32 %v1338, 0.35355338
  %v1521 = vmul.f32 %v1341, 0.35355338
  %v1522 = vmul.f32 %v1385, 0.35355338
  %v1523 = vmul.f32 %v1388, 0.35355338
  %v1524 = vmul.f32 %v1391, 0.35355338
  %v1525 = vmul.f32 %v1394, 0.35355338
  %v1526 = vmul.f32 %v1438, 0.35355338
  %v1527 = vmul.f32 %v1441, 0.35355338
  %v1528 = vmul.f32 %v1444, 0.35355338
  %v1529 = vmul.f32 %v1447, 0.35355338
  %v1530 = vmul.f32 %v1491, 0.35355338
  %v1531 = vmul.f32 %v1494, 0.35355338
  %v1532 = vmul.f32 %v1497, 0.35355338
  %v1533 = vmul.f32 %v1500, 0.35355338
  %v1534 = vsel %vm91, %v1502, -inf
  %1535 = vmax.xlane.f32.xlu0 %v1534
  %v1536 = vpop.xlane.xlu0 %1535
  %v1537 = vsel %vm91, %v1503, -inf
  %1538 = vmax.xlane.f32.xlu0 %v1537
  %v1539 = vpop.xlane.xlu0 %1538
  %v1540 = vsel %vm91, %v1504, -inf
  %1541 = vmax.xlane.f32.xlu0 %v1540
  %v1542 = vpop.xlane.xlu0 %1541
  %v1543 = vsel %vm91, %v1505, -inf
  %1544 = vmax.xlane.f32.xlu0 %v1543
  %v1545 = vpop.xlane.xlu0 %1544
  %v1546 = vsel %vm91, %v1506, -inf
  %1547 = vmax.xlane.f32.xlu0 %v1546
  %v1548 = vpop.xlane.xlu0 %1547
  %v1549 = vsel %vm91, %v1507, -inf
  %1550 = vmax.xlane.f32.xlu0 %v1549
  %v1551 = vpop.xlane.xlu0 %1550
  %v1552 = vsel %vm91, %v1508, -inf
  %1553 = vmax.xlane.f32.xlu0 %v1552
  %v1554 = vpop.xlane.xlu0 %1553
  %v1555 = vsel %vm91, %v1509, -inf
  %1556 = vmax.xlane.f32.xlu0 %v1555
  %v1557 = vpop.xlane.xlu0 %1556
  %v1558 = vsel %vm91, %v1510, -inf
  %1559 = vmax.xlane.f32.xlu0 %v1558
  %v1560 = vpop.xlane.xlu0 %1559
  %v1561 = vsel %vm91, %v1511, -inf
  %1562 = vmax.xlane.f32.xlu0 %v1561
  %v1563 = vpop.xlane.xlu0 %1562
  %v1564 = vsel %vm91, %v1512, -inf
  %1565 = vmax.xlane.f32.xlu0 %v1564
  %v1566 = vpop.xlane.xlu0 %1565
  %v1567 = vsel %vm91, %v1513, -inf
  %1568 = vmax.xlane.f32.xlu0 %v1567
  %v1569 = vpop.xlane.xlu0 %1568
  %v1570 = vsel %vm91, %v1514, -inf
  %1571 = vmax.xlane.f32.xlu0 %v1570
  %v1572 = vpop.xlane.xlu0 %1571
  %v1573 = vsel %vm91, %v1515, -inf
  %1574 = vmax.xlane.f32.xlu0 %v1573
  %v1575 = vpop.xlane.xlu0 %1574
  %v1576 = vsel %vm91, %v1516, -inf
  %1577 = vmax.xlane.f32.xlu0 %v1576
  %v1578 = vpop.xlane.xlu0 %1577
  %v1579 = vsel %vm91, %v1517, -inf
  %1580 = vmax.xlane.f32.xlu0 %v1579
  %v1581 = vpop.xlane.xlu0 %1580
  %v1582 = vsel %vm91, %v1518, -inf
  %1583 = vmax.xlane.f32.xlu0 %v1582
  %v1584 = vpop.xlane.xlu0 %1583
  %v1585 = vsel %vm91, %v1519, -inf
  %1586 = vmax.xlane.f32.xlu0 %v1585
  %v1587 = vpop.xlane.xlu0 %1586
  %v1588 = vsel %vm91, %v1520, -inf
  %1589 = vmax.xlane.f32.xlu0 %v1588
  %v1590 = vpop.xlane.xlu0 %1589
  %v1591 = vsel %vm91, %v1521, -inf
  %1592 = vmax.xlane.f32.xlu0 %v1591
  %v1593 = vpop.xlane.xlu0 %1592
  %v1594 = vsel %vm91, %v1522, -inf
  %1595 = vmax.xlane.f32.xlu0 %v1594
  %v1596 = vpop.xlane.xlu0 %1595
  %v1597 = vsel %vm91, %v1523, -inf
  %1598 = vmax.xlane.f32.xlu0 %v1597
  %v1599 = vpop.xlane.xlu0 %1598
  %v1600 = vsel %vm91, %v1524, -inf
  %1601 = vmax.xlane.f32.xlu0 %v1600
  %v1602 = vpop.xlane.xlu0 %1601
  %v1603 = vsel %vm91, %v1525, -inf
  %1604 = vmax.xlane.f32.xlu0 %v1603
  %v1605 = vpop.xlane.xlu0 %1604
  %v1606 = vsel %vm91, %v1526, -inf
  %1607 = vmax.xlane.f32.xlu0 %v1606
  %v1608 = vpop.xlane.xlu0 %1607
  %v1609 = vsel %vm91, %v1527, -inf
  %1610 = vmax.xlane.f32.xlu0 %v1609
  %v1611 = vpop.xlane.xlu0 %1610
  %v1612 = vsel %vm91, %v1528, -inf
  %1613 = vmax.xlane.f32.xlu0 %v1612
  %v1614 = vpop.xlane.xlu0 %1613
  %v1615 = vsel %vm91, %v1529, -inf
  %1616 = vmax.xlane.f32.xlu0 %v1615
  %v1617 = vpop.xlane.xlu0 %1616
  %v1618 = vsel %vm91, %v1530, -inf
  %1619 = vmax.xlane.f32.xlu0 %v1618
  %v1620 = vpop.xlane.xlu0 %1619
  %v1621 = vsel %vm91, %v1531, -inf
  %1622 = vmax.xlane.f32.xlu0 %v1621
  %v1623 = vpop.xlane.xlu0 %1622
  %v1624 = vsel %vm91, %v1532, -inf
  %1625 = vmax.xlane.f32.xlu0 %v1624
  %v1626 = vpop.xlane.xlu0 %1625
  %v1627 = vsel %vm91, %v1533, -inf
  %1628 = vmax.xlane.f32.xlu0 %v1627
  %v1629 = vpop.xlane.xlu0 %1628
  %v1630 = vsub.f32 %v1502, %v1536
  %v1631 = vsub.f32 %v1503, %v1539
  %v1632 = vsub.f32 %v1504, %v1542
  %v1633 = vsub.f32 %v1505, %v1545
  %v1634 = vsub.f32 %v1506, %v1548
  %v1635 = vsub.f32 %v1507, %v1551
  %v1636 = vsub.f32 %v1508, %v1554
  %v1637 = vsub.f32 %v1509, %v1557
  %v1638 = vsub.f32 %v1510, %v1560
  %v1639 = vsub.f32 %v1511, %v1563
  %v1640 = vsub.f32 %v1512, %v1566
  %v1641 = vsub.f32 %v1513, %v1569
  %v1642 = vsub.f32 %v1514, %v1572
  %v1643 = vsub.f32 %v1515, %v1575
  %v1644 = vsub.f32 %v1516, %v1578
  %v1645 = vsub.f32 %v1517, %v1581
  %v1646 = vsub.f32 %v1518, %v1584
  %v1647 = vsub.f32 %v1519, %v1587
  %v1648 = vsub.f32 %v1520, %v1590
  %v1649 = vsub.f32 %v1521, %v1593
  %v1650 = vsub.f32 %v1522, %v1596
  %v1651 = vsub.f32 %v1523, %v1599
  %v1652 = vsub.f32 %v1524, %v1602
  %v1653 = vsub.f32 %v1525, %v1605
  %v1654 = vsub.f32 %v1526, %v1608
  %v1655 = vsub.f32 %v1527, %v1611
  %v1656 = vsub.f32 %v1528, %v1614
  %v1657 = vsub.f32 %v1529, %v1617
  %v1658 = vsub.f32 %v1530, %v1620
  %v1659 = vsub.f32 %v1531, %v1623
  %v1660 = vsub.f32 %v1532, %v1626
  %v1661 = vsub.f32 %v1533, %v1629
  %v1662 = vmul.f32 %v1630, 1.442695
  %v1663 = vpow.pop %v1662
  %v1664 = vmul.f32 %v1631, 1.442695
  %v1665 = vpow.pop %v1664
  %v1666 = vmul.f32 %v1632, 1.442695
  %v1667 = vpow.pop %v1666
  %v1668 = vmul.f32 %v1633, 1.442695
  %v1669 = vpow.pop %v1668
  %v1670 = vmul.f32 %v1634, 1.442695
  %v1671 = vpow.pop %v1670
  %v1672 = vmul.f32 %v1635, 1.442695
  %v1673 = vpow.pop %v1672
  %v1674 = vmul.f32 %v1636, 1.442695
  %v1675 = vpow.pop %v1674
  %v1676 = vmul.f32 %v1637, 1.442695
  %v1677 = vpow.pop %v1676
  %v1678 = vmul.f32 %v1638, 1.442695
  %v1679 = vpow.pop %v1678
  %v1680 = vmul.f32 %v1639, 1.442695
  %v1681 = vpow.pop %v1680
  %v1682 = vmul.f32 %v1640, 1.442695
  %v1683 = vpow.pop %v1682
  %v1684 = vmul.f32 %v1641, 1.442695
  %v1685 = vpow.pop %v1684
  %v1686 = vmul.f32 %v1642, 1.442695
  %v1687 = vpow.pop %v1686
  %v1688 = vmul.f32 %v1643, 1.442695
  %v1689 = vpow.pop %v1688
  %v1690 = vmul.f32 %v1644, 1.442695
  %v1691 = vpow.pop %v1690
  %v1692 = vmul.f32 %v1645, 1.442695
  %v1693 = vpow.pop %v1692
  %v1694 = vmul.f32 %v1646, 1.442695
  %v1695 = vpow.pop %v1694
  %v1696 = vmul.f32 %v1647, 1.442695
  %v1697 = vpow.pop %v1696
  %v1698 = vmul.f32 %v1648, 1.442695
  %v1699 = vpow.pop %v1698
  %v1700 = vmul.f32 %v1649, 1.442695
  %v1701 = vpow.pop %v1700
  %v1702 = vmul.f32 %v1650, 1.442695
  %v1703 = vpow.pop %v1702
  %v1704 = vmul.f32 %v1651, 1.442695
  %v1705 = vpow.pop %v1704
  %v1706 = vmul.f32 %v1652, 1.442695
  %v1707 = vpow.pop %v1706
  %v1708 = vmul.f32 %v1653, 1.442695
  %v1709 = vpow.pop %v1708
  %v1710 = vmul.f32 %v1654, 1.442695
  %v1711 = vpow.pop %v1710
  %v1712 = vmul.f32 %v1655, 1.442695
  %v1713 = vpow.pop %v1712
  %v1714 = vmul.f32 %v1656, 1.442695
  %v1715 = vpow.pop %v1714
  %v1716 = vmul.f32 %v1657, 1.442695
  %v1717 = vpow.pop %v1716
  %v1718 = vmul.f32 %v1658, 1.442695
  %v1719 = vpow.pop %v1718
  %v1720 = vmul.f32 %v1659, 1.442695
  %v1721 = vpow.pop %v1720
  %v1722 = vmul.f32 %v1660, 1.442695
  %v1723 = vpow.pop %v1722
  %v1724 = vmul.f32 %v1661, 1.442695
  %v1725 = vpow.pop %v1724
  %v1726 = vsel %vm91, %v1663, 0.0
  %1727 = vadd.xlane.f32.xlu0 %v1726
  %v1728 = vpop.xlane.xlu0 %1727
  %v1729 = vsel %vm91, %v1665, 0.0
  %1730 = vadd.xlane.f32.xlu0 %v1729
  %v1731 = vpop.xlane.xlu0 %1730
  %v1732 = vsel %vm91, %v1667, 0.0
  %1733 = vadd.xlane.f32.xlu0 %v1732
  %v1734 = vpop.xlane.xlu0 %1733
  %v1735 = vsel %vm91, %v1669, 0.0
  %1736 = vadd.xlane.f32.xlu0 %v1735
  %v1737 = vpop.xlane.xlu0 %1736
  %v1738 = vsel %vm91, %v1671, 0.0
  %1739 = vadd.xlane.f32.xlu0 %v1738
  %v1740 = vpop.xlane.xlu0 %1739
  %v1741 = vsel %vm91, %v1673, 0.0
  %1742 = vadd.xlane.f32.xlu0 %v1741
  %v1743 = vpop.xlane.xlu0 %1742
  %v1744 = vsel %vm91, %v1675, 0.0
  %1745 = vadd.xlane.f32.xlu0 %v1744
  %v1746 = vpop.xlane.xlu0 %1745
  %v1747 = vsel %vm91, %v1677, 0.0
  %1748 = vadd.xlane.f32.xlu0 %v1747
  %v1749 = vpop.xlane.xlu0 %1748
  %v1750 = vsel %vm91, %v1679, 0.0
  %1751 = vadd.xlane.f32.xlu0 %v1750
  %v1752 = vpop.xlane.xlu0 %1751
  %v1753 = vsel %vm91, %v1681, 0.0
  %1754 = vadd.xlane.f32.xlu0 %v1753
  %v1755 = vpop.xlane.xlu0 %1754
  %v1756 = vsel %vm91, %v1683, 0.0
  %1757 = vadd.xlane.f32.xlu0 %v1756
  %v1758 = vpop.xlane.xlu0 %1757
  %v1759 = vsel %vm91, %v1685, 0.0
  %1760 = vadd.xlane.f32.xlu0 %v1759
  %v1761 = vpop.xlane.xlu0 %1760
  %v1762 = vsel %vm91, %v1687, 0.0
  %1763 = vadd.xlane.f32.xlu0 %v1762
  %v1764 = vpop.xlane.xlu0 %1763
  %v1765 = vsel %vm91, %v1689, 0.0
  %1766 = vadd.xlane.f32.xlu0 %v1765
  %v1767 = vpop.xlane.xlu0 %1766
  %v1768 = vsel %vm91, %v1691, 0.0
  %1769 = vadd.xlane.f32.xlu0 %v1768
  %v1770 = vpop.xlane.xlu0 %1769
  %v1771 = vsel %vm91, %v1693, 0.0
  %1772 = vadd.xlane.f32.xlu0 %v1771
  %v1773 = vpop.xlane.xlu0 %1772
  %v1774 = vsel %vm91, %v1695, 0.0
  %1775 = vadd.xlane.f32.xlu0 %v1774
  %v1776 = vpop.xlane.xlu0 %1775
  %v1777 = vsel %vm91, %v1697, 0.0
  %1778 = vadd.xlane.f32.xlu0 %v1777
  %v1779 = vpop.xlane.xlu0 %1778
  %v1780 = vsel %vm91, %v1699, 0.0
  %1781 = vadd.xlane.f32.xlu0 %v1780
  %v1782 = vpop.xlane.xlu0 %1781
  %v1783 = vsel %vm91, %v1701, 0.0
  %1784 = vadd.xlane.f32.xlu0 %v1783
  %v1785 = vpop.xlane.xlu0 %1784
  %v1786 = vsel %vm91, %v1703, 0.0
  %1787 = vadd.xlane.f32.xlu0 %v1786
  %v1788 = vpop.xlane.xlu0 %1787
  %v1789 = vsel %vm91, %v1705, 0.0
  %1790 = vadd.xlane.f32.xlu0 %v1789
  %v1791 = vpop.xlane.xlu0 %1790
  %v1792 = vsel %vm91, %v1707, 0.0
  %1793 = vadd.xlane.f32.xlu0 %v1792
  %v1794 = vpop.xlane.xlu0 %1793
  %v1795 = vsel %vm91, %v1709, 0.0
  %1796 = vadd.xlane.f32.xlu0 %v1795
  %v1797 = vpop.xlane.xlu0 %1796
  %v1798 = vsel %vm91, %v1711, 0.0
  %1799 = vadd.xlane.f32.xlu0 %v1798
  %v1800 = vpop.xlane.xlu0 %1799
  %v1801 = vsel %vm91, %v1713, 0.0
  %1802 = vadd.xlane.f32.xlu0 %v1801
  %v1803 = vpop.xlane.xlu0 %1802
  %v1804 = vsel %vm91, %v1715, 0.0
  %1805 = vadd.xlane.f32.xlu0 %v1804
  %v1806 = vpop.xlane.xlu0 %1805
  %v1807 = vsel %vm91, %v1717, 0.0
  %1808 = vadd.xlane.f32.xlu0 %v1807
  %v1809 = vpop.xlane.xlu0 %1808
  %v1810 = vsel %vm91, %v1719, 0.0
  %1811 = vadd.xlane.f32.xlu0 %v1810
  %v1812 = vpop.xlane.xlu0 %1811
  %v1813 = vsel %vm91, %v1721, 0.0
  %1814 = vadd.xlane.f32.xlu0 %v1813
  %v1815 = vpop.xlane.xlu0 %1814
  %v1816 = vsel %vm91, %v1723, 0.0
  %1817 = vadd.xlane.f32.xlu0 %v1816
  %v1818 = vpop.xlane.xlu0 %1817
  %v1819 = vsel %vm91, %v1725, 0.0
  %1820 = vadd.xlane.f32.xlu0 %v1819
  %v1821 = vpop.xlane.xlu0 %1820
  %v1822 = vrcp.pop %v1728
  %v1823 = vmul.f32 %v1728, %v1822
  %v1824 = vsub.f32 1.0, %v1823
  %v1825 = vmul.f32 %v1822, %v1824
  %v1826 = vadd.f32 %v1822, %v1825
  %vm1827 = vweird.f32 %v1728
  %vm1828 = vweird.f32 %v1822
  %vm1829 = vmor %vm1827, %vm1828
  %v1830 = vsel %vm1829, %v1822, %v1826
  %v1831 = vand.u32 2147483647, %v1728
  %vm1832 = vcmp.eq.f32.partialorder %v1831, 8.507059e+37
  %v1833 = vand.u32 %v1728, 2147483648
  %v1834 = vor.u32 1.1754944e-38, %v1833
  %v1835 = vsel %vm1832, %v1834, %v1830
  %v1836 = vrcp.pop %v1731
  %v1837 = vmul.f32 %v1731, %v1836
  %v1838 = vsub.f32 1.0, %v1837
  %v1839 = vmul.f32 %v1836, %v1838
  %v1840 = vadd.f32 %v1836, %v1839
  %vm1841 = vweird.f32 %v1731
  %vm1842 = vweird.f32 %v1836
  %vm1843 = vmor %vm1841, %vm1842
  %v1844 = vsel %vm1843, %v1836, %v1840
  %v1845 = vand.u32 2147483647, %v1731
  %vm1846 = vcmp.eq.f32.partialorder %v1845, 8.507059e+37
  %v1847 = vand.u32 %v1731, 2147483648
  %v1848 = vor.u32 1.1754944e-38, %v1847
  %v1849 = vsel %vm1846, %v1848, %v1844
  %v1850 = vrcp.pop %v1734
  %v1851 = vmul.f32 %v1734, %v1850
  %v1852 = vsub.f32 1.0, %v1851
  %v1853 = vmul.f32 %v1850, %v1852
  %v1854 = vadd.f32 %v1850, %v1853
  %vm1855 = vweird.f32 %v1734
  %vm1856 = vweird.f32 %v1850
  %vm1857 = vmor %vm1855, %vm1856
  %v1858 = vsel %vm1857, %v1850, %v1854
  %v1859 = vand.u32 2147483647, %v1734
  %vm1860 = vcmp.eq.f32.partialorder %v1859, 8.507059e+37
  %v1861 = vand.u32 %v1734, 2147483648
  %v1862 = vor.u32 1.1754944e-38, %v1861
  %v1863 = vsel %vm1860, %v1862, %v1858
  %v1864 = vrcp.pop %v1737
  %v1865 = vmul.f32 %v1737, %v1864
  %v1866 = vsub.f32 1.0, %v1865
  %v1867 = vmul.f32 %v1864, %v1866
  %v1868 = vadd.f32 %v1864, %v1867
  %vm1869 = vweird.f32 %v1737
  %vm1870 = vweird.f32 %v1864
  %vm1871 = vmor %vm1869, %vm1870
  %v1872 = vsel %vm1871, %v1864, %v1868
  %v1873 = vand.u32 2147483647, %v1737
  %vm1874 = vcmp.eq.f32.partialorder %v1873, 8.507059e+37
  %v1875 = vand.u32 %v1737, 2147483648
  %v1876 = vor.u32 1.1754944e-38, %v1875
  %v1877 = vsel %vm1874, %v1876, %v1872
  %v1878 = vrcp.pop %v1740
  %v1879 = vmul.f32 %v1740, %v1878
  %v1880 = vsub.f32 1.0, %v1879
  %v1881 = vmul.f32 %v1878, %v1880
  %v1882 = vadd.f32 %v1878, %v1881
  %vm1883 = vweird.f32 %v1740
  %vm1884 = vweird.f32 %v1878
  %vm1885 = vmor %vm1883, %vm1884
  %v1886 = vsel %vm1885, %v1878, %v1882
  %v1887 = vand.u32 2147483647, %v1740
  %vm1888 = vcmp.eq.f32.partialorder %v1887, 8.507059e+37
  %v1889 = vand.u32 %v1740, 2147483648
  %v1890 = vor.u32 1.1754944e-38, %v1889
  %v1891 = vsel %vm1888, %v1890, %v1886
  %v1892 = vrcp.pop %v1743
  %v1893 = vmul.f32 %v1743, %v1892
  %v1894 = vsub.f32 1.0, %v1893
  %v1895 = vmul.f32 %v1892, %v1894
  %v1896 = vadd.f32 %v1892, %v1895
  %vm1897 = vweird.f32 %v1743
  %vm1898 = vweird.f32 %v1892
  %vm1899 = vmor %vm1897, %vm1898
  %v1900 = vsel %vm1899, %v1892, %v1896
  %v1901 = vand.u32 2147483647, %v1743
  %vm1902 = vcmp.eq.f32.partialorder %v1901, 8.507059e+37
  %v1903 = vand.u32 %v1743, 2147483648
  %v1904 = vor.u32 1.1754944e-38, %v1903
  %v1905 = vsel %vm1902, %v1904, %v1900
  %v1906 = vrcp.pop %v1746
  %v1907 = vmul.f32 %v1746, %v1906
  %v1908 = vsub.f32 1.0, %v1907
  %v1909 = vmul.f32 %v1906, %v1908
  %v1910 = vadd.f32 %v1906, %v1909
  %vm1911 = vweird.f32 %v1746
  %vm1912 = vweird.f32 %v1906
  %vm1913 = vmor %vm1911, %vm1912
  %v1914 = vsel %vm1913, %v1906, %v1910
  %v1915 = vand.u32 2147483647, %v1746
  %vm1916 = vcmp.eq.f32.partialorder %v1915, 8.507059e+37
  %v1917 = vand.u32 %v1746, 2147483648
  %v1918 = vor.u32 1.1754944e-38, %v1917
  %v1919 = vsel %vm1916, %v1918, %v1914
  %v1920 = vrcp.pop %v1749
  %v1921 = vmul.f32 %v1749, %v1920
  %v1922 = vsub.f32 1.0, %v1921
  %v1923 = vmul.f32 %v1920, %v1922
  %v1924 = vadd.f32 %v1920, %v1923
  %vm1925 = vweird.f32 %v1749
  %vm1926 = vweird.f32 %v1920
  %vm1927 = vmor %vm1925, %vm1926
  %v1928 = vsel %vm1927, %v1920, %v1924
  %v1929 = vand.u32 2147483647, %v1749
  %vm1930 = vcmp.eq.f32.partialorder %v1929, 8.507059e+37
  %v1931 = vand.u32 %v1749, 2147483648
  %v1932 = vor.u32 1.1754944e-38, %v1931
  %v1933 = vsel %vm1930, %v1932, %v1928
  %v1934 = vrcp.pop %v1752
  %v1935 = vmul.f32 %v1752, %v1934
  %v1936 = vsub.f32 1.0, %v1935
  %v1937 = vmul.f32 %v1934, %v1936
  %v1938 = vadd.f32 %v1934, %v1937
  %vm1939 = vweird.f32 %v1752
  %vm1940 = vweird.f32 %v1934
  %vm1941 = vmor %vm1939, %vm1940
  %v1942 = vsel %vm1941, %v1934, %v1938
  %v1943 = vand.u32 2147483647, %v1752
  %vm1944 = vcmp.eq.f32.partialorder %v1943, 8.507059e+37
  %v1945 = vand.u32 %v1752, 2147483648
  %v1946 = vor.u32 1.1754944e-38, %v1945
  %v1947 = vsel %vm1944, %v1946, %v1942
  %v1948 = vrcp.pop %v1755
  %v1949 = vmul.f32 %v1755, %v1948
  %v1950 = vsub.f32 1.0, %v1949
  %v1951 = vmul.f32 %v1948, %v1950
  %v1952 = vadd.f32 %v1948, %v1951
  %vm1953 = vweird.f32 %v1755
  %vm1954 = vweird.f32 %v1948
  %vm1955 = vmor %vm1953, %vm1954
  %v1956 = vsel %vm1955, %v1948, %v1952
  %v1957 = vand.u32 2147483647, %v1755
  %vm1958 = vcmp.eq.f32.partialorder %v1957, 8.507059e+37
  %v1959 = vand.u32 %v1755, 2147483648
  %v1960 = vor.u32 1.1754944e-38, %v1959
  %v1961 = vsel %vm1958, %v1960, %v1956
  %v1962 = vrcp.pop %v1758
  %v1963 = vmul.f32 %v1758, %v1962
  %v1964 = vsub.f32 1.0, %v1963
  %v1965 = vmul.f32 %v1962, %v1964
  %v1966 = vadd.f32 %v1962, %v1965
  %vm1967 = vweird.f32 %v1758
  %vm1968 = vweird.f32 %v1962
  %vm1969 = vmor %vm1967, %vm1968
  %v1970 = vsel %vm1969, %v1962, %v1966
  %v1971 = vand.u32 2147483647, %v1758
  %vm1972 = vcmp.eq.f32.partialorder %v1971, 8.507059e+37
  %v1973 = vand.u32 %v1758, 2147483648
  %v1974 = vor.u32 1.1754944e-38, %v1973
  %v1975 = vsel %vm1972, %v1974, %v1970
  %v1976 = vrcp.pop %v1761
  %v1977 = vmul.f32 %v1761, %v1976
  %v1978 = vsub.f32 1.0, %v1977
  %v1979 = vmul.f32 %v1976, %v1978
  %v1980 = vadd.f32 %v1976, %v1979
  %vm1981 = vweird.f32 %v1761
  %vm1982 = vweird.f32 %v1976
  %vm1983 = vmor %vm1981, %vm1982
  %v1984 = vsel %vm1983, %v1976, %v1980
  %v1985 = vand.u32 2147483647, %v1761
  %vm1986 = vcmp.eq.f32.partialorder %v1985, 8.507059e+37
  %v1987 = vand.u32 %v1761, 2147483648
  %v1988 = vor.u32 1.1754944e-38, %v1987
  %v1989 = vsel %vm1986, %v1988, %v1984
  %v1990 = vrcp.pop %v1764
  %v1991 = vmul.f32 %v1764, %v1990
  %v1992 = vsub.f32 1.0, %v1991
  %v1993 = vmul.f32 %v1990, %v1992
  %v1994 = vadd.f32 %v1990, %v1993
  %vm1995 = vweird.f32 %v1764
  %vm1996 = vweird.f32 %v1990
  %vm1997 = vmor %vm1995, %vm1996
  %v1998 = vsel %vm1997, %v1990, %v1994
  %v1999 = vand.u32 2147483647, %v1764
  %vm2000 = vcmp.eq.f32.partialorder %v1999, 8.507059e+37
  %v2001 = vand.u32 %v1764, 2147483648
  %v2002 = vor.u32 1.1754944e-38, %v2001
  %v2003 = vsel %vm2000, %v2002, %v1998
  %v2004 = vrcp.pop %v1767
  %v2005 = vmul.f32 %v1767, %v2004
  %v2006 = vsub.f32 1.0, %v2005
  %v2007 = vmul.f32 %v2004, %v2006
  %v2008 = vadd.f32 %v2004, %v2007
  %vm2009 = vweird.f32 %v1767
  %vm2010 = vweird.f32 %v2004
  %vm2011 = vmor %vm2009, %vm2010
  %v2012 = vsel %vm2011, %v2004, %v2008
  %v2013 = vand.u32 2147483647, %v1767
  %vm2014 = vcmp.eq.f32.partialorder %v2013, 8.507059e+37
  %v2015 = vand.u32 %v1767, 2147483648
  %v2016 = vor.u32 1.1754944e-38, %v2015
  %v2017 = vsel %vm2014, %v2016, %v2012
  %v2018 = vrcp.pop %v1770
  %v2019 = vmul.f32 %v1770, %v2018
  %v2020 = vsub.f32 1.0, %v2019
  %v2021 = vmul.f32 %v2018, %v2020
  %v2022 = vadd.f32 %v2018, %v2021
  %vm2023 = vweird.f32 %v1770
  %vm2024 = vweird.f32 %v2018
  %vm2025 = vmor %vm2023, %vm2024
  %v2026 = vsel %vm2025, %v2018, %v2022
  %v2027 = vand.u32 2147483647, %v1770
  %vm2028 = vcmp.eq.f32.partialorder %v2027, 8.507059e+37
  %v2029 = vand.u32 %v1770, 2147483648
  %v2030 = vor.u32 1.1754944e-38, %v2029
  %v2031 = vsel %vm2028, %v2030, %v2026
  %v2032 = vrcp.pop %v1773
  %v2033 = vmul.f32 %v1773, %v2032
  %v2034 = vsub.f32 1.0, %v2033
  %v2035 = vmul.f32 %v2032, %v2034
  %v2036 = vadd.f32 %v2032, %v2035
  %vm2037 = vweird.f32 %v1773
  %vm2038 = vweird.f32 %v2032
  %vm2039 = vmor %vm2037, %vm2038
  %v2040 = vsel %vm2039, %v2032, %v2036
  %v2041 = vand.u32 2147483647, %v1773
  %vm2042 = vcmp.eq.f32.partialorder %v2041, 8.507059e+37
  %v2043 = vand.u32 %v1773, 2147483648
  %v2044 = vor.u32 1.1754944e-38, %v2043
  %v2045 = vsel %vm2042, %v2044, %v2040
  %v2046 = vrcp.pop %v1776
  %v2047 = vmul.f32 %v1776, %v2046
  %v2048 = vsub.f32 1.0, %v2047
  %v2049 = vmul.f32 %v2046, %v2048
  %v2050 = vadd.f32 %v2046, %v2049
  %vm2051 = vweird.f32 %v1776
  %vm2052 = vweird.f32 %v2046
  %vm2053 = vmor %vm2051, %vm2052
  %v2054 = vsel %vm2053, %v2046, %v2050
  %v2055 = vand.u32 2147483647, %v1776
  %vm2056 = vcmp.eq.f32.partialorder %v2055, 8.507059e+37
  %v2057 = vand.u32 %v1776, 2147483648
  %v2058 = vor.u32 1.1754944e-38, %v2057
  %v2059 = vsel %vm2056, %v2058, %v2054
  %v2060 = vrcp.pop %v1779
  %v2061 = vmul.f32 %v1779, %v2060
  %v2062 = vsub.f32 1.0, %v2061
  %v2063 = vmul.f32 %v2060, %v2062
  %v2064 = vadd.f32 %v2060, %v2063
  %vm2065 = vweird.f32 %v1779
  %vm2066 = vweird.f32 %v2060
  %vm2067 = vmor %vm2065, %vm2066
  %v2068 = vsel %vm2067, %v2060, %v2064
  %v2069 = vand.u32 2147483647, %v1779
  %vm2070 = vcmp.eq.f32.partialorder %v2069, 8.507059e+37
  %v2071 = vand.u32 %v1779, 2147483648
  %v2072 = vor.u32 1.1754944e-38, %v2071
  %v2073 = vsel %vm2070, %v2072, %v2068
  %v2074 = vrcp.pop %v1782
  %v2075 = vmul.f32 %v1782, %v2074
  %v2076 = vsub.f32 1.0, %v2075
  %v2077 = vmul.f32 %v2074, %v2076
  %v2078 = vadd.f32 %v2074, %v2077
  %vm2079 = vweird.f32 %v1782
  %vm2080 = vweird.f32 %v2074
  %vm2081 = vmor %vm2079, %vm2080
  %v2082 = vsel %vm2081, %v2074, %v2078
  %v2083 = vand.u32 2147483647, %v1782
  %vm2084 = vcmp.eq.f32.partialorder %v2083, 8.507059e+37
  %v2085 = vand.u32 %v1782, 2147483648
  %v2086 = vor.u32 1.1754944e-38, %v2085
  %v2087 = vsel %vm2084, %v2086, %v2082
  %v2088 = vrcp.pop %v1785
  %v2089 = vmul.f32 %v1785, %v2088
  %v2090 = vsub.f32 1.0, %v2089
  %v2091 = vmul.f32 %v2088, %v2090
  %v2092 = vadd.f32 %v2088, %v2091
  %vm2093 = vweird.f32 %v1785
  %vm2094 = vweird.f32 %v2088
  %vm2095 = vmor %vm2093, %vm2094
  %v2096 = vsel %vm2095, %v2088, %v2092
  %v2097 = vand.u32 2147483647, %v1785
  %vm2098 = vcmp.eq.f32.partialorder %v2097, 8.507059e+37
  %v2099 = vand.u32 %v1785, 2147483648
  %v2100 = vor.u32 1.1754944e-38, %v2099
  %v2101 = vsel %vm2098, %v2100, %v2096
  %v2102 = vrcp.pop %v1788
  %v2103 = vmul.f32 %v1788, %v2102
  %v2104 = vsub.f32 1.0, %v2103
  %v2105 = vmul.f32 %v2102, %v2104
  %v2106 = vadd.f32 %v2102, %v2105
  %vm2107 = vweird.f32 %v1788
  %vm2108 = vweird.f32 %v2102
  %vm2109 = vmor %vm2107, %vm2108
  %v2110 = vsel %vm2109, %v2102, %v2106
  %v2111 = vand.u32 2147483647, %v1788
  %vm2112 = vcmp.eq.f32.partialorder %v2111, 8.507059e+37
  %v2113 = vand.u32 %v1788, 2147483648
  %v2114 = vor.u32 1.1754944e-38, %v2113
  %v2115 = vsel %vm2112, %v2114, %v2110
  %v2116 = vrcp.pop %v1791
  %v2117 = vmul.f32 %v1791, %v2116
  %v2118 = vsub.f32 1.0, %v2117
  %v2119 = vmul.f32 %v2116, %v2118
  %v2120 = vadd.f32 %v2116, %v2119
  %vm2121 = vweird.f32 %v1791
  %vm2122 = vweird.f32 %v2116
  %vm2123 = vmor %vm2121, %vm2122
  %v2124 = vsel %vm2123, %v2116, %v2120
  %v2125 = vand.u32 2147483647, %v1791
  %vm2126 = vcmp.eq.f32.partialorder %v2125, 8.507059e+37
  %v2127 = vand.u32 %v1791, 2147483648
  %v2128 = vor.u32 1.1754944e-38, %v2127
  %v2129 = vsel %vm2126, %v2128, %v2124
  %v2130 = vrcp.pop %v1794
  %v2131 = vmul.f32 %v1794, %v2130
  %v2132 = vsub.f32 1.0, %v2131
  %v2133 = vmul.f32 %v2130, %v2132
  %v2134 = vadd.f32 %v2130, %v2133
  %vm2135 = vweird.f32 %v1794
  %vm2136 = vweird.f32 %v2130
  %vm2137 = vmor %vm2135, %vm2136
  %v2138 = vsel %vm2137, %v2130, %v2134
  %v2139 = vand.u32 2147483647, %v1794
  %vm2140 = vcmp.eq.f32.partialorder %v2139, 8.507059e+37
  %v2141 = vand.u32 %v1794, 2147483648
  %v2142 = vor.u32 1.1754944e-38, %v2141
  %v2143 = vsel %vm2140, %v2142, %v2138
  %v2144 = vrcp.pop %v1797
  %v2145 = vmul.f32 %v1797, %v2144
  %v2146 = vsub.f32 1.0, %v2145
  %v2147 = vmul.f32 %v2144, %v2146
  %v2148 = vadd.f32 %v2144, %v2147
  %vm2149 = vweird.f32 %v1797
  %vm2150 = vweird.f32 %v2144
  %vm2151 = vmor %vm2149, %vm2150
  %v2152 = vsel %vm2151, %v2144, %v2148
  %v2153 = vand.u32 2147483647, %v1797
  %vm2154 = vcmp.eq.f32.partialorder %v2153, 8.507059e+37
  %v2155 = vand.u32 %v1797, 2147483648
  %v2156 = vor.u32 1.1754944e-38, %v2155
  %v2157 = vsel %vm2154, %v2156, %v2152
  %v2158 = vrcp.pop %v1800
  %v2159 = vmul.f32 %v1800, %v2158
  %v2160 = vsub.f32 1.0, %v2159
  %v2161 = vmul.f32 %v2158, %v2160
  %v2162 = vadd.f32 %v2158, %v2161
  %vm2163 = vweird.f32 %v1800
  %vm2164 = vweird.f32 %v2158
  %vm2165 = vmor %vm2163, %vm2164
  %v2166 = vsel %vm2165, %v2158, %v2162
  %v2167 = vand.u32 2147483647, %v1800
  %vm2168 = vcmp.eq.f32.partialorder %v2167, 8.507059e+37
  %v2169 = vand.u32 %v1800, 2147483648
  %v2170 = vor.u32 1.1754944e-38, %v2169
  %v2171 = vsel %vm2168, %v2170, %v2166
  %v2172 = vrcp.pop %v1803
  %v2173 = vmul.f32 %v1803, %v2172
  %v2174 = vsub.f32 1.0, %v2173
  %v2175 = vmul.f32 %v2172, %v2174
  %v2176 = vadd.f32 %v2172, %v2175
  %vm2177 = vweird.f32 %v1803
  %vm2178 = vweird.f32 %v2172
  %vm2179 = vmor %vm2177, %vm2178
  %v2180 = vsel %vm2179, %v2172, %v2176
  %v2181 = vand.u32 2147483647, %v1803
  %vm2182 = vcmp.eq.f32.partialorder %v2181, 8.507059e+37
  %v2183 = vand.u32 %v1803, 2147483648
  %v2184 = vor.u32 1.1754944e-38, %v2183
  %v2185 = vsel %vm2182, %v2184, %v2180
  %v2186 = vrcp.pop %v1806
  %v2187 = vmul.f32 %v1806, %v2186
  %v2188 = vsub.f32 1.0, %v2187
  %v2189 = vmul.f32 %v2186, %v2188
  %v2190 = vadd.f32 %v2186, %v2189
  %vm2191 = vweird.f32 %v1806
  %vm2192 = vweird.f32 %v2186
  %vm2193 = vmor %vm2191, %vm2192
  %v2194 = vsel %vm2193, %v2186, %v2190
  %v2195 = vand.u32 2147483647, %v1806
  %vm2196 = vcmp.eq.f32.partialorder %v2195, 8.507059e+37
  %v2197 = vand.u32 %v1806, 2147483648
  %v2198 = vor.u32 1.1754944e-38, %v2197
  %v2199 = vsel %vm2196, %v2198, %v2194
  %v2200 = vrcp.pop %v1809
  %v2201 = vmul.f32 %v1809, %v2200
  %v2202 = vsub.f32 1.0, %v2201
  %v2203 = vmul.f32 %v2200, %v2202
  %v2204 = vadd.f32 %v2200, %v2203
  %vm2205 = vweird.f32 %v1809
  %vm2206 = vweird.f32 %v2200
  %vm2207 = vmor %vm2205, %vm2206
  %v2208 = vsel %vm2207, %v2200, %v2204
  %v2209 = vand.u32 2147483647, %v1809
  %vm2210 = vcmp.eq.f32.partialorder %v2209, 8.507059e+37
  %v2211 = vand.u32 %v1809, 2147483648
  %v2212 = vor.u32 1.1754944e-38, %v2211
  %v2213 = vsel %vm2210, %v2212, %v2208
  %v2214 = vrcp.pop %v1812
  %v2215 = vmul.f32 %v1812, %v2214
  %v2216 = vsub.f32 1.0, %v2215
  %v2217 = vmul.f32 %v2214, %v2216
  %v2218 = vadd.f32 %v2214, %v2217
  %vm2219 = vweird.f32 %v1812
  %vm2220 = vweird.f32 %v2214
  %vm2221 = vmor %vm2219, %vm2220
  %v2222 = vsel %vm2221, %v2214, %v2218
  %v2223 = vand.u32 2147483647, %v1812
  %vm2224 = vcmp.eq.f32.partialorder %v2223, 8.507059e+37
  %v2225 = vand.u32 %v1812, 2147483648
  %v2226 = vor.u32 1.1754944e-38, %v2225
  %v2227 = vsel %vm2224, %v2226, %v2222
  %v2228 = vrcp.pop %v1815
  %v2229 = vmul.f32 %v1815, %v2228
  %v2230 = vsub.f32 1.0, %v2229
  %v2231 = vmul.f32 %v2228, %v2230
  %v2232 = vadd.f32 %v2228, %v2231
  %vm2233 = vweird.f32 %v1815
  %vm2234 = vweird.f32 %v2228
  %vm2235 = vmor %vm2233, %vm2234
  %v2236 = vsel %vm2235, %v2228, %v2232
  %v2237 = vand.u32 2147483647, %v1815
  %vm2238 = vcmp.eq.f32.partialorder %v2237, 8.507059e+37
  %v2239 = vand.u32 %v1815, 2147483648
  %v2240 = vor.u32 1.1754944e-38, %v2239
  %v2241 = vsel %vm2238, %v2240, %v2236
  %v2242 = vrcp.pop %v1818
  %v2243 = vmul.f32 %v1818, %v2242
  %v2244 = vsub.f32 1.0, %v2243
  %v2245 = vmul.f32 %v2242, %v2244
  %v2246 = vadd.f32 %v2242, %v2245
  %vm2247 = vweird.f32 %v1818
  %vm2248 = vweird.f32 %v2242
  %vm2249 = vmor %vm2247, %vm2248
  %v2250 = vsel %vm2249, %v2242, %v2246
  %v2251 = vand.u32 2147483647, %v1818
  %vm2252 = vcmp.eq.f32.partialorder %v2251, 8.507059e+37
  %v2253 = vand.u32 %v1818, 2147483648
  %v2254 = vor.u32 1.1754944e-38, %v2253
  %v2255 = vsel %vm2252, %v2254, %v2250
  %v2256 = vrcp.pop %v1821
  %v2257 = vmul.f32 %v1821, %v2256
  %v2258 = vsub.f32 1.0, %v2257
  %v2259 = vmul.f32 %v2256, %v2258
  %v2260 = vadd.f32 %v2256, %v2259
  %vm2261 = vweird.f32 %v1821
  %vm2262 = vweird.f32 %v2256
  %vm2263 = vmor %vm2261, %vm2262
  %v2264 = vsel %vm2263, %v2256, %v2260
  %v2265 = vand.u32 2147483647, %v1821
  %vm2266 = vcmp.eq.f32.partialorder %v2265, 8.507059e+37
  %v2267 = vand.u32 %v1821, 2147483648
  %v2268 = vor.u32 1.1754944e-38, %v2267
  %v2269 = vsel %vm2266, %v2268, %v2264
  %v2270 = vmul.f32 %v1663, %v1835
  %v2271 = vmul.f32 %v1665, %v1849
  %v2272 = vmul.f32 %v1667, %v1863
  %v2273 = vmul.f32 %v1669, %v1877
  %v2274 = vmul.f32 %v1671, %v1891
  %v2275 = vmul.f32 %v1673, %v1905
  %v2276 = vmul.f32 %v1675, %v1919
  %v2277 = vmul.f32 %v1677, %v1933
  %v2278 = vmul.f32 %v1679, %v1947
  %v2279 = vmul.f32 %v1681, %v1961
  %v2280 = vmul.f32 %v1683, %v1975
  %v2281 = vmul.f32 %v1685, %v1989
  %v2282 = vmul.f32 %v1687, %v2003
  %v2283 = vmul.f32 %v1689, %v2017
  %v2284 = vmul.f32 %v1691, %v2031
  %v2285 = vmul.f32 %v1693, %v2045
  %v2286 = vmul.f32 %v1695, %v2059
  %v2287 = vmul.f32 %v1697, %v2073
  %v2288 = vmul.f32 %v1699, %v2087
  %v2289 = vmul.f32 %v1701, %v2101
  %v2290 = vmul.f32 %v1703, %v2115
  %v2291 = vmul.f32 %v1705, %v2129
  %v2292 = vmul.f32 %v1707, %v2143
  %v2293 = vmul.f32 %v1709, %v2157
  %v2294 = vmul.f32 %v1711, %v2171
  %v2295 = vmul.f32 %v1713, %v2185
  %v2296 = vmul.f32 %v1715, %v2199
  %v2297 = vmul.f32 %v1717, %v2213
  %v2298 = vmul.f32 %v1719, %v2227
  %v2299 = vmul.f32 %v1721, %v2241
  %v2300 = vmul.f32 %v1723, %v2255
  %v2301 = vmul.f32 %v1725, %v2269
  %2302 = vrot.lane.b32.xlu0 %v941, 64
  %v2303 = vpop.permute.xlu0 %2302
  %2304 = vrot.lane.b32.xlu0 %v944, 64
  %v2305 = vpop.permute.xlu0 %2304
  %2306 = vrot.lane.b32.xlu0 %v947, 64
  %v2307 = vpop.permute.xlu0 %2306
  %2308 = vrot.lane.b32.xlu0 %v950, 64
  %v2309 = vpop.permute.xlu0 %2308
  %v2315 = vsel %vm91, %v2270, 0
  %v2318 = vsel %vm91, %v2271, 0
  %v2321 = vsel %vm91, %v2272, 0
  %v2324 = vsel %vm91, %v2273, 0
  %2326 = vmatpush.msra.mxu0 0.0
  %2327 = vmatpush.msra.mxu0 0.0
  %2328 = vmatpush.msra.mxu0 0.0
  %2329 = vmatpush.msra.mxu0 0.0
  %2330 = vmatpush.msra.mxu0 0.0
  %2331 = vmatpush.msra.mxu0 0.0
  %2332 = vmatpush.msra.mxu0 0.0
  %2333 = vmatpush.msra.mxu0 0.0
  %2334 = vmatpush.msra.mxu0 0.0
  %2335 = vmatpush.msra.mxu0 0.0
  %2336 = vmatpush.msra.mxu0 0.0
  %2337 = vmatpush.msra.mxu0 0.0
  %2338 = vmatpush.msra.mxu0 %v2309
  %2339 = vmatpush.msra.mxu0 %v2307
  %2340 = vmatpush.msra.mxu0 %v2305
  %2341 = vmatpush.msra.mxu0 %v2303
  %2342 = vmatmul.f32.gmra.mxu0 %v2315
  %v2343 = vpop.f32.mrf.mxu0
  %v2344 = vadd.f32 0.0, %v2343
  %2345 = vmatmul.f32.gmra.mxu0 %v2318
  %v2346 = vpop.f32.mrf.mxu0
  %v2347 = vadd.f32 0.0, %v2346
  %2348 = vmatmul.f32.gmra.mxu0 %v2321
  %v2349 = vpop.f32.mrf.mxu0
  %v2350 = vadd.f32 0.0, %v2349
  %2351 = vmatmul.f32.gmra.mxu0 %v2324
  %v2352 = vpop.f32.mrf.mxu0
  %v2353 = vadd.f32 0.0, %v2352
  %2354 = vdwg.mxu0
  %2355 = vrot.lane.b32.xlu0 %v986, 64
  %v2356 = vpop.permute.xlu0 %2355
  %2357 = vrot.lane.b32.xlu0 %v988, 64
  %v2358 = vpop.permute.xlu0 %2357
  %2359 = vrot.lane.b32.xlu0 %v990, 64
  %v2360 = vpop.permute.xlu0 %2359
  %2361 = vrot.lane.b32.xlu0 %v992, 64
  %v2362 = vpop.permute.xlu0 %2361
  %v2368 = vsel %vm91, %v2274, 0
  %v2371 = vsel %vm91, %v2275, 0
  %v2374 = vsel %vm91, %v2276, 0
  %v2377 = vsel %vm91, %v2277, 0
  %2379 = vmatpush.msra.mxu0 0.0
  %2380 = vmatpush.msra.mxu0 0.0
  %2381 = vmatpush.msra.mxu0 0.0
  %2382 = vmatpush.msra.mxu0 0.0
  %2383 = vmatpush.msra.mxu0 0.0
  %2384 = vmatpush.msra.mxu0 0.0
  %2385 = vmatpush.msra.mxu0 0.0
  %2386 = vmatpush.msra.mxu0 0.0
  %2387 = vmatpush.msra.mxu0 0.0
  %2388 = vmatpush.msra.mxu0 0.0
  %2389 = vmatpush.msra.mxu0 0.0
  %2390 = vmatpush.msra.mxu0 0.0
  %2391 = vmatpush.msra.mxu0 %v2362
  %2392 = vmatpush.msra.mxu0 %v2360
  %2393 = vmatpush.msra.mxu0 %v2358
  %2394 = vmatpush.msra.mxu0 %v2356
  %2395 = vmatmul.f32.gmra.mxu0 %v2368
  %v2396 = vpop.f32.mrf.mxu0
  %v2397 = vadd.f32 0.0, %v2396
  %2398 = vmatmul.f32.gmra.mxu0 %v2371
  %v2399 = vpop.f32.mrf.mxu0
  %v2400 = vadd.f32 0.0, %v2399
  %2401 = vmatmul.f32.gmra.mxu0 %v2374
  %v2402 = vpop.f32.mrf.mxu0
  %v2403 = vadd.f32 0.0, %v2402
  %2404 = vmatmul.f32.gmra.mxu0 %v2377
  %v2405 = vpop.f32.mrf.mxu0
  %v2406 = vadd.f32 0.0, %v2405
  %2407 = vdwg.mxu0
  %2408 = vrot.lane.b32.xlu0 %v994, 64
  %v2409 = vpop.permute.xlu0 %2408
  %2410 = vrot.lane.b32.xlu0 %v996, 64
  %v2411 = vpop.permute.xlu0 %2410
  %2412 = vrot.lane.b32.xlu0 %v998, 64
  %v2413 = vpop.permute.xlu0 %2412
  %2414 = vrot.lane.b32.xlu0 %v1000, 64
  %v2415 = vpop.permute.xlu0 %2414
  %v2421 = vsel %vm91, %v2278, 0
  %v2424 = vsel %vm91, %v2279, 0
  %v2427 = vsel %vm91, %v2280, 0
  %v2430 = vsel %vm91, %v2281, 0
  %2432 = vmatpush.msra.mxu0 0.0
  %2433 = vmatpush.msra.mxu0 0.0
  %2434 = vmatpush.msra.mxu0 0.0
  %2435 = vmatpush.msra.mxu0 0.0
  %2436 = vmatpush.msra.mxu0 0.0
  %2437 = vmatpush.msra.mxu0 0.0
  %2438 = vmatpush.msra.mxu0 0.0
  %2439 = vmatpush.msra.mxu0 0.0
  %2440 = vmatpush.msra.mxu0 0.0
  %2441 = vmatpush.msra.mxu0 0.0
  %2442 = vmatpush.msra.mxu0 0.0
  %2443 = vmatpush.msra.mxu0 0.0
  %2444 = vmatpush.msra.mxu0 %v2415
  %2445 = vmatpush.msra.mxu0 %v2413
  %2446 = vmatpush.msra.mxu0 %v2411
  %2447 = vmatpush.msra.mxu0 %v2409
  %2448 = vmatmul.f32.gmra.mxu0 %v2421
  %v2449 = vpop.f32.mrf.mxu0
  %v2450 = vadd.f32 0.0, %v2449
  %2451 = vmatmul.f32.gmra.mxu0 %v2424
  %v2452 = vpop.f32.mrf.mxu0
  %v2453 = vadd.f32 0.0, %v2452
  %2454 = vmatmul.f32.gmra.mxu0 %v2427
  %v2455 = vpop.f32.mrf.mxu0
  %v2456 = vadd.f32 0.0, %v2455
  %2457 = vmatmul.f32.gmra.mxu0 %v2430
  %v2458 = vpop.f32.mrf.mxu0
  %v2459 = vadd.f32 0.0, %v2458
  %2460 = vdwg.mxu0
  %2461 = vrot.lane.b32.xlu0 %v1002, 64
  %v2462 = vpop.permute.xlu0 %2461
  %2463 = vrot.lane.b32.xlu0 %v1004, 64
  %v2464 = vpop.permute.xlu0 %2463
  %2465 = vrot.lane.b32.xlu0 %v1006, 64
  %v2466 = vpop.permute.xlu0 %2465
  %2467 = vrot.lane.b32.xlu0 %v1008, 64
  %v2468 = vpop.permute.xlu0 %2467
  %v2474 = vsel %vm91, %v2282, 0
  %v2477 = vsel %vm91, %v2283, 0
  %v2480 = vsel %vm91, %v2284, 0
  %v2483 = vsel %vm91, %v2285, 0
  %2485 = vmatpush.msra.mxu0 0.0
  %2486 = vmatpush.msra.mxu0 0.0
  %2487 = vmatpush.msra.mxu0 0.0
  %2488 = vmatpush.msra.mxu0 0.0
  %2489 = vmatpush.msra.mxu0 0.0
  %2490 = vmatpush.msra.mxu0 0.0
  %2491 = vmatpush.msra.mxu0 0.0
  %2492 = vmatpush.msra.mxu0 0.0
  %2493 = vmatpush.msra.mxu0 0.0
  %2494 = vmatpush.msra.mxu0 0.0
  %2495 = vmatpush.msra.mxu0 0.0
  %2496 = vmatpush.msra.mxu0 0.0
  %2497 = vmatpush.msra.mxu0 %v2468
  %2498 = vmatpush.msra.mxu0 %v2466
  %2499 = vmatpush.msra.mxu0 %v2464
  %2500 = vmatpush.msra.mxu0 %v2462
  %2501 = vmatmul.f32.gmra.mxu0 %v2474
  %v2502 = vpop.f32.mrf.mxu0
  %v2503 = vadd.f32 0.0, %v2502
  %2504 = vmatmul.f32.gmra.mxu0 %v2477
  %v2505 = vpop.f32.mrf.mxu0
  %v2506 = vadd.f32 0.0, %v2505
  %2507 = vmatmul.f32.gmra.mxu0 %v2480
  %v2508 = vpop.f32.mrf.mxu0
  %v2509 = vadd.f32 0.0, %v2508
  %2510 = vmatmul.f32.gmra.mxu0 %v2483
  %v2511 = vpop.f32.mrf.mxu0
  %v2512 = vadd.f32 0.0, %v2511
  %2513 = vdwg.mxu0
  %2514 = vrot.lane.b32.xlu0 %v1046, 64
  %v2515 = vpop.permute.xlu0 %2514
  %2516 = vrot.lane.b32.xlu0 %v1048, 64
  %v2517 = vpop.permute.xlu0 %2516
  %2518 = vrot.lane.b32.xlu0 %v1050, 64
  %v2519 = vpop.permute.xlu0 %2518
  %2520 = vrot.lane.b32.xlu0 %v1052, 64
  %v2521 = vpop.permute.xlu0 %2520
  %v2527 = vsel %vm91, %v2286, 0
  %v2530 = vsel %vm91, %v2287, 0
  %v2533 = vsel %vm91, %v2288, 0
  %v2536 = vsel %vm91, %v2289, 0
  %2538 = vmatpush.msra.mxu0 0.0
  %2539 = vmatpush.msra.mxu0 0.0
  %2540 = vmatpush.msra.mxu0 0.0
  %2541 = vmatpush.msra.mxu0 0.0
  %2542 = vmatpush.msra.mxu0 0.0
  %2543 = vmatpush.msra.mxu0 0.0
  %2544 = vmatpush.msra.mxu0 0.0
  %2545 = vmatpush.msra.mxu0 0.0
  %2546 = vmatpush.msra.mxu0 0.0
  %2547 = vmatpush.msra.mxu0 0.0
  %2548 = vmatpush.msra.mxu0 0.0
  %2549 = vmatpush.msra.mxu0 0.0
  %2550 = vmatpush.msra.mxu0 %v2521
  %2551 = vmatpush.msra.mxu0 %v2519
  %2552 = vmatpush.msra.mxu0 %v2517
  %2553 = vmatpush.msra.mxu0 %v2515
  %2554 = vmatmul.f32.gmra.mxu0 %v2527
  %v2555 = vpop.f32.mrf.mxu0
  %v2556 = vadd.f32 0.0, %v2555
  %2557 = vmatmul.f32.gmra.mxu0 %v2530
  %v2558 = vpop.f32.mrf.mxu0
  %v2559 = vadd.f32 0.0, %v2558
  %2560 = vmatmul.f32.gmra.mxu0 %v2533
  %v2561 = vpop.f32.mrf.mxu0
  %v2562 = vadd.f32 0.0, %v2561
  %2563 = vmatmul.f32.gmra.mxu0 %v2536
  %v2564 = vpop.f32.mrf.mxu0
  %v2565 = vadd.f32 0.0, %v2564
  %2566 = vdwg.mxu0
  %2567 = vrot.lane.b32.xlu0 %v1054, 64
  %v2568 = vpop.permute.xlu0 %2567
  %2569 = vrot.lane.b32.xlu0 %v1056, 64
  %v2570 = vpop.permute.xlu0 %2569
  %2571 = vrot.lane.b32.xlu0 %v1058, 64
  %v2572 = vpop.permute.xlu0 %2571
  %2573 = vrot.lane.b32.xlu0 %v1060, 64
  %v2574 = vpop.permute.xlu0 %2573
  %v2580 = vsel %vm91, %v2290, 0
  %v2583 = vsel %vm91, %v2291, 0
  %v2586 = vsel %vm91, %v2292, 0
  %v2589 = vsel %vm91, %v2293, 0
  %2591 = vmatpush.msra.mxu0 0.0
  %2592 = vmatpush.msra.mxu0 0.0
  %2593 = vmatpush.msra.mxu0 0.0
  %2594 = vmatpush.msra.mxu0 0.0
  %2595 = vmatpush.msra.mxu0 0.0
  %2596 = vmatpush.msra.mxu0 0.0
  %2597 = vmatpush.msra.mxu0 0.0
  %2598 = vmatpush.msra.mxu0 0.0
  %2599 = vmatpush.msra.mxu0 0.0
  %2600 = vmatpush.msra.mxu0 0.0
  %2601 = vmatpush.msra.mxu0 0.0
  %2602 = vmatpush.msra.mxu0 0.0
  %2603 = vmatpush.msra.mxu0 %v2574
  %2604 = vmatpush.msra.mxu0 %v2572
  %2605 = vmatpush.msra.mxu0 %v2570
  %2606 = vmatpush.msra.mxu0 %v2568
  %2607 = vmatmul.f32.gmra.mxu0 %v2580
  %v2608 = vpop.f32.mrf.mxu0
  %v2609 = vadd.f32 0.0, %v2608
  %2610 = vmatmul.f32.gmra.mxu0 %v2583
  %v2611 = vpop.f32.mrf.mxu0
  %v2612 = vadd.f32 0.0, %v2611
  %2613 = vmatmul.f32.gmra.mxu0 %v2586
  %v2614 = vpop.f32.mrf.mxu0
  %v2615 = vadd.f32 0.0, %v2614
  %2616 = vmatmul.f32.gmra.mxu0 %v2589
  %v2617 = vpop.f32.mrf.mxu0
  %v2618 = vadd.f32 0.0, %v2617
  %2619 = vdwg.mxu0
  %2620 = vrot.lane.b32.xlu0 %v1062, 64
  %v2621 = vpop.permute.xlu0 %2620
  %2622 = vrot.lane.b32.xlu0 %v1064, 64
  %v2623 = vpop.permute.xlu0 %2622
  %2624 = vrot.lane.b32.xlu0 %v1066, 64
  %v2625 = vpop.permute.xlu0 %2624
  %2626 = vrot.lane.b32.xlu0 %v1068, 64
  %v2627 = vpop.permute.xlu0 %2626
  %v2633 = vsel %vm91, %v2294, 0
  %v2636 = vsel %vm91, %v2295, 0
  %v2639 = vsel %vm91, %v2296, 0
  %v2642 = vsel %vm91, %v2297, 0
  %2644 = vmatpush.msra.mxu0 0.0
  %2645 = vmatpush.msra.mxu0 0.0
  %2646 = vmatpush.msra.mxu0 0.0
  %2647 = vmatpush.msra.mxu0 0.0
  %2648 = vmatpush.msra.mxu0 0.0
  %2649 = vmatpush.msra.mxu0 0.0
  %2650 = vmatpush.msra.mxu0 0.0
  %2651 = vmatpush.msra.mxu0 0.0
  %2652 = vmatpush.msra.mxu0 0.0
  %2653 = vmatpush.msra.mxu0 0.0
  %2654 = vmatpush.msra.mxu0 0.0
  %2655 = vmatpush.msra.mxu0 0.0
  %2656 = vmatpush.msra.mxu0 %v2627
  %2657 = vmatpush.msra.mxu0 %v2625
  %2658 = vmatpush.msra.mxu0 %v2623
  %2659 = vmatpush.msra.mxu0 %v2621
  %2660 = vmatmul.f32.gmra.mxu0 %v2633
  %v2661 = vpop.f32.mrf.mxu0
  %v2662 = vadd.f32 0.0, %v2661
  %2663 = vmatmul.f32.gmra.mxu0 %v2636
  %v2664 = vpop.f32.mrf.mxu0
  %v2665 = vadd.f32 0.0, %v2664
  %2666 = vmatmul.f32.gmra.mxu0 %v2639
  %v2667 = vpop.f32.mrf.mxu0
  %v2668 = vadd.f32 0.0, %v2667
  %2669 = vmatmul.f32.gmra.mxu0 %v2642
  %v2670 = vpop.f32.mrf.mxu0
  %v2671 = vadd.f32 0.0, %v2670
  %2672 = vdwg.mxu0
  %2673 = vrot.lane.b32.xlu0 %v1070, 64
  %v2674 = vpop.permute.xlu0 %2673
  %2675 = vrot.lane.b32.xlu0 %v1072, 64
  %v2676 = vpop.permute.xlu0 %2675
  %2677 = vrot.lane.b32.xlu0 %v1074, 64
  %v2678 = vpop.permute.xlu0 %2677
  %2679 = vrot.lane.b32.xlu0 %v1076, 64
  %v2680 = vpop.permute.xlu0 %2679
  %v2686 = vsel %vm91, %v2298, 0
  %v2689 = vsel %vm91, %v2299, 0
  %v2692 = vsel %vm91, %v2300, 0
  %v2695 = vsel %vm91, %v2301, 0
  %2697 = vmatpush.msra.mxu0 0.0
  %2698 = vmatpush.msra.mxu0 0.0
  %2699 = vmatpush.msra.mxu0 0.0
  %2700 = vmatpush.msra.mxu0 0.0
  %2701 = vmatpush.msra.mxu0 0.0
  %2702 = vmatpush.msra.mxu0 0.0
  %2703 = vmatpush.msra.mxu0 0.0
  %2704 = vmatpush.msra.mxu0 0.0
  %2705 = vmatpush.msra.mxu0 0.0
  %2706 = vmatpush.msra.mxu0 0.0
  %2707 = vmatpush.msra.mxu0 0.0
  %2708 = vmatpush.msra.mxu0 0.0
  %2709 = vmatpush.msra.mxu0 %v2680
  %2710 = vmatpush.msra.mxu0 %v2678
  %2711 = vmatpush.msra.mxu0 %v2676
  %2712 = vmatpush.msra.mxu0 %v2674
  %2713 = vmatmul.f32.gmra.mxu0 %v2686
  %v2714 = vpop.f32.mrf.mxu0
  %v2715 = vadd.f32 0.0, %v2714
  %2716 = vmatmul.f32.gmra.mxu0 %v2689
  %v2717 = vpop.f32.mrf.mxu0
  %v2718 = vadd.f32 0.0, %v2717
  %2719 = vmatmul.f32.gmra.mxu0 %v2692
  %v2720 = vpop.f32.mrf.mxu0
  %v2721 = vadd.f32 0.0, %v2720
  %2722 = vmatmul.f32.gmra.mxu0 %v2695
  %v2723 = vpop.f32.mrf.mxu0
  %v2724 = vadd.f32 0.0, %v2723
  %2725 = vdwg.mxu0
  %2730 = vrot.lane.b32.xlu0 %v2397, 8
  %v2731 = vpop.permute.xlu0 %2730
  %2732 = vrot.lane.b32.xlu0 %v2400, 8
  %v2733 = vpop.permute.xlu0 %2732
  %2734 = vrot.lane.b32.xlu0 %v2403, 8
  %v2735 = vpop.permute.xlu0 %2734
  %2736 = vrot.lane.b32.xlu0 %v2406, 8
  %v2737 = vpop.permute.xlu0 %2736
  %2746 = vrot.lane.b32.xlu0 %v2450, 16
  %v2747 = vpop.permute.xlu0 %2746
  %2748 = vrot.lane.b32.xlu0 %v2453, 16
  %v2749 = vpop.permute.xlu0 %2748
  %2750 = vrot.lane.b32.xlu0 %v2456, 16
  %v2751 = vpop.permute.xlu0 %2750
  %2752 = vrot.lane.b32.xlu0 %v2459, 16
  %v2753 = vpop.permute.xlu0 %2752
  %2762 = vrot.lane.b32.xlu0 %v2503, 24
  %v2763 = vpop.permute.xlu0 %2762
  %2764 = vrot.lane.b32.xlu0 %v2506, 24
  %v2765 = vpop.permute.xlu0 %2764
  %2766 = vrot.lane.b32.xlu0 %v2509, 24
  %v2767 = vpop.permute.xlu0 %2766
  %2768 = vrot.lane.b32.xlu0 %v2512, 24
  %v2769 = vpop.permute.xlu0 %2768
  %2778 = vrot.lane.b32.xlu0 %v2556, 32
  %v2779 = vpop.permute.xlu0 %2778
  %2780 = vrot.lane.b32.xlu0 %v2559, 32
  %v2781 = vpop.permute.xlu0 %2780
  %2782 = vrot.lane.b32.xlu0 %v2562, 32
  %v2783 = vpop.permute.xlu0 %2782
  %2784 = vrot.lane.b32.xlu0 %v2565, 32
  %v2785 = vpop.permute.xlu0 %2784
  %2794 = vrot.lane.b32.xlu0 %v2609, 40
  %v2795 = vpop.permute.xlu0 %2794
  %2796 = vrot.lane.b32.xlu0 %v2612, 40
  %v2797 = vpop.permute.xlu0 %2796
  %2798 = vrot.lane.b32.xlu0 %v2615, 40
  %v2799 = vpop.permute.xlu0 %2798
  %2800 = vrot.lane.b32.xlu0 %v2618, 40
  %v2801 = vpop.permute.xlu0 %2800
  %2810 = vrot.lane.b32.xlu0 %v2662, 48
  %v2811 = vpop.permute.xlu0 %2810
  %2812 = vrot.lane.b32.xlu0 %v2665, 48
  %v2813 = vpop.permute.xlu0 %2812
  %2814 = vrot.lane.b32.xlu0 %v2668, 48
  %v2815 = vpop.permute.xlu0 %2814
  %2816 = vrot.lane.b32.xlu0 %v2671, 48
  %v2817 = vpop.permute.xlu0 %2816
  %2826 = vrot.lane.b32.xlu0 %v2715, 56
  %v2827 = vpop.permute.xlu0 %2826
  %2828 = vrot.lane.b32.xlu0 %v2718, 56
  %v2829 = vpop.permute.xlu0 %2828
  %2830 = vrot.lane.b32.xlu0 %v2721, 56
  %v2831 = vpop.permute.xlu0 %2830
  %2832 = vrot.lane.b32.xlu0 %v2724, 56
  %v2833 = vpop.permute.xlu0 %2832
  %v2838 = vsel %vm1085, %v2344, %v2731
  %v2839 = vsel %vm1085, %v2347, %v2733
  %v2840 = vsel %vm1085, %v2350, %v2735
  %v2841 = vsel %vm1085, %v2353, %v2737
  %vm2842 = vcmask 130048
  %v2843 = vsel %vm2842, %v2838, %v2747
  %v2844 = vsel %vm2842, %v2839, %v2749
  %v2845 = vsel %vm2842, %v2840, %v2751
  %v2846 = vsel %vm2842, %v2841, %v2753
  %vm2847 = vcmask 195584
  %v2848 = vsel %vm2847, %v2843, %v2763
  %v2849 = vsel %vm2847, %v2844, %v2765
  %v2850 = vsel %vm2847, %v2845, %v2767
  %v2851 = vsel %vm2847, %v2846, %v2769
  %v2852 = vsel %vm91, %v2848, %v2779
  %v2853 = vsel %vm91, %v2849, %v2781
  %v2854 = vsel %vm91, %v2850, %v2783
  %v2855 = vsel %vm91, %v2851, %v2785
  %vm2856 = vcmask 326656
  %v2857 = vsel %vm2856, %v2852, %v2795
  %v2858 = vsel %vm2856, %v2853, %v2797
  %v2859 = vsel %vm2856, %v2854, %v2799
  %v2860 = vsel %vm2856, %v2855, %v2801
  %vm2861 = vcmask 392192
  %v2862 = vsel %vm2861, %v2857, %v2811
  %v2863 = vsel %vm2861, %v2858, %v2813
  %v2864 = vsel %vm2861, %v2859, %v2815
  %v2865 = vsel %vm2861, %v2860, %v2817
  %vm2866 = vcmask 457728
  %v2867 = vsel %vm2866, %v2862, %v2827
  %v2868 = vsel %vm2866, %v2863, %v2829
  %v2869 = vsel %vm2866, %v2864, %v2831
  %v2870 = vsel %vm2866, %v2865, %v2833
  %v2871 = vld [vmem:[%s5] sm:$0xff]
  %v2872 = vld [vmem:[%s5 + $0x8] sm:$0xff]
  %v2873 = vld [vmem:[%s5 + $0x10] sm:$0xff]
  %v2874 = vld [vmem:[%s5 + $0x18] sm:$0xff]
  %v2875 = vld [vmem:[%s5 + $0x20] sm:$0xff]
  %v2876 = vld [vmem:[%s5 + $0x28] sm:$0xff]
  %v2877 = vld [vmem:[%s5 + $0x30] sm:$0xff]
  %v2878 = vld [vmem:[%s5 + $0x38] sm:$0xff]
  %v2879 = vperm.slane %v53, 2
  %v2881 = vsel %vm137, %v2867, 0
  %v2884 = vsel %vm137, %v2868, 0
  %v2887 = vsel %vm137, %v2869, 0
  %v2890 = vsel %vm137, %v2870, 0
  %2892 = vmatpush.msra.mxu0 0.0
  %2893 = vmatpush.msra.mxu0 0.0
  %2894 = vmatpush.msra.mxu0 0.0
  %2895 = vmatpush.msra.mxu0 0.0
  %2896 = vmatpush.msra.mxu0 0.0
  %2897 = vmatpush.msra.mxu0 0.0
  %2898 = vmatpush.msra.mxu0 0.0
  %2899 = vmatpush.msra.mxu0 0.0
  %2900 = vmatpush.msra.mxu0 %v2878
  %2901 = vmatpush.msra.mxu0 %v2877
  %2902 = vmatpush.msra.mxu0 %v2876
  %2903 = vmatpush.msra.mxu0 %v2875
  %2904 = vmatpush.msra.mxu0 %v2874
  %2905 = vmatpush.msra.mxu0 %v2873
  %2906 = vmatpush.msra.mxu0 %v2872
  %2907 = vmatpush.msra.mxu0 %v2871
  %2908 = vmatmul.f32.gmra.mxu0 %v2881
  %v2909 = vpop.f32.mrf.mxu0
  %v2910 = vadd.f32 %v2879, %v2909
  %2911 = vmatmul.f32.gmra.mxu0 %v2884
  %v2912 = vpop.f32.mrf.mxu0
  %v2913 = vadd.f32 %v2879, %v2912
  %2914 = vmatmul.f32.gmra.mxu0 %v2887
  %v2915 = vpop.f32.mrf.mxu0
  %v2916 = vadd.f32 %v2879, %v2915
  %2917 = vmatmul.f32.gmra.mxu0 %v2890
  %v2918 = vpop.f32.mrf.mxu0
  %v2919 = vadd.f32 %v2879, %v2918
  %2920 = vdwg.mxu0
  %v2921 = vadd.f32 %v2910, %v795
  %v2922 = vadd.f32 %v2913, %v796
  %v2923 = vadd.f32 %v2916, %v797
  %v2924 = vadd.f32 %v2919, %v798
  %s2925 = scalar_lea.vmem %s1, 64
  %v2926 = vld [vmem:[%s2925] sm:$0xff]
  %v2927 = vld [vmem:[%s2925 + $0x8] sm:$0xff]
  %v2928 = vld [vmem:[%s2925 + $0x10] sm:$0xff]
  %v2929 = vld [vmem:[%s2925 + $0x18] sm:$0xff]
  %s2930 = scalar_lea.vmem %s1, 96
  %v2931 = vld [vmem:[%s2930] sm:$0xff]
  %v2932 = vld [vmem:[%s2930 + $0x8] sm:$0xff]
  %v2933 = vld [vmem:[%s2930 + $0x10] sm:$0xff]
  %v2934 = vld [vmem:[%s2930 + $0x18] sm:$0xff]
  %s2935 = scalar_lea.vmem %s3, 32
  %v2936 = vld [vmem:[%s2935] sm:$0xff]
  %v2937 = vld [vmem:[%s2935 + $0x8] sm:$0xff]
  %v2938 = vld [vmem:[%s2935 + $0x10] sm:$0xff]
  %v2939 = vld [vmem:[%s2935 + $0x18] sm:$0xff]
  %2940 = vset.pattern.permute.xlu0 6
  %2941 = vperm.xlu0 %2940, %v49
  %v2942 = vpop.permute.xlu0 %2941
  %2944 = vset.pattern.permute.xlu0 6
  %2945 = vperm.xlu0 %2944, %v50
  %v2946 = vpop.permute.xlu0 %2945
  %2948 = vset.pattern.permute.xlu0 6
  %2949 = vperm.xlu0 %2948, %v51
  %v2950 = vpop.permute.xlu0 %2949
  %2952 = vset.pattern.permute.xlu0 6
  %2953 = vperm.xlu0 %2952, %v52
  %v2954 = vpop.permute.xlu0 %2953
  %v2957 = vsel %vm91, %v2926, 0
  %v2960 = vsel %vm91, %v2927, 0
  %v2963 = vsel %vm91, %v2928, 0
  %v2966 = vsel %vm91, %v2929, 0
  %2968 = vmatpush.msra.mxu0 0.0
  %2969 = vmatpush.msra.mxu0 0.0
  %2970 = vmatpush.msra.mxu0 0.0
  %2971 = vmatpush.msra.mxu0 0.0
  %2972 = vmatpush.msra.mxu0 0.0
  %2973 = vmatpush.msra.mxu0 0.0
  %2974 = vmatpush.msra.mxu0 0.0
  %2975 = vmatpush.msra.mxu0 0.0
  %2976 = vmatpush.msra.mxu0 0.0
  %2977 = vmatpush.msra.mxu0 0.0
  %2978 = vmatpush.msra.mxu0 0.0
  %2979 = vmatpush.msra.mxu0 0.0
  %2980 = vmatpush.msra.mxu0 %v2924
  %2981 = vmatpush.msra.mxu0 %v2923
  %2982 = vmatpush.msra.mxu0 %v2922
  %2983 = vmatpush.msra.mxu0 %v2921
  %2984 = vmatmul.f32.gmra.mxu0 %v2957
  %v2985 = vpop.f32.mrf.mxu0
  %v2986 = vadd.f32 %v2942, %v2985
  %2987 = vmatmul.f32.gmra.mxu0 %v2960
  %v2988 = vpop.f32.mrf.mxu0
  %v2989 = vadd.f32 %v2946, %v2988
  %2990 = vmatmul.f32.gmra.mxu0 %v2963
  %v2991 = vpop.f32.mrf.mxu0
  %v2992 = vadd.f32 %v2950, %v2991
  %2993 = vmatmul.f32.gmra.mxu0 %v2966
  %v2994 = vpop.f32.mrf.mxu0
  %v2995 = vadd.f32 %v2954, %v2994
  %2996 = vdwg.mxu0
  %v2997 = vadd.f32 %v2986, %v2936
  %v2998 = vadd.f32 %v2989, %v2937
  %v2999 = vadd.f32 %v2992, %v2938
  %v3000 = vadd.f32 %v2995, %v2939
  %v3001 = vsel %vm137, %v2997, 0.0
  %v3002 = vsel %vm137, %v2998, 0.0
  %v3003 = vadd.f32 %v3001, %v3002
  %v3004 = vsel %vm137, %v2999, 0.0
  %v3005 = vadd.f32 %v3003, %v3004
  %v3006 = vsel %vm137, %v3000, 0.0
  %v3007 = vadd.f32 %v3005, %v3006
  %v3008 = vrot.slane %v3007, 4
  %v3009 = vadd.f32 %v3007, %v3008
  %v3010 = vrot.slane %v3009, 2
  %v3011 = vadd.f32 %v3009, %v3010
  %v3012 = vrot.slane %v3011, 1
  %v3013 = vadd.f32 %v3011, %v3012
  %v3014 = vmul.f32 %v2997, %v2997
  %v3015 = vmul.f32 %v2998, %v2998
  %v3016 = vmul.f32 %v2999, %v2999
  %v3017 = vmul.f32 %v3000, %v3000
  %v3018 = vsel %vm137, %v3014, 0.0
  %v3019 = vsel %vm137, %v3015, 0.0
  %v3020 = vadd.f32 %v3018, %v3019
  %v3021 = vsel %vm137, %v3016, 0.0
  %v3022 = vadd.f32 %v3020, %v3021
  %v3023 = vsel %vm137, %v3017, 0.0
  %v3024 = vadd.f32 %v3022, %v3023
  %v3025 = vrot.slane %v3024, 4
  %v3026 = vadd.f32 %v3024, %v3025
  %v3027 = vrot.slane %v3026, 2
  %v3028 = vadd.f32 %v3026, %v3027
  %v3029 = vrot.slane %v3028, 1
  %v3030 = vadd.f32 %v3028, %v3029
  %v3031 = vsel %vm168, %v3013, %v3030
  %v3033 = vsel %vm137, %v3031, 0
  %3035 = vmatpush.msra.mxu0 0.0
  %3036 = vmatpush.msra.mxu0 0.0
  %3037 = vmatpush.msra.mxu0 0.0
  %3038 = vmatpush.msra.mxu0 0.0
  %3039 = vmatpush.msra.mxu0 0.0
  %3040 = vmatpush.msra.mxu0 0.0
  %3041 = vmatpush.msra.mxu0 0.0
  %3042 = vmatpush.msra.mxu0 0.0
  %3043 = vmatpush.msra.mxu0 %v39
  %3044 = vmatpush.msra.mxu0 %v38
  %3045 = vmatpush.msra.mxu0 %v37
  %3046 = vmatpush.msra.mxu0 %v36
  %3047 = vmatpush.msra.mxu0 %v35
  %3048 = vmatpush.msra.mxu0 %v34
  %3049 = vmatpush.msra.mxu0 %v33
  %3050 = vmatpush.msra.mxu0 %v32
  %3051 = vmatmul.f32.gmra.mxu0 %v3033
  %v3052 = vpop.f32.mrf.mxu0
  %v3053 = vadd.f32 0.0, %v3052
  %3054 = vdwg.mxu0
  %v3055 = vmul.f32 %v3053, %v3053
  %v3057 = vrot.slane %v3055, 7
  %v3059 = vsub.f32 %v3053, %v3057
  %v3060 = vperm.slane %v3053, 0
  %v3061 = vsub.f32 %v2997, %v3060
  %v3062 = vsub.f32 %v2998, %v3060
  %v3063 = vsub.f32 %v2999, %v3060
  %v3064 = vsub.f32 %v3000, %v3060
  %v3065 = vadd.f32 %v3059, 1e-05
  %v3066 = vrsqrt.pop %v3065
  %v3067 = vmul.f32 %v3066, %v3065
  %v3068 = vmul.f32 %v3067, %v3066
  %v3069 = vmul.f32 0.5, %v3068
  %v3070 = vsub.f32 1.5, %v3069
  %v3071 = vmul.f32 %v3066, %v3070
  %vm3072 = vweird.f32 %v3065
  %vm3073 = vweird.f32 %v3066
  %vm3074 = vmor %vm3072, %vm3073
  %v3075 = vsel %vm3074, %v3066, %v3071
  %v3076 = vperm.slane %v3075, 1
  %v3077 = vmul.f32 %v3061, %v3076
  %v3078 = vmul.f32 %v3062, %v3076
  %v3079 = vmul.f32 %v3063, %v3076
  %v3080 = vmul.f32 %v3064, %v3076
  %3081 = vset.pattern.permute.xlu0 7
  %3082 = vperm.xlu0 %3081, %v49
  %v3083 = vpop.permute.xlu0 %3082
  %3085 = vset.pattern.permute.xlu0 7
  %3086 = vperm.xlu0 %3085, %v50
  %v3087 = vpop.permute.xlu0 %3086
  %3089 = vset.pattern.permute.xlu0 7
  %3090 = vperm.xlu0 %3089, %v51
  %v3091 = vpop.permute.xlu0 %3090
  %3093 = vset.pattern.permute.xlu0 7
  %3094 = vperm.xlu0 %3093, %v52
  %v3095 = vpop.permute.xlu0 %3094
  %v3097 = vmul.f32 %v3077, %v3083
  %v3098 = vmul.f32 %v3078, %v3087
  %v3099 = vmul.f32 %v3079, %v3091
  %v3100 = vmul.f32 %v3080, %v3095
  %3101 = vset.pattern.permute.xlu0 8
  %3102 = vperm.xlu0 %3101, %v49
  %v3103 = vpop.permute.xlu0 %3102
  %3105 = vset.pattern.permute.xlu0 8
  %3106 = vperm.xlu0 %3105, %v50
  %v3107 = vpop.permute.xlu0 %3106
  %3109 = vset.pattern.permute.xlu0 8
  %3110 = vperm.xlu0 %3109, %v51
  %v3111 = vpop.permute.xlu0 %3110
  %3113 = vset.pattern.permute.xlu0 8
  %3114 = vperm.xlu0 %3113, %v52
  %v3115 = vpop.permute.xlu0 %3114
  %v3117 = vadd.f32 %v3097, %v3103
  %v3118 = vadd.f32 %v3098, %v3107
  %v3119 = vadd.f32 %v3099, %v3111
  %v3120 = vadd.f32 %v3100, %v3115
  %v3121 = vmul.f32 %v3117, 0.5
  %v3122 = vmul.f32 %v3118, 0.5
  %v3123 = vmul.f32 %v3119, 0.5
  %v3124 = vmul.f32 %v3120, 0.5
  %v3125 = vmul.f32 %v3117, %v269
  %v3126 = vmul.f32 %v3118, %v269
  %v3127 = vmul.f32 %v3119, %v269
  %v3128 = vmul.f32 %v3120, %v269
  %v3129 = vmul.f32 %v3125, %v3125
  %v3130 = vmin.f32 16.0, %v3129
  %v3131 = vmul.f32 %v3130, 2.1237322e-06
  %v3132 = vadd.f32 %v3131, 0.00028619796
  %v3133 = vmul.f32 %v3130, %v3132
  %v3134 = vadd.f32 %v3133, 0.0036580483
  %v3135 = vmul.f32 %v3130, %v3134
  %v3136 = vadd.f32 %v3135, 0.05243302
  %v3137 = vmul.f32 %v3130, %v3136
  %v3138 = vadd.f32 %v3137, 0.18741608
  %v3139 = vmul.f32 %v3130, %v3138
  %v3140 = vadd.f32 %v3139, 1.1283791
  %v3141 = vmul.f32 %v3125, %v3140
  %v3142 = vmul.f32 %v3130, 3.8918573e-05
  %v3143 = vadd.f32 %v3142, 0.001143296
  %v3144 = vmul.f32 %v3130, %v3143
  %v3145 = vadd.f32 %v3144, 0.014752088
  %v3146 = vmul.f32 %v3130, %v3145
  %v3147 = vadd.f32 %v3146, 0.112945676
  %v3148 = vmul.f32 %v3130, %v3147
  %v3149 = vadd.f32 %v3148, 0.4994258
  %v3150 = vmul.f32 %v3130, %v3149
  %v3151 = vadd.f32 %v3150, 1.0
  %v3152 = vrcp.pop %v3151
  %v3153 = vmul.f32 %v3151, %v3152
  %v3154 = vsub.f32 1.0, %v3153
  %v3155 = vmul.f32 %v3152, %v3154
  %v3156 = vadd.f32 %v3152, %v3155
  %vm3157 = vweird.f32 %v3151
  %vm3158 = vweird.f32 %v3152
  %vm3159 = vmor %vm3157, %vm3158
  %v3160 = vsel %vm3159, %v3152, %v3156
  %v3161 = vand.u32 2147483647, %v3151
  %vm3162 = vcmp.eq.f32.partialorder %v3161, 8.507059e+37
  %v3163 = vand.u32 %v3151, 2147483648
  %v3164 = vor.u32 1.1754944e-38, %v3163
  %v3165 = vsel %vm3162, %v3164, %v3160
  %v3166 = vmul.f32 %v3141, %v3165
  %v3167 = vmin.f32 %v3166, 1.0
  %v3168 = vmax.f32 %v3167, -1.0
  %v3169 = vmul.f32 %v3126, %v3126
  %v3170 = vmin.f32 16.0, %v3169
  %v3171 = vmul.f32 %v3170, 2.1237322e-06
  %v3172 = vadd.f32 %v3171, 0.00028619796
  %v3173 = vmul.f32 %v3170, %v3172
  %v3174 = vadd.f32 %v3173, 0.0036580483
  %v3175 = vmul.f32 %v3170, %v3174
  %v3176 = vadd.f32 %v3175, 0.05243302
  %v3177 = vmul.f32 %v3170, %v3176
  %v3178 = vadd.f32 %v3177, 0.18741608
  %v3179 = vmul.f32 %v3170, %v3178
  %v3180 = vadd.f32 %v3179, 1.1283791
  %v3181 = vmul.f32 %v3126, %v3180
  %v3182 = vmul.f32 %v3170, 3.8918573e-05
  %v3183 = vadd.f32 %v3182, 0.001143296
  %v3184 = vmul.f32 %v3170, %v3183
  %v3185 = vadd.f32 %v3184, 0.014752088
  %v3186 = vmul.f32 %v3170, %v3185
  %v3187 = vadd.f32 %v3186, 0.112945676
  %v3188 = vmul.f32 %v3170, %v3187
  %v3189 = vadd.f32 %v3188, 0.4994258
  %v3190 = vmul.f32 %v3170, %v3189
  %v3191 = vadd.f32 %v3190, 1.0
  %v3192 = vrcp.pop %v3191
  %v3193 = vmul.f32 %v3191, %v3192
  %v3194 = vsub.f32 1.0, %v3193
  %v3195 = vmul.f32 %v3192, %v3194
  %v3196 = vadd.f32 %v3192, %v3195
  %vm3197 = vweird.f32 %v3191
  %vm3198 = vweird.f32 %v3192
  %vm3199 = vmor %vm3197, %vm3198
  %v3200 = vsel %vm3199, %v3192, %v3196
  %v3201 = vand.u32 2147483647, %v3191
  %vm3202 = vcmp.eq.f32.partialorder %v3201, 8.507059e+37
  %v3203 = vand.u32 %v3191, 2147483648
  %v3204 = vor.u32 1.1754944e-38, %v3203
  %v3205 = vsel %vm3202, %v3204, %v3200
  %v3206 = vmul.f32 %v3181, %v3205
  %v3207 = vmin.f32 %v3206, 1.0
  %v3208 = vmax.f32 %v3207, -1.0
  %v3209 = vmul.f32 %v3127, %v3127
  %v3210 = vmin.f32 16.0, %v3209
  %v3211 = vmul.f32 %v3210, 2.1237322e-06
  %v3212 = vadd.f32 %v3211, 0.00028619796
  %v3213 = vmul.f32 %v3210, %v3212
  %v3214 = vadd.f32 %v3213, 0.0036580483
  %v3215 = vmul.f32 %v3210, %v3214
  %v3216 = vadd.f32 %v3215, 0.05243302
  %v3217 = vmul.f32 %v3210, %v3216
  %v3218 = vadd.f32 %v3217, 0.18741608
  %v3219 = vmul.f32 %v3210, %v3218
  %v3220 = vadd.f32 %v3219, 1.1283791
  %v3221 = vmul.f32 %v3127, %v3220
  %v3222 = vmul.f32 %v3210, 3.8918573e-05
  %v3223 = vadd.f32 %v3222, 0.001143296
  %v3224 = vmul.f32 %v3210, %v3223
  %v3225 = vadd.f32 %v3224, 0.014752088
  %v3226 = vmul.f32 %v3210, %v3225
  %v3227 = vadd.f32 %v3226, 0.112945676
  %v3228 = vmul.f32 %v3210, %v3227
  %v3229 = vadd.f32 %v3228, 0.4994258
  %v3230 = vmul.f32 %v3210, %v3229
  %v3231 = vadd.f32 %v3230, 1.0
  %v3232 = vrcp.pop %v3231
  %v3233 = vmul.f32 %v3231, %v3232
  %v3234 = vsub.f32 1.0, %v3233
  %v3235 = vmul.f32 %v3232, %v3234
  %v3236 = vadd.f32 %v3232, %v3235
  %vm3237 = vweird.f32 %v3231
  %vm3238 = vweird.f32 %v3232
  %vm3239 = vmor %vm3237, %vm3238
  %v3240 = vsel %vm3239, %v3232, %v3236
  %v3241 = vand.u32 2147483647, %v3231
  %vm3242 = vcmp.eq.f32.partialorder %v3241, 8.507059e+37
  %v3243 = vand.u32 %v3231, 2147483648
  %v3244 = vor.u32 1.1754944e-38, %v3243
  %v3245 = vsel %vm3242, %v3244, %v3240
  %v3246 = vmul.f32 %v3221, %v3245
  %v3247 = vmin.f32 %v3246, 1.0
  %v3248 = vmax.f32 %v3247, -1.0
  %v3249 = vmul.f32 %v3128, %v3128
  %v3250 = vmin.f32 16.0, %v3249
  %v3251 = vmul.f32 %v3250, 2.1237322e-06
  %v3252 = vadd.f32 %v3251, 0.00028619796
  %v3253 = vmul.f32 %v3250, %v3252
  %v3254 = vadd.f32 %v3253, 0.0036580483
  %v3255 = vmul.f32 %v3250, %v3254
  %v3256 = vadd.f32 %v3255, 0.05243302
  %v3257 = vmul.f32 %v3250, %v3256
  %v3258 = vadd.f32 %v3257, 0.18741608
  %v3259 = vmul.f32 %v3250, %v3258
  %v3260 = vadd.f32 %v3259, 1.1283791
  %v3261 = vmul.f32 %v3128, %v3260
  %v3262 = vmul.f32 %v3250, 3.8918573e-05
  %v3263 = vadd.f32 %v3262, 0.001143296
  %v3264 = vmul.f32 %v3250, %v3263
  %v3265 = vadd.f32 %v3264, 0.014752088
  %v3266 = vmul.f32 %v3250, %v3265
  %v3267 = vadd.f32 %v3266, 0.112945676
  %v3268 = vmul.f32 %v3250, %v3267
  %v3269 = vadd.f32 %v3268, 0.4994258
  %v3270 = vmul.f32 %v3250, %v3269
  %v3271 = vadd.f32 %v3270, 1.0
  %v3272 = vrcp.pop %v3271
  %v3273 = vmul.f32 %v3271, %v3272
  %v3274 = vsub.f32 1.0, %v3273
  %v3275 = vmul.f32 %v3272, %v3274
  %v3276 = vadd.f32 %v3272, %v3275
  %vm3277 = vweird.f32 %v3271
  %vm3278 = vweird.f32 %v3272
  %vm3279 = vmor %vm3277, %vm3278
  %v3280 = vsel %vm3279, %v3272, %v3276
  %v3281 = vand.u32 2147483647, %v3271
  %vm3282 = vcmp.eq.f32.partialorder %v3281, 8.507059e+37
  %v3283 = vand.u32 %v3271, 2147483648
  %v3284 = vor.u32 1.1754944e-38, %v3283
  %v3285 = vsel %vm3282, %v3284, %v3280
  %v3286 = vmul.f32 %v3261, %v3285
  %v3287 = vmin.f32 %v3286, 1.0
  %v3288 = vmax.f32 %v3287, -1.0
  %v3289 = vadd.f32 %v3168, 1.0
  %v3290 = vadd.f32 %v3208, 1.0
  %v3291 = vadd.f32 %v3248, 1.0
  %v3292 = vadd.f32 %v3288, 1.0
  %v3293 = vmul.f32 %v3121, %v3289
  %v3294 = vmul.f32 %v3122, %v3290
  %v3295 = vmul.f32 %v3123, %v3291
  %v3296 = vmul.f32 %v3124, %v3292
  %3297 = vset.pattern.permute.xlu0 9
  %3298 = vperm.xlu0 %3297, %v49
  %v3299 = vpop.permute.xlu0 %3298
  %3301 = vset.pattern.permute.xlu0 9
  %3302 = vperm.xlu0 %3301, %v50
  %v3303 = vpop.permute.xlu0 %3302
  %3305 = vset.pattern.permute.xlu0 9
  %3306 = vperm.xlu0 %3305, %v51
  %v3307 = vpop.permute.xlu0 %3306
  %3309 = vset.pattern.permute.xlu0 9
  %3310 = vperm.xlu0 %3309, %v52
  %v3311 = vpop.permute.xlu0 %3310
  %v3314 = vsel %vm91, %v2931, 0
  %v3317 = vsel %vm91, %v2932, 0
  %v3320 = vsel %vm91, %v2933, 0
  %v3323 = vsel %vm91, %v2934, 0
  %3325 = vmatpush.msra.mxu0 0.0
  %3326 = vmatpush.msra.mxu0 0.0
  %3327 = vmatpush.msra.mxu0 0.0
  %3328 = vmatpush.msra.mxu0 0.0
  %3329 = vmatpush.msra.mxu0 0.0
  %3330 = vmatpush.msra.mxu0 0.0
  %3331 = vmatpush.msra.mxu0 0.0
  %3332 = vmatpush.msra.mxu0 0.0
  %3333 = vmatpush.msra.mxu0 0.0
  %3334 = vmatpush.msra.mxu0 0.0
  %3335 = vmatpush.msra.mxu0 0.0
  %3336 = vmatpush.msra.mxu0 0.0
  %3337 = vmatpush.msra.mxu0 %v3296
  %3338 = vmatpush.msra.mxu0 %v3295
  %3339 = vmatpush.msra.mxu0 %v3294
  %3340 = vmatpush.msra.mxu0 %v3293
  %3341 = vmatmul.f32.gmra.mxu0 %v3314
  %v3342 = vpop.f32.mrf.mxu0
  %v3343 = vadd.f32 %v3299, %v3342
  %3344 = vmatmul.f32.gmra.mxu0 %v3317
  %v3345 = vpop.f32.mrf.mxu0
  %v3346 = vadd.f32 %v3303, %v3345
  %3347 = vmatmul.f32.gmra.mxu0 %v3320
  %v3348 = vpop.f32.mrf.mxu0
  %v3349 = vadd.f32 %v3307, %v3348
  %3350 = vmatmul.f32.gmra.mxu0 %v3323
  %v3351 = vpop.f32.mrf.mxu0
  %v3352 = vadd.f32 %v3311, %v3351
  %3353 = vdwg.mxu0
  %v3354 = vsel %vm137, %v3343, 0.0
  %v3355 = vsel %vm137, %v3346, 0.0
  %v3356 = vadd.f32 %v3354, %v3355
  %v3357 = vsel %vm137, %v3349, 0.0
  %v3358 = vadd.f32 %v3356, %v3357
  %v3359 = vsel %vm137, %v3352, 0.0
  %v3360 = vadd.f32 %v3358, %v3359
  %v3361 = vrot.slane %v3360, 4
  %v3362 = vadd.f32 %v3360, %v3361
  %v3363 = vrot.slane %v3362, 2
  %v3364 = vadd.f32 %v3362, %v3363
  %v3365 = vrot.slane %v3364, 1
  %v3366 = vadd.f32 %v3364, %v3365
  %v3367 = vmul.f32 %v3343, %v3343
  %v3368 = vmul.f32 %v3346, %v3346
  %v3369 = vmul.f32 %v3349, %v3349
  %v3370 = vmul.f32 %v3352, %v3352
  %v3371 = vsel %vm137, %v3367, 0.0
  %v3372 = vsel %vm137, %v3368, 0.0
  %v3373 = vadd.f32 %v3371, %v3372
  %v3374 = vsel %vm137, %v3369, 0.0
  %v3375 = vadd.f32 %v3373, %v3374
  %v3376 = vsel %vm137, %v3370, 0.0
  %v3377 = vadd.f32 %v3375, %v3376
  %v3378 = vrot.slane %v3377, 4
  %v3379 = vadd.f32 %v3377, %v3378
  %v3380 = vrot.slane %v3379, 2
  %v3381 = vadd.f32 %v3379, %v3380
  %v3382 = vrot.slane %v3381, 1
  %v3383 = vadd.f32 %v3381, %v3382
  %v3384 = vsel %vm168, %v3366, %v3383
  %v3386 = vsel %vm137, %v3384, 0
  %3388 = vmatpush.msra.mxu0 0.0
  %3389 = vmatpush.msra.mxu0 0.0
  %3390 = vmatpush.msra.mxu0 0.0
  %3391 = vmatpush.msra.mxu0 0.0
  %3392 = vmatpush.msra.mxu0 0.0
  %3393 = vmatpush.msra.mxu0 0.0
  %3394 = vmatpush.msra.mxu0 0.0
  %3395 = vmatpush.msra.mxu0 0.0
  %3396 = vmatpush.msra.mxu0 %v39
  %3397 = vmatpush.msra.mxu0 %v38
  %3398 = vmatpush.msra.mxu0 %v37
  %3399 = vmatpush.msra.mxu0 %v36
  %3400 = vmatpush.msra.mxu0 %v35
  %3401 = vmatpush.msra.mxu0 %v34
  %3402 = vmatpush.msra.mxu0 %v33
  %3403 = vmatpush.msra.mxu0 %v32
  %3404 = vmatmul.f32.gmra.mxu0 %v3386
  %v3405 = vpop.f32.mrf.mxu0
  %v3406 = vadd.f32 0.0, %v3405
  %3407 = vdwg.mxu0
  %v3408 = vmul.f32 %v3406, %v3406
  %v3410 = vrot.slane %v3408, 7
  %v3412 = vsub.f32 %v3406, %v3410
  %v3413 = vperm.slane %v3406, 0
  %v3414 = vsub.f32 %v3343, %v3413
  %v3415 = vsub.f32 %v3346, %v3413
  %v3416 = vsub.f32 %v3349, %v3413
  %v3417 = vsub.f32 %v3352, %v3413
  %v3418 = vadd.f32 %v3412, 1e-05
  %v3419 = vrsqrt.pop %v3418
  %v3420 = vmul.f32 %v3419, %v3418
  %v3421 = vmul.f32 %v3420, %v3419
  %v3422 = vmul.f32 0.5, %v3421
  %v3423 = vsub.f32 1.5, %v3422
  %v3424 = vmul.f32 %v3419, %v3423
  %vm3425 = vweird.f32 %v3418
  %vm3426 = vweird.f32 %v3419
  %vm3427 = vmor %vm3425, %vm3426
  %v3428 = vsel %vm3427, %v3419, %v3424
  %v3429 = vperm.slane %v3428, 1
  %v3430 = vmul.f32 %v3414, %v3429
  %v3431 = vmul.f32 %v3415, %v3429
  %v3432 = vmul.f32 %v3416, %v3429
  %v3433 = vmul.f32 %v3417, %v3429
  %3434 = vset.pattern.permute.xlu0 10
  %3435 = vperm.xlu0 %3434, %v49
  %v3436 = vpop.permute.xlu0 %3435
  %3438 = vset.pattern.permute.xlu0 10
  %3439 = vperm.xlu0 %3438, %v50
  %v3440 = vpop.permute.xlu0 %3439
  %3442 = vset.pattern.permute.xlu0 10
  %3443 = vperm.xlu0 %3442, %v51
  %v3444 = vpop.permute.xlu0 %3443
  %3446 = vset.pattern.permute.xlu0 10
  %3447 = vperm.xlu0 %3446, %v52
  %v3448 = vpop.permute.xlu0 %3447
  %v3450 = vmul.f32 %v3430, %v3436
  %v3451 = vmul.f32 %v3431, %v3440
  %v3452 = vmul.f32 %v3432, %v3444
  %v3453 = vmul.f32 %v3433, %v3448
  %3454 = vset.pattern.permute.xlu0 11
  %3455 = vperm.xlu0 %3454, %v49
  %v3456 = vpop.permute.xlu0 %3455
  %3458 = vset.pattern.permute.xlu0 11
  %3459 = vperm.xlu0 %3458, %v50
  %v3460 = vpop.permute.xlu0 %3459
  %3462 = vset.pattern.permute.xlu0 11
  %3463 = vperm.xlu0 %3462, %v51
  %v3464 = vpop.permute.xlu0 %3463
  %3466 = vset.pattern.permute.xlu0 11
  %3467 = vperm.xlu0 %3466, %v52
  %v3468 = vpop.permute.xlu0 %3467
  %v3470 = vadd.f32 %v3450, %v3456
  %v3471 = vadd.f32 %v3451, %v3460
  %v3472 = vadd.f32 %v3452, %v3464
  %v3473 = vadd.f32 %v3453, %v3468
  %v3474 = vmul.f32 %v3470, 0.5
  %v3475 = vmul.f32 %v3471, 0.5
  %v3476 = vmul.f32 %v3472, 0.5
  %v3477 = vmul.f32 %v3473, 0.5
  %v3478 = vmul.f32 %v3470, %v269
  %v3479 = vmul.f32 %v3471, %v269
  %v3480 = vmul.f32 %v3472, %v269
  %v3481 = vmul.f32 %v3473, %v269
  %v3482 = vmul.f32 %v3478, %v3478
  %v3483 = vmin.f32 16.0, %v3482
  %v3484 = vmul.f32 %v3483, 2.1237322e-06
  %v3485 = vadd.f32 %v3484, 0.00028619796
  %v3486 = vmul.f32 %v3483, %v3485
  %v3487 = vadd.f32 %v3486, 0.0036580483
  %v3488 = vmul.f32 %v3483, %v3487
  %v3489 = vadd.f32 %v3488, 0.05243302
  %v3490 = vmul.f32 %v3483, %v3489
  %v3491 = vadd.f32 %v3490, 0.18741608
  %v3492 = vmul.f32 %v3483, %v3491
  %v3493 = vadd.f32 %v3492, 1.1283791
  %v3494 = vmul.f32 %v3478, %v3493
  %v3495 = vmul.f32 %v3483, 3.8918573e-05
  %v3496 = vadd.f32 %v3495, 0.001143296
  %v3497 = vmul.f32 %v3483, %v3496
  %v3498 = vadd.f32 %v3497, 0.014752088
  %v3499 = vmul.f32 %v3483, %v3498
  %v3500 = vadd.f32 %v3499, 0.112945676
  %v3501 = vmul.f32 %v3483, %v3500
  %v3502 = vadd.f32 %v3501, 0.4994258
  %v3503 = vmul.f32 %v3483, %v3502
  %v3504 = vadd.f32 %v3503, 1.0
  %v3505 = vrcp.pop %v3504
  %v3506 = vmul.f32 %v3504, %v3505
  %v3507 = vsub.f32 1.0, %v3506
  %v3508 = vmul.f32 %v3505, %v3507
  %v3509 = vadd.f32 %v3505, %v3508
  %vm3510 = vweird.f32 %v3504
  %vm3511 = vweird.f32 %v3505
  %vm3512 = vmor %vm3510, %vm3511
  %v3513 = vsel %vm3512, %v3505, %v3509
  %v3514 = vand.u32 2147483647, %v3504
  %vm3515 = vcmp.eq.f32.partialorder %v3514, 8.507059e+37
  %v3516 = vand.u32 %v3504, 2147483648
  %v3517 = vor.u32 1.1754944e-38, %v3516
  %v3518 = vsel %vm3515, %v3517, %v3513
  %v3519 = vmul.f32 %v3494, %v3518
  %v3520 = vmin.f32 %v3519, 1.0
  %v3521 = vmax.f32 %v3520, -1.0
  %v3522 = vmul.f32 %v3479, %v3479
  %v3523 = vmin.f32 16.0, %v3522
  %v3524 = vmul.f32 %v3523, 2.1237322e-06
  %v3525 = vadd.f32 %v3524, 0.00028619796
  %v3526 = vmul.f32 %v3523, %v3525
  %v3527 = vadd.f32 %v3526, 0.0036580483
  %v3528 = vmul.f32 %v3523, %v3527
  %v3529 = vadd.f32 %v3528, 0.05243302
  %v3530 = vmul.f32 %v3523, %v3529
  %v3531 = vadd.f32 %v3530, 0.18741608
  %v3532 = vmul.f32 %v3523, %v3531
  %v3533 = vadd.f32 %v3532, 1.1283791
  %v3534 = vmul.f32 %v3479, %v3533
  %v3535 = vmul.f32 %v3523, 3.8918573e-05
  %v3536 = vadd.f32 %v3535, 0.001143296
  %v3537 = vmul.f32 %v3523, %v3536
  %v3538 = vadd.f32 %v3537, 0.014752088
  %v3539 = vmul.f32 %v3523, %v3538
  %v3540 = vadd.f32 %v3539, 0.112945676
  %v3541 = vmul.f32 %v3523, %v3540
  %v3542 = vadd.f32 %v3541, 0.4994258
  %v3543 = vmul.f32 %v3523, %v3542
  %v3544 = vadd.f32 %v3543, 1.0
  %v3545 = vrcp.pop %v3544
  %v3546 = vmul.f32 %v3544, %v3545
  %v3547 = vsub.f32 1.0, %v3546
  %v3548 = vmul.f32 %v3545, %v3547
  %v3549 = vadd.f32 %v3545, %v3548
  %vm3550 = vweird.f32 %v3544
  %vm3551 = vweird.f32 %v3545
  %vm3552 = vmor %vm3550, %vm3551
  %v3553 = vsel %vm3552, %v3545, %v3549
  %v3554 = vand.u32 2147483647, %v3544
  %vm3555 = vcmp.eq.f32.partialorder %v3554, 8.507059e+37
  %v3556 = vand.u32 %v3544, 2147483648
  %v3557 = vor.u32 1.1754944e-38, %v3556
  %v3558 = vsel %vm3555, %v3557, %v3553
  %v3559 = vmul.f32 %v3534, %v3558
  %v3560 = vmin.f32 %v3559, 1.0
  %v3561 = vmax.f32 %v3560, -1.0
  %v3562 = vmul.f32 %v3480, %v3480
  %v3563 = vmin.f32 16.0, %v3562
  %v3564 = vmul.f32 %v3563, 2.1237322e-06
  %v3565 = vadd.f32 %v3564, 0.00028619796
  %v3566 = vmul.f32 %v3563, %v3565
  %v3567 = vadd.f32 %v3566, 0.0036580483
  %v3568 = vmul.f32 %v3563, %v3567
  %v3569 = vadd.f32 %v3568, 0.05243302
  %v3570 = vmul.f32 %v3563, %v3569
  %v3571 = vadd.f32 %v3570, 0.18741608
  %v3572 = vmul.f32 %v3563, %v3571
  %v3573 = vadd.f32 %v3572, 1.1283791
  %v3574 = vmul.f32 %v3480, %v3573
  %v3575 = vmul.f32 %v3563, 3.8918573e-05
  %v3576 = vadd.f32 %v3575, 0.001143296
  %v3577 = vmul.f32 %v3563, %v3576
  %v3578 = vadd.f32 %v3577, 0.014752088
  %v3579 = vmul.f32 %v3563, %v3578
  %v3580 = vadd.f32 %v3579, 0.112945676
  %v3581 = vmul.f32 %v3563, %v3580
  %v3582 = vadd.f32 %v3581, 0.4994258
  %v3583 = vmul.f32 %v3563, %v3582
  %v3584 = vadd.f32 %v3583, 1.0
  %v3585 = vrcp.pop %v3584
  %v3586 = vmul.f32 %v3584, %v3585
  %v3587 = vsub.f32 1.0, %v3586
  %v3588 = vmul.f32 %v3585, %v3587
  %v3589 = vadd.f32 %v3585, %v3588
  %vm3590 = vweird.f32 %v3584
  %vm3591 = vweird.f32 %v3585
  %vm3592 = vmor %vm3590, %vm3591
  %v3593 = vsel %vm3592, %v3585, %v3589
  %v3594 = vand.u32 2147483647, %v3584
  %vm3595 = vcmp.eq.f32.partialorder %v3594, 8.507059e+37
  %v3596 = vand.u32 %v3584, 2147483648
  %v3597 = vor.u32 1.1754944e-38, %v3596
  %v3598 = vsel %vm3595, %v3597, %v3593
  %v3599 = vmul.f32 %v3574, %v3598
  %v3600 = vmin.f32 %v3599, 1.0
  %v3601 = vmax.f32 %v3600, -1.0
  %v3602 = vmul.f32 %v3481, %v3481
  %v3603 = vmin.f32 16.0, %v3602
  %v3604 = vmul.f32 %v3603, 2.1237322e-06
  %v3605 = vadd.f32 %v3604, 0.00028619796
  %v3606 = vmul.f32 %v3603, %v3605
  %v3607 = vadd.f32 %v3606, 0.0036580483
  %v3608 = vmul.f32 %v3603, %v3607
  %v3609 = vadd.f32 %v3608, 0.05243302
  %v3610 = vmul.f32 %v3603, %v3609
  %v3611 = vadd.f32 %v3610, 0.18741608
  %v3612 = vmul.f32 %v3603, %v3611
  %v3613 = vadd.f32 %v3612, 1.1283791
  %v3614 = vmul.f32 %v3481, %v3613
  %v3615 = vmul.f32 %v3603, 3.8918573e-05
  %v3616 = vadd.f32 %v3615, 0.001143296
  %v3617 = vmul.f32 %v3603, %v3616
  %v3618 = vadd.f32 %v3617, 0.014752088
  %v3619 = vmul.f32 %v3603, %v3618
  %v3620 = vadd.f32 %v3619, 0.112945676
  %v3621 = vmul.f32 %v3603, %v3620
  %v3622 = vadd.f32 %v3621, 0.4994258
  %v3623 = vmul.f32 %v3603, %v3622
  %v3624 = vadd.f32 %v3623, 1.0
  %v3625 = vrcp.pop %v3624
  %v3626 = vmul.f32 %v3624, %v3625
  %v3627 = vsub.f32 1.0, %v3626
  %v3628 = vmul.f32 %v3625, %v3627
  %v3629 = vadd.f32 %v3625, %v3628
  %vm3630 = vweird.f32 %v3624
  %vm3631 = vweird.f32 %v3625
  %vm3632 = vmor %vm3630, %vm3631
  %v3633 = vsel %vm3632, %v3625, %v3629
  %v3634 = vand.u32 2147483647, %v3624
  %vm3635 = vcmp.eq.f32.partialorder %v3634, 8.507059e+37
  %v3636 = vand.u32 %v3624, 2147483648
  %v3637 = vor.u32 1.1754944e-38, %v3636
  %v3638 = vsel %vm3635, %v3637, %v3633
  %v3639 = vmul.f32 %v3614, %v3638
  %v3640 = vmin.f32 %v3639, 1.0
  %v3641 = vmax.f32 %v3640, -1.0
  %v3642 = vadd.f32 %v3521, 1.0
  %v3643 = vadd.f32 %v3561, 1.0
  %v3644 = vadd.f32 %v3601, 1.0
  %v3645 = vadd.f32 %v3641, 1.0
  %v3646 = vmul.f32 %v3474, %v3642
  %v3647 = vmul.f32 %v3475, %v3643
  %v3648 = vmul.f32 %v3476, %v3644
  %v3649 = vmul.f32 %v3477, %v3645
  %v3650 = vadd.f32 %v3646, %v2921
  %v3651 = vadd.f32 %v3647, %v2922
  %v3652 = vadd.f32 %v3648, %v2923
  %v3653 = vadd.f32 %v3649, %v2924
  %3654 = vst.msk [vmem:[%s9] sm:$0xff] %vm137, %v3650
  %3655 = vst.msk [vmem:[%s9 + $0x8] sm:$0xff] %vm137, %v3651
  %3656 = vst.msk [vmem:[%s9 + $0x10] sm:$0xff] %vm137, %v3652
  %3657 = vst.msk [vmem:[%s9 + $0x18] sm:$0xff] %vm137, %v3653
  // Predicated region
  $region38: #{unet_mid_block_1d.1} parent=0 // pred_check
    _
  $region39: #{unet_mid_block_1d.1} parent=0 // pred_check_branch
    %3659 = sbr.rel (0) target = $region41
  $region40: #{unet_mid_block_1d.1} parent=0 // pred_region
    _
  $region41: #{unet_mid_block_1d.1} parent=0 // pred_fallthru
    _
  // Predicated region
  $region42: #{unet_mid_block_1d.1} parent=0 // pred_check
    _
  $region43: #{unet_mid_block_1d.1} parent=0 // pred_check_branch
    %3661 = sbr.rel (0) target = $region45
  $region44: #{unet_mid_block_1d.1} parent=0 // pred_region
    _
  $region45: #{unet_mid_block_1d.1} parent=0 // pred_fallthru
    _

</llo_original>
